<compile_context>
chip_gen: v7x
topology: tpu7x:2x2x1
jax: 0.10.0
libtpu: 0.0.40
codegen_flags: <defaults>
</compile_context>

<pallas_src>
import functools
import math

import jax
import jax.numpy as jnp
from jax.experimental import pallas as pl
from jax.experimental.pallas import tpu as pltpu


# ----------------------------------------------------------------------------
# Row-tiled fused kernels
# ----------------------------------------------------------------------------

def _row_tile(n, target):
    """Row-tile size: full N for small inputs, else a multiple-of-8 target."""
    return n if n <= target else target


def _linear_kernel(x_ref, w_ref, b_ref, o_ref, *, activation):
    y = jnp.dot(x_ref[...], w_ref[...], preferred_element_type=jnp.float32)
    y = y + b_ref[...]
    if activation == "relu":
        y = jnp.maximum(y, 0.0)
    o_ref[...] = y.astype(o_ref.dtype)


def linear(x, w, b, *, activation=None, tile=512):
    """y = x @ w + b (optionally ReLU). x: (N, Din), w: (Din, Dout), b: (Dout,)."""
    n, din = x.shape
    dout = w.shape[1]
    tm = _row_tile(n, tile)
    # TODO(synk): add a K-reduction grid axis (f32 accumulator + pl.when) for
    # very large Din/Dout weights; unnecessary at these demo sizes.
    return pl.pallas_call(
        functools.partial(_linear_kernel, activation=activation),
        grid=(pl.cdiv(n, tm),),
        in_specs=[
            pl.BlockSpec((tm, din), lambda i: (i, 0)),
            pl.BlockSpec((din, dout), lambda i: (0, 0)),
            pl.BlockSpec((1, dout), lambda i: (0, 0)),
        ],
        out_specs=pl.BlockSpec((tm, dout), lambda i: (i, 0)),
        out_shape=jax.ShapeDtypeStruct((n, dout), x.dtype),
        compiler_params=pltpu.CompilerParams(dimension_semantics=("parallel",)),
    )(x, w, b.reshape(1, dout))


def _proj_add_ln_kernel(a_ref, res_ref, w_ref, b_ref, g_ref, be_ref, o_ref):
    # (attn_out @ Wo + bo) + residual, then LayerNorm — single HBM pass.
    y = jnp.dot(a_ref[...], w_ref[...], preferred_element_type=jnp.float32)
    x = y + b_ref[...] + res_ref[...].astype(jnp.float32)
    mu = jnp.mean(x, axis=-1, keepdims=True)
    var = jnp.mean(jnp.square(x - mu), axis=-1, keepdims=True)
    xn = (x - mu) * jax.lax.rsqrt(var + 1e-5)
    o_ref[...] = (xn * g_ref[...] + be_ref[...]).astype(o_ref.dtype)


def proj_add_ln(a, res, w, b, gamma, beta, *, tile=512):
    """LayerNorm(a @ w + b + res). a: (N, Din), res: (N, D), w: (Din, D)."""
    n, din = a.shape
    d = w.shape[1]
    tm = _row_tile(n, tile)
    return pl.pallas_call(
        _proj_add_ln_kernel,
        grid=(pl.cdiv(n, tm),),
        in_specs=[
            pl.BlockSpec((tm, din), lambda i: (i, 0)),
            pl.BlockSpec((tm, d), lambda i: (i, 0)),
            pl.BlockSpec((din, d), lambda i: (0, 0)),
            pl.BlockSpec((1, d), lambda i: (0, 0)),
            pl.BlockSpec((1, d), lambda i: (0, 0)),
            pl.BlockSpec((1, d), lambda i: (0, 0)),
        ],
        out_specs=pl.BlockSpec((tm, d), lambda i: (i, 0)),
        out_shape=jax.ShapeDtypeStruct((n, d), res.dtype),
        compiler_params=pltpu.CompilerParams(dimension_semantics=("parallel",)),
    )(a, res, w, b.reshape(1, d), gamma.reshape(1, d), beta.reshape(1, d))


def _ffn_add_ln_kernel(x_ref, w1_ref, b1_ref, w2_ref, b2_ref, g_ref, be_ref, o_ref):
    # Full FFN block fused: the (tm, ff_dim) hidden stays in VMEM / registers.
    x = x_ref[...]
    h = jnp.dot(x, w1_ref[...], preferred_element_type=jnp.float32) + b1_ref[...]
    h = jnp.maximum(h, 0.0)
    y = jnp.dot(h, w2_ref[...], preferred_element_type=jnp.float32) + b2_ref[...]
    z = y + x.astype(jnp.float32)
    mu = jnp.mean(z, axis=-1, keepdims=True)
    var = jnp.mean(jnp.square(z - mu), axis=-1, keepdims=True)
    zn = (z - mu) * jax.lax.rsqrt(var + 1e-5)
    o_ref[...] = (zn * g_ref[...] + be_ref[...]).astype(o_ref.dtype)


def ffn_add_ln(x, w1, b1, w2, b2, gamma, beta, *, tile=256):
    """LayerNorm(relu(x @ w1 + b1) @ w2 + b2 + x). x: (N, D)."""
    n, d = x.shape
    f = w1.shape[1]
    tm = _row_tile(n, tile)  # keep the (tm, ff_dim) hidden small for 64 MiB VMEM
    return pl.pallas_call(
        _ffn_add_ln_kernel,
        grid=(pl.cdiv(n, tm),),
        in_specs=[
            pl.BlockSpec((tm, d), lambda i: (i, 0)),
            pl.BlockSpec((d, f), lambda i: (0, 0)),
            pl.BlockSpec((1, f), lambda i: (0, 0)),
            pl.BlockSpec((f, d), lambda i: (0, 0)),
            pl.BlockSpec((1, d), lambda i: (0, 0)),
            pl.BlockSpec((1, d), lambda i: (0, 0)),
            pl.BlockSpec((1, d), lambda i: (0, 0)),
        ],
        out_specs=pl.BlockSpec((tm, d), lambda i: (i, 0)),
        out_shape=jax.ShapeDtypeStruct((n, d), x.dtype),
        compiler_params=pltpu.CompilerParams(dimension_semantics=("parallel",)),
    )(x, w1, b1.reshape(1, f), w2, b2.reshape(1, d),
      gamma.reshape(1, d), beta.reshape(1, d))


def _emb_pos_mask_kernel(e_ref, p_ref, m_ref, o_ref):
    # (emb + pos) with padded target rows zeroed; pos is shared across batch.
    o_ref[...] = ((e_ref[...] + p_ref[...]) * m_ref[...]).astype(o_ref.dtype)


def emb_pos_mask(emb, pos, keep):
    """emb: (B, T, D), pos: (T, D) shared, keep: (B, T, 1) float (1=keep)."""
    b, t, d = emb.shape
    return pl.pallas_call(
        _emb_pos_mask_kernel,
        grid=(b,),
        in_specs=[
            pl.BlockSpec((1, t, d), lambda i: (i, 0, 0)),
            pl.BlockSpec((t, d), lambda i: (0, 0)),
            pl.BlockSpec((1, t, 1), lambda i: (i, 0, 0)),
        ],
        out_specs=pl.BlockSpec((1, t, d), lambda i: (i, 0, 0)),
        out_shape=jax.ShapeDtypeStruct((b, t, d), emb.dtype),
        compiler_params=pltpu.CompilerParams(dimension_semantics=("parallel",)),
    )(emb, pos, keep)


# ----------------------------------------------------------------------------
# Attention kernels: one grid step per batch row, all heads in-kernel,
# causal/padding bias built in-kernel (no (B*H, T, S) bias in HBM).
# ----------------------------------------------------------------------------

def _attn_core(q, k, v, key_mask_row, num_head, scale, causal, out_dtype):
    tq, d = q.shape
    s_len = k.shape[0]
    dh = d // num_head
    bias = key_mask_row * jnp.float32(-1e9)                      # (1, S)
    if causal:
        qi = jax.lax.broadcasted_iota(jnp.int32, (tq, s_len), 0)
        ki = jax.lax.broadcasted_iota(jnp.int32, (tq, s_len), 1)
        bias = bias + jnp.where(ki > qi, jnp.float32(-1e9), jnp.float32(0.0))
    outs = []
    for h in range(num_head):
        lo, hi = h * dh, (h + 1) * dh
        sc = jax.lax.dot_general(q[:, lo:hi], k[:, lo:hi],
                                 (((1,), (1,)), ((), ())),
                                 preferred_element_type=jnp.float32)
        sc = sc * scale + bias
        m = jnp.max(sc, axis=-1, keepdims=True)
        p = jnp.exp(sc - m)
        denom = jnp.sum(p, axis=-1, keepdims=True)
        attn = p * pl.reciprocal(denom, approx=True)
        outs.append(jnp.dot(attn.astype(v.dtype), v[:, lo:hi],
                            preferred_element_type=jnp.float32))
    return jnp.concatenate(outs, axis=-1).astype(out_dtype)


def _self_attn_kernel(qkv_ref, km_ref, o_ref, *, num_head, scale):
    d = qkv_ref.shape[2] // 3
    qkv = qkv_ref[0]
    q, k, v = qkv[:, 0:d], qkv[:, d:2 * d], qkv[:, 2 * d:3 * d]
    o_ref[0] = _attn_core(q, k, v, km_ref[0], num_head, scale, True, o_ref.dtype)


def _cross_attn_kernel(q_ref, kv_ref, km_ref, o_ref, *, num_head, scale):
    d = q_ref.shape[2]
    q = q_ref[0]
    kv = kv_ref[0]
    k, v = kv[:, 0:d], kv[:, d:2 * d]
    o_ref[0] = _attn_core(q, k, v, km_ref[0], num_head, scale, False, o_ref.dtype)


def self_attention(qkv, key_mask, num_head):
    """qkv: (B, T, 3D) fused projection, key_mask: (B, 1, T) float (1=masked)."""
    b, t, d3 = qkv.shape
    d = d3 // 3
    scale = 1.0 / math.sqrt(d // num_head)
    return pl.pallas_call(
        functools.partial(_self_attn_kernel, num_head=num_head, scale=scale),
        grid=(b,),
        in_specs=[
            pl.BlockSpec((1, t, d3), lambda i: (i, 0, 0)),
            pl.BlockSpec((1, 1, t), lambda i: (i, 0, 0)),
        ],
        out_specs=pl.BlockSpec((1, t, d), lambda i: (i, 0, 0)),
        out_shape=jax.ShapeDtypeStruct((b, t, d), qkv.dtype),
        compiler_params=pltpu.CompilerParams(dimension_semantics=("parallel",)),
    )(qkv, key_mask)


def cross_attention(q, kv, key_mask, num_head):
    """q: (B, T, D), kv: (B, S, 2D) fused K/V proj, key_mask: (B, 1, S)."""
    b, t, d = q.shape
    s_len = kv.shape[1]
    scale = 1.0 / math.sqrt(d // num_head)
    return pl.pallas_call(
        functools.partial(_cross_attn_kernel, num_head=num_head, scale=scale),
        grid=(b,),
        in_specs=[
            pl.BlockSpec((1, t, d), lambda i: (i, 0, 0)),
            pl.BlockSpec((1, s_len, 2 * d), lambda i: (i, 0, 0)),
            pl.BlockSpec((1, 1, s_len), lambda i: (i, 0, 0)),
        ],
        out_specs=pl.BlockSpec((1, t, d), lambda i: (i, 0, 0)),
        out_shape=jax.ShapeDtypeStruct((b, t, d), q.dtype),
        compiler_params=pltpu.CompilerParams(dimension_semantics=("parallel",)),
    )(q, kv, key_mask)


# ----------------------------------------------------------------------------
# Model glue (plain JAX): parameter plumbing, reshapes, mask construction
# ----------------------------------------------------------------------------

def decoder_layer(x, enc, tgt_kmask, src_kmask, p, num_head):
    B, T, D = x.shape
    S = enc.shape[1]
    N = B * T
    x2 = x.reshape(N, D)

    # --- self-attention block (fused QKV, fused out-proj + add + LN) ---
    qkv = linear(x2, p["w_qkv"], p["b_qkv"])                        # (N, 3D)
    a = self_attention(qkv.reshape(B, T, 3 * D), tgt_kmask, num_head)
    x2 = proj_add_ln(a.reshape(N, D), x2, p["wo_self"], p["bo_self"],
                     p["ln1_g"], p["ln1_b"])

    # --- cross-attention block ---
    q = linear(x2, p["wq_cross"], p["bq_cross"])                    # (N, D)
    enc_kv = linear(enc.reshape(B * S, D), p["w_kv_cross"], p["b_kv_cross"])
    a = cross_attention(q.reshape(B, T, D), enc_kv.reshape(B, S, 2 * D),
                        src_kmask, num_head)
    x2 = proj_add_ln(a.reshape(N, D), x2, p["wo_cross"], p["bo_cross"],
                     p["ln2_g"], p["ln2_b"])

    # --- feed-forward block (fully fused) ---
    x2 = ffn_add_ln(x2, p["w1"], p["b1"], p["w2"], p["b2"],
                    p["ln3_g"], p["ln3_b"])
    return x2.reshape(B, T, D)


def posemb_transformer_decoder(params, input_ids, encoder_output, src_mask,
                               num_head, time_step=0):
    """Forward pass equivalent to PosEmbTransformerDecoder.forward (eval mode).

    input_ids: (B, T) int32, 0 = padding
    encoder_output: (B, S, D) float32
    src_mask: (B, S) bool, True = masked (padding) source position
    """
    B, T = input_ids.shape
    D = params["embedding"].shape[1]
    S = encoder_output.shape[1]

    tgt_mask = input_ids == 0                                       # (B, T) bool
    emb = jnp.take(params["embedding"], input_ids, axis=0)          # (B, T, D)

    # time_step == 0 and T != 1  ->  pos ids = range(T) for every batch row
    pos = params["pos_embedding"][:T]                               # (T, D) shared

    # dropout = identity (eval); masked_fill of padded target positions with 0
    keep = (~tgt_mask).astype(emb.dtype)[..., None]                 # (B, T, 1)
    x = emb_pos_mask(emb, pos, keep)                                # (B, T, D)

    # key-padding masks passed as small float rows; the causal part is built
    # in-kernel, so no (B*H, T, S) bias is ever materialized.
    tgt_kmask = tgt_mask.astype(jnp.float32)[:, None, :]            # (B, 1, T)
    src_kmask = src_mask.astype(jnp.float32)[:, None, :]            # (B, 1, S)

    # TODO(synk): layer_cache (incremental decoding, time_step > 0) not implemented.
    for lp in params["layers"]:
        x = decoder_layer(x, encoder_output, tgt_kmask, src_kmask, lp, num_head)
    return x


# ----------------------------------------------------------------------------
# Deterministic synthetic parameter init (shapes per the module's __init__)
# ----------------------------------------------------------------------------

def init_params(key, vocab_size, emb_dim, model_dim, ff_dim, num_layers):
    assert emb_dim == model_dim, "module feeds embedding straight into the layers"
    scale = 0.02
    keys = jax.random.split(key, 2 + num_layers)

    embedding = scale * jax.random.normal(keys[0], (vocab_size, emb_dim), jnp.float32)
    embedding = embedding.at[0].set(0.0)                 # padding_idx = 0
    pos_embedding = scale * jax.random.normal(keys[1], (1000, emb_dim), jnp.float32)

    def lin(k, din, dout):
        return (scale * jax.random.normal(k, (din, dout), jnp.float32),
                jnp.zeros((dout,), jnp.float32))

    layers = []
    for li in range(num_layers):
        lk = jax.random.split(keys[2 + li], 7)
        w_qkv, b_qkv = lin(lk[0], model_dim, 3 * model_dim)
        wo_s, bo_s = lin(lk[1], model_dim, model_dim)
        wq_c, bq_c = lin(lk[2], model_dim, model_dim)
        w_kv, b_kv = lin(lk[3], model_dim, 2 * model_dim)
        wo_c, bo_c = lin(lk[4], model_dim, model_dim)
        w1, b1 = lin(lk[5], model_dim, ff_dim)
        w2, b2 = lin(lk[6], ff_dim, model_dim)
        layers.append({
            "w_qkv": w_qkv, "b_qkv": b_qkv,
            "wo_self": wo_s, "bo_self": bo_s,
            "wq_cross": wq_c, "bq_cross": bq_c,
            "w_kv_cross": w_kv, "b_kv_cross": b_kv,
            "wo_cross": wo_c, "bo_cross": bo_c,
            "w1": w1, "b1": b1, "w2": w2, "b2": b2,
            "ln1_g": jnp.ones((model_dim,), jnp.float32),
            "ln1_b": jnp.zeros((model_dim,), jnp.float32),
            "ln2_g": jnp.ones((model_dim,), jnp.float32),
            "ln2_b": jnp.zeros((model_dim,), jnp.float32),
            "ln3_g": jnp.ones((model_dim,), jnp.float32),
            "ln3_b": jnp.zeros((model_dim,), jnp.float32),
        })
    return {"embedding": embedding, "pos_embedding": pos_embedding, "layers": layers}


# ----------------------------------------------------------------------------
# Main
# ----------------------------------------------------------------------------

if __name__ == "__main__":
    # small config consistent with the module
    vocab_size, emb_dim, model_dim, ff_dim = 16, 32, 32, 64
    num_layers, num_head = 2, 4
    B, T, S = 2, 8, 8

    key = jax.random.PRNGKey(0)
    k_param, k_ids, k_enc = jax.random.split(key, 3)

    params = init_params(k_param, vocab_size, emb_dim, model_dim, ff_dim, num_layers)

    input_ids = jax.random.randint(k_ids, (B, T), minval=1, maxval=vocab_size,
                                   dtype=jnp.int32)
    input_ids = input_ids.at[0, -2:].set(0)              # some target padding
    encoder_output = jax.random.normal(k_enc, (B, S, model_dim), jnp.float32)
    src_mask = jnp.zeros((B, S), dtype=bool).at[1, -1].set(True)  # some src padding

    fwd = jax.jit(functools.partial(posemb_transformer_decoder, num_head=num_head))
    out = fwd(params, input_ids, encoder_output, src_mask)
    out = jax.block_until_ready(out)

    assert out.shape == (B, T, model_dim)
    assert bool(jnp.all(jnp.isfinite(out)))
    print("KERNEL_OK")
</pallas_src>

<mosaic_0001>
module attributes {stable_mosaic.version = 11 : i64} {
  func.func @_linear_kernel(%arg0: i32, %arg1: memref<16x32xf32, #tpu.memory_space<vmem>>, %arg2: memref<32x96xf32, #tpu.memory_space<vmem>>, %arg3: memref<1x96xf32, #tpu.memory_space<vmem>>, %arg4: memref<16x96xf32, #tpu.memory_space<vmem>>) attributes {dimension_semantics = [#tpu.dimension_semantics<parallel>], iteration_bounds = array<i64: 1>, scalar_prefetch = 0 : i64, scratch_operands = 0 : i64, tpu.core_type = #tpu.core_type<tc>, window_params = [{transform_indices = @transform_0, window_bounds = array<i64: 16, 32>}, {pipeline_mode = #tpu.pipeline_mode<synchronous>, transform_indices = @transform_1, window_bounds = array<i64: 32, 96>}, {pipeline_mode = #tpu.pipeline_mode<synchronous>, transform_indices = @transform_2, window_bounds = array<i64: 1, 96>}, {transform_indices = @transform_3, window_bounds = array<i64: 16, 96>}]} {
    %c0 = arith.constant 0 : index
    %c0_0 = arith.constant 0 : index
    %0 = vector.load %arg1[%c0, %c0_0] : memref<16x32xf32, #tpu.memory_space<vmem>>, vector<16x32xf32>
    %c0_1 = arith.constant 0 : index
    %c0_2 = arith.constant 0 : index
    %1 = vector.load %arg2[%c0_1, %c0_2] : memref<32x96xf32, #tpu.memory_space<vmem>>, vector<32x96xf32>
    %cst = arith.constant dense<0.000000e+00> : vector<16x96xf32>
    %2 = tpu.matmul %0, %1, %cst {dimension_numbers = #tpu.dot_dimension_numbers<[1], [0], [0], [1], [0, 0, 1, 1], [], []>} : vector<16x32xf32>, vector<32x96xf32>, vector<16x96xf32> -> vector<16x96xf32>
    %c0_3 = arith.constant 0 : index
    %c0_4 = arith.constant 0 : index
    %3 = vector.load %arg3[%c0_3, %c0_4] : memref<1x96xf32, #tpu.memory_space<vmem>>, vector<1x96xf32>
    %4 = vector.broadcast %3 : vector<1x96xf32> to vector<16x96xf32>
    %5 = arith.addf %2, %4 : vector<16x96xf32>
    %c0_5 = arith.constant 0 : index
    %c0_6 = arith.constant 0 : index
    %6 = vector.load %arg4[%c0_5, %c0_6] : memref<16x96xf32, #tpu.memory_space<vmem>>, vector<16x96xf32>
    tpu.vector_store %arg4[%c0_5, %c0_6], %5 {strides = array<i32>} : memref<16x96xf32, #tpu.memory_space<vmem>>, vector<16x96xf32>,
    return
  }
  func.func @transform_0(%arg0: i32) -> (i32, i32) {
    %c0_i32 = arith.constant 0 : i32
    %c0_i32_0 = arith.constant 0 : i32
    return %arg0, %c0_i32 : i32, i32
  }
  func.func @transform_1(%arg0: i32) -> (i32, i32) {
    %c0_i32 = arith.constant 0 : i32
    %c0_i32_0 = arith.constant 0 : i32
    %c0_i32_1 = arith.constant 0 : i32
    return %c0_i32, %c0_i32_0 : i32, i32
  }
  func.func @transform_2(%arg0: i32) -> (i32, i32) {
    %c0_i32 = arith.constant 0 : i32
    %c0_i32_0 = arith.constant 0 : i32
    %c0_i32_1 = arith.constant 0 : i32
    return %c0_i32, %c0_i32_0 : i32, i32
  }
  func.func @transform_3(%arg0: i32) -> (i32, i32) {
    %c0_i32 = arith.constant 0 : i32
    %c0_i32_0 = arith.constant 0 : i32
    return %arg0, %c0_i32 : i32, i32
  }
}

module attributes {stable_mosaic.version = 11 : i64} {
  func.func @_emb_pos_mask_kernel(%arg0: i32, %arg1: memref<1x8x32xf32, #tpu.memory_space<vmem>>, %arg2: memref<8x32xf32, #tpu.memory_space<vmem>>, %arg3: memref<1x8x1xf32, #tpu.memory_space<vmem>>, %arg4: memref<1x8x32xf32, #tpu.memory_space<vmem>>) attributes {dimension_semantics = [#tpu.dimension_semantics<parallel>], iteration_bounds = array<i64: 2>, scalar_prefetch = 0 : i64, scratch_operands = 0 : i64, tpu.core_type = #tpu.core_type<tc>, window_params = [{transform_indices = @transform_0, window_bounds = array<i64: 1, 8, 32>}, {pipeline_mode = #tpu.pipeline_mode<synchronous>, transform_indices = @transform_1, window_bounds = array<i64: 8, 32>}, {transform_indices = @transform_2, window_bounds = array<i64: 1, 8, 1>}, {transform_indices = @transform_3, window_bounds = array<i64: 1, 8, 32>}]} {
    %c0 = arith.constant 0 : index
    %c0_0 = arith.constant 0 : index
    %c0_1 = arith.constant 0 : index
    %0 = vector.load %arg1[%c0, %c0_0, %c0_1] : memref<1x8x32xf32, #tpu.memory_space<vmem>>, vector<1x8x32xf32>
    %c0_2 = arith.constant 0 : index
    %c0_3 = arith.constant 0 : index
    %1 = vector.load %arg2[%c0_2, %c0_3] : memref<8x32xf32, #tpu.memory_space<vmem>>, vector<8x32xf32>
    %2 = vector.shape_cast %1 : vector<8x32xf32> to vector<1x8x32xf32>
    %3 = arith.addf %0, %2 : vector<1x8x32xf32>
    %c0_4 = arith.constant 0 : index
    %c0_5 = arith.constant 0 : index
    %c0_6 = arith.constant 0 : index
    %4 = vector.load %arg3[%c0_4, %c0_5, %c0_6] : memref<1x8x1xf32, #tpu.memory_space<vmem>>, vector<1x8x1xf32>
    %5 = vector.broadcast %4 : vector<1x8x1xf32> to vector<1x8x32xf32>
    %6 = arith.mulf %3, %5 : vector<1x8x32xf32>
    %c0_7 = arith.constant 0 : index
    %c0_8 = arith.constant 0 : index
    %c0_9 = arith.constant 0 : index
    %7 = vector.load %arg4[%c0_7, %c0_8, %c0_9] : memref<1x8x32xf32, #tpu.memory_space<vmem>>, vector<1x8x32xf32>
    tpu.vector_store %arg4[%c0_7, %c0_8, %c0_9], %6 {strides = array<i32>} : memref<1x8x32xf32, #tpu.memory_space<vmem>>, vector<1x8x32xf32>,
    return
  }
  func.func @transform_0(%arg0: i32) -> (i32, i32, i32) {
    %c0_i32 = arith.constant 0 : i32
    %c0_i32_0 = arith.constant 0 : i32
    %c0_i32_1 = arith.constant 0 : i32
    return %arg0, %c0_i32, %c0_i32_0 : i32, i32, i32
  }
  func.func @transform_1(%arg0: i32) -> (i32, i32) {
    %c0_i32 = arith.constant 0 : i32
    %c0_i32_0 = arith.constant 0 : i32
    %c0_i32_1 = arith.constant 0 : i32
    return %c0_i32, %c0_i32_0 : i32, i32
  }
  func.func @transform_2(%arg0: i32) -> (i32, i32, i32) {
    %c0_i32 = arith.constant 0 : i32
    %c0_i32_0 = arith.constant 0 : i32
    %c0_i32_1 = arith.constant 0 : i32
    return %arg0, %c0_i32, %c0_i32_0 : i32, i32, i32
  }
  func.func @transform_3(%arg0: i32) -> (i32, i32, i32) {
    %c0_i32 = arith.constant 0 : i32
    %c0_i32_0 = arith.constant 0 : i32
    %c0_i32_1 = arith.constant 0 : i32
    return %arg0, %c0_i32, %c0_i32_0 : i32, i32, i32
  }
}

module attributes {stable_mosaic.version = 11 : i64} {
  func.func @_self_attn_kernel(%arg0: i32, %arg1: memref<1x8x96xf32, #tpu.memory_space<vmem>>, %arg2: memref<1x1x8xf32, #tpu.memory_space<vmem>>, %arg3: memref<1x8x32xf32, #tpu.memory_space<vmem>>) attributes {dimension_semantics = [#tpu.dimension_semantics<parallel>], iteration_bounds = array<i64: 2>, scalar_prefetch = 0 : i64, scratch_operands = 0 : i64, tpu.core_type = #tpu.core_type<tc>, window_params = [{transform_indices = @transform_0, window_bounds = array<i64: 1, 8, 96>}, {transform_indices = @transform_1, window_bounds = array<i64: 1, 1, 8>}, {transform_indices = @transform_2, window_bounds = array<i64: 1, 8, 32>}]} {
    %c0 = arith.constant 0 : index
    %c0_0 = arith.constant 0 : index
    %c0_1 = arith.constant 0 : index
    %0 = vector.load %arg1[%c0, %c0_0, %c0_1] : memref<1x8x96xf32, #tpu.memory_space<vmem>>, vector<1x8x96xf32>
    %1 = vector.shape_cast %0 : vector<1x8x96xf32> to vector<8x96xf32>
    %2 = vector.extract_strided_slice %1 {offsets = [0, 0], sizes = [8, 32], strides = [1, 1]} : vector<8x96xf32> to vector<8x32xf32>
    %3 = vector.extract_strided_slice %1 {offsets = [0, 32], sizes = [8, 32], strides = [1, 1]} : vector<8x96xf32> to vector<8x32xf32>
    %4 = vector.extract_strided_slice %1 {offsets = [0, 64], sizes = [8, 32], strides = [1, 1]} : vector<8x96xf32> to vector<8x32xf32>
    %c0_2 = arith.constant 0 : index
    %c0_3 = arith.constant 0 : index
    %c0_4 = arith.constant 0 : index
    %5 = vector.load %arg2[%c0_2, %c0_3, %c0_4] : memref<1x1x8xf32, #tpu.memory_space<vmem>>, vector<1x1x8xf32>
    %6 = vector.shape_cast %5 : vector<1x1x8xf32> to vector<1x8xf32>
    %cst = arith.constant -1.000000e+09 : f32
    %7 = vector.broadcast %cst : f32 to vector<1x8xf32>
    %8 = arith.mulf %6, %7 : vector<1x8xf32>
    %9 = tpu.iota {dimensions = array<i32: 0>} : vector<8x8xi32>
    %10 = tpu.iota {dimensions = array<i32: 1>} : vector<8x8xi32>
    %11 = arith.cmpi sgt, %10, %9 : vector<8x8xi32>
    %cst_5 = arith.constant -1.000000e+09 : f32
    %cst_6 = arith.constant 0.000000e+00 : f32
    %12 = vector.broadcast %cst_5 : f32 to vector<8x8xf32>
    %13 = vector.broadcast %cst_6 : f32 to vector<8x8xf32>
    %14 = arith.select %11, %12, %13 : vector<8x8xi1>, vector<8x8xf32>
    %15 = vector.broadcast %8 : vector<1x8xf32> to vector<8x8xf32>
    %16 = arith.addf %15, %14 : vector<8x8xf32>
    %17 = vector.extract_strided_slice %2 {offsets = [0, 0], sizes = [8, 8], strides = [1, 1]} : vector<8x32xf32> to vector<8x8xf32>
    %18 = vector.extract_strided_slice %3 {offsets = [0, 0], sizes = [8, 8], strides = [1, 1]} : vector<8x32xf32> to vector<8x8xf32>
    %cst_7 = arith.constant dense<0.000000e+00> : vector<8x8xf32>
    %19 = tpu.matmul %17, %18, %cst_7 {dimension_numbers = #tpu.dot_dimension_numbers<[1], [1], [0], [0], [0, 0, 1, 0], [], []>} : vector<8x8xf32>, vector<8x8xf32>, vector<8x8xf32> -> vector<8x8xf32>
    %cst_8 = arith.constant 0.353553385 : f32
    %20 = vector.broadcast %cst_8 : f32 to vector<8x8xf32>
    %21 = arith.mulf %19, %20 : vector<8x8xf32>
    %22 = arith.addf %21, %16 : vector<8x8xf32>
    %cst_9 = arith.constant dense<0xFF800000> : vector<8xf32>
    %23 = vector.multi_reduction <maximumf>, %22, %cst_9 [1] : vector<8x8xf32> to vector<8xf32>
    %24 = vector.shape_cast %23 : vector<8xf32> to vector<8x1xf32>
    %25 = vector.broadcast %24 : vector<8x1xf32> to vector<8x8xf32>
    %26 = arith.subf %22, %25 : vector<8x8xf32>
    %27 = math.exp %26 : vector<8x8xf32>
    %cst_10 = arith.constant dense<0.000000e+00> : vector<8xf32>
    %28 = vector.multi_reduction <add>, %27, %cst_10 [1] : vector<8x8xf32> to vector<8xf32>
    %29 = vector.shape_cast %28 : vector<8xf32> to vector<8x1xf32>
    %30 = tpu.reciprocal %29 {approx = true} : vector<8x1xf32> -> vector<8x1xf32>
    %31 = vector.broadcast %30 : vector<8x1xf32> to vector<8x8xf32>
    %32 = arith.mulf %27, %31 : vector<8x8xf32>
    %33 = vector.extract_strided_slice %4 {offsets = [0, 0], sizes = [8, 8], strides = [1, 1]} : vector<8x32xf32> to vector<8x8xf32>
    %cst_11 = arith.constant dense<0.000000e+00> : vector<8x8xf32>
    %34 = tpu.matmul %32, %33, %cst_11 {dimension_numbers = #tpu.dot_dimension_numbers<[1], [0], [0], [1], [0, 0, 1, 1], [], []>} : vector<8x8xf32>, vector<8x8xf32>, vector<8x8xf32> -> vector<8x8xf32>
    %35 = vector.extract_strided_slice %2 {offsets = [0, 8], sizes = [8, 8], strides = [1, 1]} : vector<8x32xf32> to vector<8x8xf32>
    %36 = vector.extract_strided_slice %3 {offsets = [0, 8], sizes = [8, 8], strides = [1, 1]} : vector<8x32xf32> to vector<8x8xf32>
    %cst_12 = arith.constant dense<0.000000e+00> : vector<8x8xf32>
    %37 = tpu.matmul %35, %36, %cst_12 {dimension_numbers = #tpu.dot_dimension_numbers<[1], [1], [0], [0], [0, 0, 1, 0], [], []>} : vector<8x8xf32>, vector<8x8xf32>, vector<8x8xf32> -> vector<8x8xf32>
    %cst_13 = arith.constant 0.353553385 : f32
    %38 = vector.broadcast %cst_13 : f32 to vector<8x8xf32>
    %39 = arith.mulf %37, %38 : vector<8x8xf32>
    %40 = arith.addf %39, %16 : vector<8x8xf32>
    %cst_14 = arith.constant dense<0xFF800000> : vector<8xf32>
    %41 = vector.multi_reduction <maximumf>, %40, %cst_14 [1] : vector<8x8xf32> to vector<8xf32>
    %42 = vector.shape_cast %41 : vector<8xf32> to vector<8x1xf32>
    %43 = vector.broadcast %42 : vector<8x1xf32> to vector<8x8xf32>
    %44 = arith.subf %40, %43 : vector<8x8xf32>
    %45 = math.exp %44 : vector<8x8xf32>
    %cst_15 = arith.constant dense<0.000000e+00> : vector<8xf32>
    %46 = vector.multi_reduction <add>, %45, %cst_15 [1] : vector<8x8xf32> to vector<8xf32>
    %47 = vector.shape_cast %46 : vector<8xf32> to vector<8x1xf32>
    %48 = tpu.reciprocal %47 {approx = true} : vector<8x1xf32> -> vector<8x1xf32>
    %49 = vector.broadcast %48 : vector<8x1xf32> to vector<8x8xf32>
    %50 = arith.mulf %45, %49 : vector<8x8xf32>
    %51 = vector.extract_strided_slice %4 {offsets = [0, 8], sizes = [8, 8], strides = [1, 1]} : vector<8x32xf32> to vector<8x8xf32>
    %cst_16 = arith.constant dense<0.000000e+00> : vector<8x8xf32>
    %52 = tpu.matmul %50, %51, %cst_16 {dimension_numbers = #tpu.dot_dimension_numbers<[1], [0], [0], [1], [0, 0, 1, 1], [], []>} : vector<8x8xf32>, vector<8x8xf32>, vector<8x8xf32> -> vector<8x8xf32>
    %53 = vector.extract_strided_slice %2 {offsets = [0, 16], sizes = [8, 8], strides = [1, 1]} : vector<8x32xf32> to vector<8x8xf32>
    %54 = vector.extract_strided_slice %3 {offsets = [0, 16], sizes = [8, 8], strides = [1, 1]} : vector<8x32xf32> to vector<8x8xf32>
    %cst_17 = arith.constant dense<0.000000e+00> : vector<8x8xf32>
    %55 = tpu.matmul %53, %54, %cst_17 {dimension_numbers = #tpu.dot_dimension_numbers<[1], [1], [0], [0], [0, 0, 1, 0], [], []>} : vector<8x8xf32>, vector<8x8xf32>, vector<8x8xf32> -> vector<8x8xf32>
    %cst_18 = arith.constant 0.353553385 : f32
    %56 = vector.broadcast %cst_18 : f32 to vector<8x8xf32>
    %57 = arith.mulf %55, %56 : vector<8x8xf32>
    %58 = arith.addf %57, %16 : vector<8x8xf32>
    %cst_19 = arith.constant dense<0xFF800000> : vector<8xf32>
    %59 = vector.multi_reduction <maximumf>, %58, %cst_19 [1] : vector<8x8xf32> to vector<8xf32>
    %60 = vector.shape_cast %59 : vector<8xf32> to vector<8x1xf32>
    %61 = vector.broadcast %60 : vector<8x1xf32> to vector<8x8xf32>
    %62 = arith.subf %58, %61 : vector<8x8xf32>
    %63 = math.exp %62 : vector<8x8xf32>
    %cst_20 = arith.constant dense<0.000000e+00> : vector<8xf32>
    %64 = vector.multi_reduction <add>, %63, %cst_20 [1] : vector<8x8xf32> to vector<8xf32>
    %65 = vector.shape_cast %64 : vector<8xf32> to vector<8x1xf32>
    %66 = tpu.reciprocal %65 {approx = true} : vector<8x1xf32> -> vector<8x1xf32>
    %67 = vector.broadcast %66 : vector<8x1xf32> to vector<8x8xf32>
    %68 = arith.mulf %63, %67 : vector<8x8xf32>
    %69 = vector.extract_strided_slice %4 {offsets = [0, 16], sizes = [8, 8], strides = [1, 1]} : vector<8x32xf32> to vector<8x8xf32>
    %cst_21 = arith.constant dense<0.000000e+00> : vector<8x8xf32>
    %70 = tpu.matmul %68, %69, %cst_21 {dimension_numbers = #tpu.dot_dimension_numbers<[1], [0], [0], [1], [0, 0, 1, 1], [], []>} : vector<8x8xf32>, vector<8x8xf32>, vector<8x8xf32> -> vector<8x8xf32>
    %71 = vector.extract_strided_slice %2 {offsets = [0, 24], sizes = [8, 8], strides = [1, 1]} : vector<8x32xf32> to vector<8x8xf32>
    %72 = vector.extract_strided_slice %3 {offsets = [0, 24], sizes = [8, 8], strides = [1, 1]} : vector<8x32xf32> to vector<8x8xf32>
    %cst_22 = arith.constant dense<0.000000e+00> : vector<8x8xf32>
    %73 = tpu.matmul %71, %72, %cst_22 {dimension_numbers = #tpu.dot_dimension_numbers<[1], [1], [0], [0], [0, 0, 1, 0], [], []>} : vector<8x8xf32>, vector<8x8xf32>, vector<8x8xf32> -> vector<8x8xf32>
    %cst_23 = arith.constant 0.353553385 : f32
    %74 = vector.broadcast %cst_23 : f32 to vector<8x8xf32>
    %75 = arith.mulf %73, %74 : vector<8x8xf32>
    %76 = arith.addf %75, %16 : vector<8x8xf32>
    %cst_24 = arith.constant dense<0xFF800000> : vector<8xf32>
    %77 = vector.multi_reduction <maximumf>, %76, %cst_24 [1] : vector<8x8xf32> to vector<8xf32>
    %78 = vector.shape_cast %77 : vector<8xf32> to vector<8x1xf32>
    %79 = vector.broadcast %78 : vector<8x1xf32> to vector<8x8xf32>
    %80 = arith.subf %76, %79 : vector<8x8xf32>
    %81 = math.exp %80 : vector<8x8xf32>
    %cst_25 = arith.constant dense<0.000000e+00> : vector<8xf32>
    %82 = vector.multi_reduction <add>, %81, %cst_25 [1] : vector<8x8xf32> to vector<8xf32>
    %83 = vector.shape_cast %82 : vector<8xf32> to vector<8x1xf32>
    %84 = tpu.reciprocal %83 {approx = true} : vector<8x1xf32> -> vector<8x1xf32>
    %85 = vector.broadcast %84 : vector<8x1xf32> to vector<8x8xf32>
    %86 = arith.mulf %81, %85 : vector<8x8xf32>
    %87 = vector.extract_strided_slice %4 {offsets = [0, 24], sizes = [8, 8], strides = [1, 1]} : vector<8x32xf32> to vector<8x8xf32>
    %cst_26 = arith.constant dense<0.000000e+00> : vector<8x8xf32>
    %88 = tpu.matmul %86, %87, %cst_26 {dimension_numbers = #tpu.dot_dimension_numbers<[1], [0], [0], [1], [0, 0, 1, 1], [], []>} : vector<8x8xf32>, vector<8x8xf32>, vector<8x8xf32> -> vector<8x8xf32>
    %89 = tpu.concatenate %34, %52, %70, %88 in 1 : vector<8x8xf32>, vector<8x8xf32>, vector<8x8xf32>, vector<8x8xf32> -> vector<8x32xf32>
    %c0_27 = arith.constant 0 : index
    %c0_28 = arith.constant 0 : index
    %c0_29 = arith.constant 0 : index
    %90 = vector.load %arg3[%c0_27, %c0_28, %c0_29] : memref<1x8x32xf32, #tpu.memory_space<vmem>>, vector<1x8x32xf32>
    %91 = vector.shape_cast %90 : vector<1x8x32xf32> to vector<8x32xf32>
    %92 = vector.shape_cast %89 : vector<8x32xf32> to vector<1x8x32xf32>
    tpu.vector_store %arg3[%c0_27, %c0_28, %c0_29], %92 {strides = array<i32>} : memref<1x8x32xf32, #tpu.memory_space<vmem>>, vector<1x8x32xf32>,
    return
  }
  func.func @transform_0(%arg0: i32) -> (i32, i32, i32) {
    %c0_i32 = arith.constant 0 : i32
    %c0_i32_0 = arith.constant 0 : i32
    %c0_i32_1 = arith.constant 0 : i32
    return %arg0, %c0_i32, %c0_i32_0 : i32, i32, i32
  }
  func.func @transform_1(%arg0: i32) -> (i32, i32, i32) {
    %c0_i32 = arith.constant 0 : i32
    %c0_i32_0 = arith.constant 0 : i32
    %c0_i32_1 = arith.constant 0 : i32
    return %arg0, %c0_i32, %c0_i32_0 : i32, i32, i32
  }
  func.func @transform_2(%arg0: i32) -> (i32, i32, i32) {
    %c0_i32 = arith.constant 0 : i32
    %c0_i32_0 = arith.constant 0 : i32
    %c0_i32_1 = arith.constant 0 : i32
    return %arg0, %c0_i32, %c0_i32_0 : i32, i32, i32
  }
}

module attributes {stable_mosaic.version = 11 : i64} {
  func.func @_proj_add_ln_kernel(%arg0: i32, %arg1: memref<16x32xf32, #tpu.memory_space<vmem>>, %arg2: memref<16x32xf32, #tpu.memory_space<vmem>>, %arg3: memref<32x32xf32, #tpu.memory_space<vmem>>, %arg4: memref<1x32xf32, #tpu.memory_space<vmem>>, %arg5: memref<1x32xf32, #tpu.memory_space<vmem>>, %arg6: memref<1x32xf32, #tpu.memory_space<vmem>>, %arg7: memref<16x32xf32, #tpu.memory_space<vmem>>) attributes {dimension_semantics = [#tpu.dimension_semantics<parallel>], iteration_bounds = array<i64: 1>, scalar_prefetch = 0 : i64, scratch_operands = 0 : i64, tpu.core_type = #tpu.core_type<tc>, window_params = [{transform_indices = @transform_0, window_bounds = array<i64: 16, 32>}, {transform_indices = @transform_1, window_bounds = array<i64: 16, 32>}, {pipeline_mode = #tpu.pipeline_mode<synchronous>, transform_indices = @transform_2, window_bounds = array<i64: 32, 32>}, {pipeline_mode = #tpu.pipeline_mode<synchronous>, transform_indices = @transform_3, window_bounds = array<i64: 1, 32>}, {pipeline_mode = #tpu.pipeline_mode<synchronous>, transform_indices = @transform_4, window_bounds = array<i64: 1, 32>}, {pipeline_mode = #tpu.pipeline_mode<synchronous>, transform_indices = @transform_5, window_bounds = array<i64: 1, 32>}, {transform_indices = @transform_6, window_bounds = array<i64: 16, 32>}]} {
    %c0 = arith.constant 0 : index
    %c0_0 = arith.constant 0 : index
    %0 = vector.load %arg1[%c0, %c0_0] : memref<16x32xf32, #tpu.memory_space<vmem>>, vector<16x32xf32>
    %c0_1 = arith.constant 0 : index
    %c0_2 = arith.constant 0 : index
    %1 = vector.load %arg3[%c0_1, %c0_2] : memref<32x32xf32, #tpu.memory_space<vmem>>, vector<32x32xf32>
    %cst = arith.constant dense<0.000000e+00> : vector<16x32xf32>
    %2 = tpu.matmul %0, %1, %cst {dimension_numbers = #tpu.dot_dimension_numbers<[1], [0], [0], [1], [0, 0, 1, 1], [], []>} : vector<16x32xf32>, vector<32x32xf32>, vector<16x32xf32> -> vector<16x32xf32>
    %c0_3 = arith.constant 0 : index
    %c0_4 = arith.constant 0 : index
    %3 = vector.load %arg4[%c0_3, %c0_4] : memref<1x32xf32, #tpu.memory_space<vmem>>, vector<1x32xf32>
    %4 = vector.broadcast %3 : vector<1x32xf32> to vector<16x32xf32>
    %5 = arith.addf %2, %4 : vector<16x32xf32>
    %c0_5 = arith.constant 0 : index
    %c0_6 = arith.constant 0 : index
    %6 = vector.load %arg2[%c0_5, %c0_6] : memref<16x32xf32, #tpu.memory_space<vmem>>, vector<16x32xf32>
    %7 = arith.addf %5, %6 : vector<16x32xf32>
    %cst_7 = arith.constant dense<0.000000e+00> : vector<16xf32>
    %8 = vector.multi_reduction <add>, %7, %cst_7 [1] : vector<16x32xf32> to vector<16xf32>
    %9 = vector.shape_cast %8 : vector<16xf32> to vector<16x1xf32>
    %cst_8 = arith.constant 3.200000e+01 : f32
    %10 = vector.broadcast %cst_8 : f32 to vector<16x1xf32>
    %11 = arith.divf %9, %10 : vector<16x1xf32>
    %12 = vector.broadcast %11 : vector<16x1xf32> to vector<16x32xf32>
    %13 = arith.subf %7, %12 : vector<16x32xf32>
    %14 = arith.mulf %13, %13 : vector<16x32xf32>
    %cst_9 = arith.constant dense<0.000000e+00> : vector<16xf32>
    %15 = vector.multi_reduction <add>, %14, %cst_9 [1] : vector<16x32xf32> to vector<16xf32>
    %16 = vector.shape_cast %15 : vector<16xf32> to vector<16x1xf32>
    %cst_10 = arith.constant 3.200000e+01 : f32
    %17 = vector.broadcast %cst_10 : f32 to vector<16x1xf32>
    %18 = arith.divf %16, %17 : vector<16x1xf32>
    %19 = vector.broadcast %11 : vector<16x1xf32> to vector<16x32xf32>
    %20 = arith.subf %7, %19 : vector<16x32xf32>
    %cst_11 = arith.constant 9.99999974E-6 : f32
    %21 = vector.broadcast %cst_11 : f32 to vector<16x1xf32>
    %22 = arith.addf %18, %21 : vector<16x1xf32>
    %23 = math.rsqrt %22 : vector<16x1xf32>
    %24 = vector.broadcast %23 : vector<16x1xf32> to vector<16x32xf32>
    %25 = arith.mulf %20, %24 : vector<16x32xf32>
    %c0_12 = arith.constant 0 : index
    %c0_13 = arith.constant 0 : index
    %26 = vector.load %arg5[%c0_12, %c0_13] : memref<1x32xf32, #tpu.memory_space<vmem>>, vector<1x32xf32>
    %27 = vector.broadcast %26 : vector<1x32xf32> to vector<16x32xf32>
    %28 = arith.mulf %25, %27 : vector<16x32xf32>
    %c0_14 = arith.constant 0 : index
    %c0_15 = arith.constant 0 : index
    %29 = vector.load %arg6[%c0_14, %c0_15] : memref<1x32xf32, #tpu.memory_space<vmem>>, vector<1x32xf32>
    %30 = vector.broadcast %29 : vector<1x32xf32> to vector<16x32xf32>
    %31 = arith.addf %28, %30 : vector<16x32xf32>
    %c0_16 = arith.constant 0 : index
    %c0_17 = arith.constant 0 : index
    %32 = vector.load %arg7[%c0_16, %c0_17] : memref<16x32xf32, #tpu.memory_space<vmem>>, vector<16x32xf32>
    tpu.vector_store %arg7[%c0_16, %c0_17], %31 {strides = array<i32>} : memref<16x32xf32, #tpu.memory_space<vmem>>, vector<16x32xf32>,
    return
  }
  func.func @transform_0(%arg0: i32) -> (i32, i32) {
    %c0_i32 = arith.constant 0 : i32
    %c0_i32_0 = arith.constant 0 : i32
    return %arg0, %c0_i32 : i32, i32
  }
  func.func @transform_1(%arg0: i32) -> (i32, i32) {
    %c0_i32 = arith.constant 0 : i32
    %c0_i32_0 = arith.constant 0 : i32
    return %arg0, %c0_i32 : i32, i32
  }
  func.func @transform_2(%arg0: i32) -> (i32, i32) {
    %c0_i32 = arith.constant 0 : i32
    %c0_i32_0 = arith.constant 0 : i32
    %c0_i32_1 = arith.constant 0 : i32
    return %c0_i32, %c0_i32_0 : i32, i32
  }
  func.func @transform_3(%arg0: i32) -> (i32, i32) {
    %c0_i32 = arith.constant 0 : i32
    %c0_i32_0 = arith.constant 0 : i32
    %c0_i32_1 = arith.constant 0 : i32
    return %c0_i32, %c0_i32_0 : i32, i32
  }
  func.func @transform_4(%arg0: i32) -> (i32, i32) {
    %c0_i32 = arith.constant 0 : i32
    %c0_i32_0 = arith.constant 0 : i32
    %c0_i32_1 = arith.constant 0 : i32
    return %c0_i32, %c0_i32_0 : i32, i32
  }
  func.func @transform_5(%arg0: i32) -> (i32, i32) {
    %c0_i32 = arith.constant 0 : i32
    %c0_i32_0 = arith.constant 0 : i32
    %c0_i32_1 = arith.constant 0 : i32
    return %c0_i32, %c0_i32_0 : i32, i32
  }
  func.func @transform_6(%arg0: i32) -> (i32, i32) {
    %c0_i32 = arith.constant 0 : i32
    %c0_i32_0 = arith.constant 0 : i32
    return %arg0, %c0_i32 : i32, i32
  }
}

module attributes {stable_mosaic.version = 11 : i64} {
  func.func @_linear_kernel(%arg0: i32, %arg1: memref<16x32xf32, #tpu.memory_space<vmem>>, %arg2: memref<32x64xf32, #tpu.memory_space<vmem>>, %arg3: memref<1x64xf32, #tpu.memory_space<vmem>>, %arg4: memref<16x64xf32, #tpu.memory_space<vmem>>) attributes {dimension_semantics = [#tpu.dimension_semantics<parallel>], iteration_bounds = array<i64: 1>, scalar_prefetch = 0 : i64, scratch_operands = 0 : i64, tpu.core_type = #tpu.core_type<tc>, window_params = [{transform_indices = @transform_0, window_bounds = array<i64: 16, 32>}, {pipeline_mode = #tpu.pipeline_mode<synchronous>, transform_indices = @transform_1, window_bounds = array<i64: 32, 64>}, {pipeline_mode = #tpu.pipeline_mode<synchronous>, transform_indices = @transform_2, window_bounds = array<i64: 1, 64>}, {transform_indices = @transform_3, window_bounds = array<i64: 16, 64>}]} {
    %c0 = arith.constant 0 : index
    %c0_0 = arith.constant 0 : index
    %0 = vector.load %arg1[%c0, %c0_0] : memref<16x32xf32, #tpu.memory_space<vmem>>, vector<16x32xf32>
    %c0_1 = arith.constant 0 : index
    %c0_2 = arith.constant 0 : index
    %1 = vector.load %arg2[%c0_1, %c0_2] : memref<32x64xf32, #tpu.memory_space<vmem>>, vector<32x64xf32>
    %cst = arith.constant dense<0.000000e+00> : vector<16x64xf32>
    %2 = tpu.matmul %0, %1, %cst {dimension_numbers = #tpu.dot_dimension_numbers<[1], [0], [0], [1], [0, 0, 1, 1], [], []>} : vector<16x32xf32>, vector<32x64xf32>, vector<16x64xf32> -> vector<16x64xf32>
    %c0_3 = arith.constant 0 : index
    %c0_4 = arith.constant 0 : index
    %3 = vector.load %arg3[%c0_3, %c0_4] : memref<1x64xf32, #tpu.memory_space<vmem>>, vector<1x64xf32>
    %4 = vector.broadcast %3 : vector<1x64xf32> to vector<16x64xf32>
    %5 = arith.addf %2, %4 : vector<16x64xf32>
    %c0_5 = arith.constant 0 : index
    %c0_6 = arith.constant 0 : index
    %6 = vector.load %arg4[%c0_5, %c0_6] : memref<16x64xf32, #tpu.memory_space<vmem>>, vector<16x64xf32>
    tpu.vector_store %arg4[%c0_5, %c0_6], %5 {strides = array<i32>} : memref<16x64xf32, #tpu.memory_space<vmem>>, vector<16x64xf32>,
    return
  }
  func.func @transform_0(%arg0: i32) -> (i32, i32) {
    %c0_i32 = arith.constant 0 : i32
    %c0_i32_0 = arith.constant 0 : i32
    return %arg0, %c0_i32 : i32, i32
  }
  func.func @transform_1(%arg0: i32) -> (i32, i32) {
    %c0_i32 = arith.constant 0 : i32
    %c0_i32_0 = arith.constant 0 : i32
    %c0_i32_1 = arith.constant 0 : i32
    return %c0_i32, %c0_i32_0 : i32, i32
  }
  func.func @transform_2(%arg0: i32) -> (i32, i32) {
    %c0_i32 = arith.constant 0 : i32
    %c0_i32_0 = arith.constant 0 : i32
    %c0_i32_1 = arith.constant 0 : i32
    return %c0_i32, %c0_i32_0 : i32, i32
  }
  func.func @transform_3(%arg0: i32) -> (i32, i32) {
    %c0_i32 = arith.constant 0 : i32
    %c0_i32_0 = arith.constant 0 : i32
    return %arg0, %c0_i32 : i32, i32
  }
}

module attributes {stable_mosaic.version = 11 : i64} {
  func.func @_linear_kernel(%arg0: i32, %arg1: memref<16x32xf32, #tpu.memory_space<vmem>>, %arg2: memref<32x32xf32, #tpu.memory_space<vmem>>, %arg3: memref<1x32xf32, #tpu.memory_space<vmem>>, %arg4: memref<16x32xf32, #tpu.memory_space<vmem>>) attributes {dimension_semantics = [#tpu.dimension_semantics<parallel>], iteration_bounds = array<i64: 1>, scalar_prefetch = 0 : i64, scratch_operands = 0 : i64, tpu.core_type = #tpu.core_type<tc>, window_params = [{transform_indices = @transform_0, window_bounds = array<i64: 16, 32>}, {pipeline_mode = #tpu.pipeline_mode<synchronous>, transform_indices = @transform_1, window_bounds = array<i64: 32, 32>}, {pipeline_mode = #tpu.pipeline_mode<synchronous>, transform_indices = @transform_2, window_bounds = array<i64: 1, 32>}, {transform_indices = @transform_3, window_bounds = array<i64: 16, 32>}]} {
    %c0 = arith.constant 0 : index
    %c0_0 = arith.constant 0 : index
    %0 = vector.load %arg1[%c0, %c0_0] : memref<16x32xf32, #tpu.memory_space<vmem>>, vector<16x32xf32>
    %c0_1 = arith.constant 0 : index
    %c0_2 = arith.constant 0 : index
    %1 = vector.load %arg2[%c0_1, %c0_2] : memref<32x32xf32, #tpu.memory_space<vmem>>, vector<32x32xf32>
    %cst = arith.constant dense<0.000000e+00> : vector<16x32xf32>
    %2 = tpu.matmul %0, %1, %cst {dimension_numbers = #tpu.dot_dimension_numbers<[1], [0], [0], [1], [0, 0, 1, 1], [], []>} : vector<16x32xf32>, vector<32x32xf32>, vector<16x32xf32> -> vector<16x32xf32>
    %c0_3 = arith.constant 0 : index
    %c0_4 = arith.constant 0 : index
    %3 = vector.load %arg3[%c0_3, %c0_4] : memref<1x32xf32, #tpu.memory_space<vmem>>, vector<1x32xf32>
    %4 = vector.broadcast %3 : vector<1x32xf32> to vector<16x32xf32>
    %5 = arith.addf %2, %4 : vector<16x32xf32>
    %c0_5 = arith.constant 0 : index
    %c0_6 = arith.constant 0 : index
    %6 = vector.load %arg4[%c0_5, %c0_6] : memref<16x32xf32, #tpu.memory_space<vmem>>, vector<16x32xf32>
    tpu.vector_store %arg4[%c0_5, %c0_6], %5 {strides = array<i32>} : memref<16x32xf32, #tpu.memory_space<vmem>>, vector<16x32xf32>,
    return
  }
  func.func @transform_0(%arg0: i32) -> (i32, i32) {
    %c0_i32 = arith.constant 0 : i32
    %c0_i32_0 = arith.constant 0 : i32
    return %arg0, %c0_i32 : i32, i32
  }
  func.func @transform_1(%arg0: i32) -> (i32, i32) {
    %c0_i32 = arith.constant 0 : i32
    %c0_i32_0 = arith.constant 0 : i32
    %c0_i32_1 = arith.constant 0 : i32
    return %c0_i32, %c0_i32_0 : i32, i32
  }
  func.func @transform_2(%arg0: i32) -> (i32, i32) {
    %c0_i32 = arith.constant 0 : i32
    %c0_i32_0 = arith.constant 0 : i32
    %c0_i32_1 = arith.constant 0 : i32
    return %c0_i32, %c0_i32_0 : i32, i32
  }
  func.func @transform_3(%arg0: i32) -> (i32, i32) {
    %c0_i32 = arith.constant 0 : i32
    %c0_i32_0 = arith.constant 0 : i32
    return %arg0, %c0_i32 : i32, i32
  }
}

module attributes {stable_mosaic.version = 11 : i64} {
  func.func @_cross_attn_kernel(%arg0: i32, %arg1: memref<1x8x32xf32, #tpu.memory_space<vmem>>, %arg2: memref<1x8x64xf32, #tpu.memory_space<vmem>>, %arg3: memref<1x1x8xf32, #tpu.memory_space<vmem>>, %arg4: memref<1x8x32xf32, #tpu.memory_space<vmem>>) attributes {dimension_semantics = [#tpu.dimension_semantics<parallel>], iteration_bounds = array<i64: 2>, scalar_prefetch = 0 : i64, scratch_operands = 0 : i64, tpu.core_type = #tpu.core_type<tc>, window_params = [{transform_indices = @transform_0, window_bounds = array<i64: 1, 8, 32>}, {transform_indices = @transform_1, window_bounds = array<i64: 1, 8, 64>}, {transform_indices = @transform_2, window_bounds = array<i64: 1, 1, 8>}, {transform_indices = @transform_3, window_bounds = array<i64: 1, 8, 32>}]} {
    %c0 = arith.constant 0 : index
    %c0_0 = arith.constant 0 : index
    %c0_1 = arith.constant 0 : index
    %0 = vector.load %arg1[%c0, %c0_0, %c0_1] : memref<1x8x32xf32, #tpu.memory_space<vmem>>, vector<1x8x32xf32>
    %1 = vector.shape_cast %0 : vector<1x8x32xf32> to vector<8x32xf32>
    %c0_2 = arith.constant 0 : index
    %c0_3 = arith.constant 0 : index
    %c0_4 = arith.constant 0 : index
    %2 = vector.load %arg2[%c0_2, %c0_3, %c0_4] : memref<1x8x64xf32, #tpu.memory_space<vmem>>, vector<1x8x64xf32>
    %3 = vector.shape_cast %2 : vector<1x8x64xf32> to vector<8x64xf32>
    %4 = vector.extract_strided_slice %3 {offsets = [0, 0], sizes = [8, 32], strides = [1, 1]} : vector<8x64xf32> to vector<8x32xf32>
    %5 = vector.extract_strided_slice %3 {offsets = [0, 32], sizes = [8, 32], strides = [1, 1]} : vector<8x64xf32> to vector<8x32xf32>
    %c0_5 = arith.constant 0 : index
    %c0_6 = arith.constant 0 : index
    %c0_7 = arith.constant 0 : index
    %6 = vector.load %arg3[%c0_5, %c0_6, %c0_7] : memref<1x1x8xf32, #tpu.memory_space<vmem>>, vector<1x1x8xf32>
    %7 = vector.shape_cast %6 : vector<1x1x8xf32> to vector<1x8xf32>
    %cst = arith.constant -1.000000e+09 : f32
    %8 = vector.broadcast %cst : f32 to vector<1x8xf32>
    %9 = arith.mulf %7, %8 : vector<1x8xf32>
    %10 = vector.extract_strided_slice %1 {offsets = [0, 0], sizes = [8, 8], strides = [1, 1]} : vector<8x32xf32> to vector<8x8xf32>
    %11 = vector.extract_strided_slice %4 {offsets = [0, 0], sizes = [8, 8], strides = [1, 1]} : vector<8x32xf32> to vector<8x8xf32>
    %cst_8 = arith.constant dense<0.000000e+00> : vector<8x8xf32>
    %12 = tpu.matmul %10, %11, %cst_8 {dimension_numbers = #tpu.dot_dimension_numbers<[1], [1], [0], [0], [0, 0, 1, 0], [], []>} : vector<8x8xf32>, vector<8x8xf32>, vector<8x8xf32> -> vector<8x8xf32>
    %cst_9 = arith.constant 0.353553385 : f32
    %13 = vector.broadcast %cst_9 : f32 to vector<8x8xf32>
    %14 = arith.mulf %12, %13 : vector<8x8xf32>
    %15 = vector.broadcast %9 : vector<1x8xf32> to vector<8x8xf32>
    %16 = arith.addf %14, %15 : vector<8x8xf32>
    %cst_10 = arith.constant dense<0xFF800000> : vector<8xf32>
    %17 = vector.multi_reduction <maximumf>, %16, %cst_10 [1] : vector<8x8xf32> to vector<8xf32>
    %18 = vector.shape_cast %17 : vector<8xf32> to vector<8x1xf32>
    %19 = vector.broadcast %18 : vector<8x1xf32> to vector<8x8xf32>
    %20 = arith.subf %16, %19 : vector<8x8xf32>
    %21 = math.exp %20 : vector<8x8xf32>
    %cst_11 = arith.constant dense<0.000000e+00> : vector<8xf32>
    %22 = vector.multi_reduction <add>, %21, %cst_11 [1] : vector<8x8xf32> to vector<8xf32>
    %23 = vector.shape_cast %22 : vector<8xf32> to vector<8x1xf32>
    %24 = tpu.reciprocal %23 {approx = true} : vector<8x1xf32> -> vector<8x1xf32>
    %25 = vector.broadcast %24 : vector<8x1xf32> to vector<8x8xf32>
    %26 = arith.mulf %21, %25 : vector<8x8xf32>
    %27 = vector.extract_strided_slice %5 {offsets = [0, 0], sizes = [8, 8], strides = [1, 1]} : vector<8x32xf32> to vector<8x8xf32>
    %cst_12 = arith.constant dense<0.000000e+00> : vector<8x8xf32>
    %28 = tpu.matmul %26, %27, %cst_12 {dimension_numbers = #tpu.dot_dimension_numbers<[1], [0], [0], [1], [0, 0, 1, 1], [], []>} : vector<8x8xf32>, vector<8x8xf32>, vector<8x8xf32> -> vector<8x8xf32>
    %29 = vector.extract_strided_slice %1 {offsets = [0, 8], sizes = [8, 8], strides = [1, 1]} : vector<8x32xf32> to vector<8x8xf32>
    %30 = vector.extract_strided_slice %4 {offsets = [0, 8], sizes = [8, 8], strides = [1, 1]} : vector<8x32xf32> to vector<8x8xf32>
    %cst_13 = arith.constant dense<0.000000e+00> : vector<8x8xf32>
    %31 = tpu.matmul %29, %30, %cst_13 {dimension_numbers = #tpu.dot_dimension_numbers<[1], [1], [0], [0], [0, 0, 1, 0], [], []>} : vector<8x8xf32>, vector<8x8xf32>, vector<8x8xf32> -> vector<8x8xf32>
    %cst_14 = arith.constant 0.353553385 : f32
    %32 = vector.broadcast %cst_14 : f32 to vector<8x8xf32>
    %33 = arith.mulf %31, %32 : vector<8x8xf32>
    %34 = vector.broadcast %9 : vector<1x8xf32> to vector<8x8xf32>
    %35 = arith.addf %33, %34 : vector<8x8xf32>
    %cst_15 = arith.constant dense<0xFF800000> : vector<8xf32>
    %36 = vector.multi_reduction <maximumf>, %35, %cst_15 [1] : vector<8x8xf32> to vector<8xf32>
    %37 = vector.shape_cast %36 : vector<8xf32> to vector<8x1xf32>
    %38 = vector.broadcast %37 : vector<8x1xf32> to vector<8x8xf32>
    %39 = arith.subf %35, %38 : vector<8x8xf32>
    %40 = math.exp %39 : vector<8x8xf32>
    %cst_16 = arith.constant dense<0.000000e+00> : vector<8xf32>
    %41 = vector.multi_reduction <add>, %40, %cst_16 [1] : vector<8x8xf32> to vector<8xf32>
    %42 = vector.shape_cast %41 : vector<8xf32> to vector<8x1xf32>
    %43 = tpu.reciprocal %42 {approx = true} : vector<8x1xf32> -> vector<8x1xf32>
    %44 = vector.broadcast %43 : vector<8x1xf32> to vector<8x8xf32>
    %45 = arith.mulf %40, %44 : vector<8x8xf32>
    %46 = vector.extract_strided_slice %5 {offsets = [0, 8], sizes = [8, 8], strides = [1, 1]} : vector<8x32xf32> to vector<8x8xf32>
    %cst_17 = arith.constant dense<0.000000e+00> : vector<8x8xf32>
    %47 = tpu.matmul %45, %46, %cst_17 {dimension_numbers = #tpu.dot_dimension_numbers<[1], [0], [0], [1], [0, 0, 1, 1], [], []>} : vector<8x8xf32>, vector<8x8xf32>, vector<8x8xf32> -> vector<8x8xf32>
    %48 = vector.extract_strided_slice %1 {offsets = [0, 16], sizes = [8, 8], strides = [1, 1]} : vector<8x32xf32> to vector<8x8xf32>
    %49 = vector.extract_strided_slice %4 {offsets = [0, 16], sizes = [8, 8], strides = [1, 1]} : vector<8x32xf32> to vector<8x8xf32>
    %cst_18 = arith.constant dense<0.000000e+00> : vector<8x8xf32>
    %50 = tpu.matmul %48, %49, %cst_18 {dimension_numbers = #tpu.dot_dimension_numbers<[1], [1], [0], [0], [0, 0, 1, 0], [], []>} : vector<8x8xf32>, vector<8x8xf32>, vector<8x8xf32> -> vector<8x8xf32>
    %cst_19 = arith.constant 0.353553385 : f32
    %51 = vector.broadcast %cst_19 : f32 to vector<8x8xf32>
    %52 = arith.mulf %50, %51 : vector<8x8xf32>
    %53 = vector.broadcast %9 : vector<1x8xf32> to vector<8x8xf32>
    %54 = arith.addf %52, %53 : vector<8x8xf32>
    %cst_20 = arith.constant dense<0xFF800000> : vector<8xf32>
    %55 = vector.multi_reduction <maximumf>, %54, %cst_20 [1] : vector<8x8xf32> to vector<8xf32>
    %56 = vector.shape_cast %55 : vector<8xf32> to vector<8x1xf32>
    %57 = vector.broadcast %56 : vector<8x1xf32> to vector<8x8xf32>
    %58 = arith.subf %54, %57 : vector<8x8xf32>
    %59 = math.exp %58 : vector<8x8xf32>
    %cst_21 = arith.constant dense<0.000000e+00> : vector<8xf32>
    %60 = vector.multi_reduction <add>, %59, %cst_21 [1] : vector<8x8xf32> to vector<8xf32>
    %61 = vector.shape_cast %60 : vector<8xf32> to vector<8x1xf32>
    %62 = tpu.reciprocal %61 {approx = true} : vector<8x1xf32> -> vector<8x1xf32>
    %63 = vector.broadcast %62 : vector<8x1xf32> to vector<8x8xf32>
    %64 = arith.mulf %59, %63 : vector<8x8xf32>
    %65 = vector.extract_strided_slice %5 {offsets = [0, 16], sizes = [8, 8], strides = [1, 1]} : vector<8x32xf32> to vector<8x8xf32>
    %cst_22 = arith.constant dense<0.000000e+00> : vector<8x8xf32>
    %66 = tpu.matmul %64, %65, %cst_22 {dimension_numbers = #tpu.dot_dimension_numbers<[1], [0], [0], [1], [0, 0, 1, 1], [], []>} : vector<8x8xf32>, vector<8x8xf32>, vector<8x8xf32> -> vector<8x8xf32>
    %67 = vector.extract_strided_slice %1 {offsets = [0, 24], sizes = [8, 8], strides = [1, 1]} : vector<8x32xf32> to vector<8x8xf32>
    %68 = vector.extract_strided_slice %4 {offsets = [0, 24], sizes = [8, 8], strides = [1, 1]} : vector<8x32xf32> to vector<8x8xf32>
    %cst_23 = arith.constant dense<0.000000e+00> : vector<8x8xf32>
    %69 = tpu.matmul %67, %68, %cst_23 {dimension_numbers = #tpu.dot_dimension_numbers<[1], [1], [0], [0], [0, 0, 1, 0], [], []>} : vector<8x8xf32>, vector<8x8xf32>, vector<8x8xf32> -> vector<8x8xf32>
    %cst_24 = arith.constant 0.353553385 : f32
    %70 = vector.broadcast %cst_24 : f32 to vector<8x8xf32>
    %71 = arith.mulf %69, %70 : vector<8x8xf32>
    %72 = vector.broadcast %9 : vector<1x8xf32> to vector<8x8xf32>
    %73 = arith.addf %71, %72 : vector<8x8xf32>
    %cst_25 = arith.constant dense<0xFF800000> : vector<8xf32>
    %74 = vector.multi_reduction <maximumf>, %73, %cst_25 [1] : vector<8x8xf32> to vector<8xf32>
    %75 = vector.shape_cast %74 : vector<8xf32> to vector<8x1xf32>
    %76 = vector.broadcast %75 : vector<8x1xf32> to vector<8x8xf32>
    %77 = arith.subf %73, %76 : vector<8x8xf32>
    %78 = math.exp %77 : vector<8x8xf32>
    %cst_26 = arith.constant dense<0.000000e+00> : vector<8xf32>
    %79 = vector.multi_reduction <add>, %78, %cst_26 [1] : vector<8x8xf32> to vector<8xf32>
    %80 = vector.shape_cast %79 : vector<8xf32> to vector<8x1xf32>
    %81 = tpu.reciprocal %80 {approx = true} : vector<8x1xf32> -> vector<8x1xf32>
    %82 = vector.broadcast %81 : vector<8x1xf32> to vector<8x8xf32>
    %83 = arith.mulf %78, %82 : vector<8x8xf32>
    %84 = vector.extract_strided_slice %5 {offsets = [0, 24], sizes = [8, 8], strides = [1, 1]} : vector<8x32xf32> to vector<8x8xf32>
    %cst_27 = arith.constant dense<0.000000e+00> : vector<8x8xf32>
    %85 = tpu.matmul %83, %84, %cst_27 {dimension_numbers = #tpu.dot_dimension_numbers<[1], [0], [0], [1], [0, 0, 1, 1], [], []>} : vector<8x8xf32>, vector<8x8xf32>, vector<8x8xf32> -> vector<8x8xf32>
    %86 = tpu.concatenate %28, %47, %66, %85 in 1 : vector<8x8xf32>, vector<8x8xf32>, vector<8x8xf32>, vector<8x8xf32> -> vector<8x32xf32>
    %c0_28 = arith.constant 0 : index
    %c0_29 = arith.constant 0 : index
    %c0_30 = arith.constant 0 : index
    %87 = vector.load %arg4[%c0_28, %c0_29, %c0_30] : memref<1x8x32xf32, #tpu.memory_space<vmem>>, vector<1x8x32xf32>
    %88 = vector.shape_cast %87 : vector<1x8x32xf32> to vector<8x32xf32>
    %89 = vector.shape_cast %86 : vector<8x32xf32> to vector<1x8x32xf32>
    tpu.vector_store %arg4[%c0_28, %c0_29, %c0_30], %89 {strides = array<i32>} : memref<1x8x32xf32, #tpu.memory_space<vmem>>, vector<1x8x32xf32>,
    return
  }
  func.func @transform_0(%arg0: i32) -> (i32, i32, i32) {
    %c0_i32 = arith.constant 0 : i32
    %c0_i32_0 = arith.constant 0 : i32
    %c0_i32_1 = arith.constant 0 : i32
    return %arg0, %c0_i32, %c0_i32_0 : i32, i32, i32
  }
  func.func @transform_1(%arg0: i32) -> (i32, i32, i32) {
    %c0_i32 = arith.constant 0 : i32
    %c0_i32_0 = arith.constant 0 : i32
    %c0_i32_1 = arith.constant 0 : i32
    return %arg0, %c0_i32, %c0_i32_0 : i32, i32, i32
  }
  func.func @transform_2(%arg0: i32) -> (i32, i32, i32) {
    %c0_i32 = arith.constant 0 : i32
    %c0_i32_0 = arith.constant 0 : i32
    %c0_i32_1 = arith.constant 0 : i32
    return %arg0, %c0_i32, %c0_i32_0 : i32, i32, i32
  }
  func.func @transform_3(%arg0: i32) -> (i32, i32, i32) {
    %c0_i32 = arith.constant 0 : i32
    %c0_i32_0 = arith.constant 0 : i32
    %c0_i32_1 = arith.constant 0 : i32
    return %arg0, %c0_i32, %c0_i32_0 : i32, i32, i32
  }
}

module attributes {stable_mosaic.version = 11 : i64} {
  func.func @_ffn_add_ln_kernel(%arg0: i32, %arg1: memref<16x32xf32, #tpu.memory_space<vmem>>, %arg2: memref<32x64xf32, #tpu.memory_space<vmem>>, %arg3: memref<1x64xf32, #tpu.memory_space<vmem>>, %arg4: memref<64x32xf32, #tpu.memory_space<vmem>>, %arg5: memref<1x32xf32, #tpu.memory_space<vmem>>, %arg6: memref<1x32xf32, #tpu.memory_space<vmem>>, %arg7: memref<1x32xf32, #tpu.memory_space<vmem>>, %arg8: memref<16x32xf32, #tpu.memory_space<vmem>>) attributes {dimension_semantics = [#tpu.dimension_semantics<parallel>], iteration_bounds = array<i64: 1>, scalar_prefetch = 0 : i64, scratch_operands = 0 : i64, tpu.core_type = #tpu.core_type<tc>, window_params = [{transform_indices = @transform_0, window_bounds = array<i64: 16, 32>}, {pipeline_mode = #tpu.pipeline_mode<synchronous>, transform_indices = @transform_1, window_bounds = array<i64: 32, 64>}, {pipeline_mode = #tpu.pipeline_mode<synchronous>, transform_indices = @transform_2, window_bounds = array<i64: 1, 64>}, {pipeline_mode = #tpu.pipeline_mode<synchronous>, transform_indices = @transform_3, window_bounds = array<i64: 64, 32>}, {pipeline_mode = #tpu.pipeline_mode<synchronous>, transform_indices = @transform_4, window_bounds = array<i64: 1, 32>}, {pipeline_mode = #tpu.pipeline_mode<synchronous>, transform_indices = @transform_5, window_bounds = array<i64: 1, 32>}, {pipeline_mode = #tpu.pipeline_mode<synchronous>, transform_indices = @transform_6, window_bounds = array<i64: 1, 32>}, {transform_indices = @transform_7, window_bounds = array<i64: 16, 32>}]} {
    %c0 = arith.constant 0 : index
    %c0_0 = arith.constant 0 : index
    %0 = vector.load %arg1[%c0, %c0_0] : memref<16x32xf32, #tpu.memory_space<vmem>>, vector<16x32xf32>
    %c0_1 = arith.constant 0 : index
    %c0_2 = arith.constant 0 : index
    %1 = vector.load %arg2[%c0_1, %c0_2] : memref<32x64xf32, #tpu.memory_space<vmem>>, vector<32x64xf32>
    %cst = arith.constant dense<0.000000e+00> : vector<16x64xf32>
    %2 = tpu.matmul %0, %1, %cst {dimension_numbers = #tpu.dot_dimension_numbers<[1], [0], [0], [1], [0, 0, 1, 1], [], []>} : vector<16x32xf32>, vector<32x64xf32>, vector<16x64xf32> -> vector<16x64xf32>
    %c0_3 = arith.constant 0 : index
    %c0_4 = arith.constant 0 : index
    %3 = vector.load %arg3[%c0_3, %c0_4] : memref<1x64xf32, #tpu.memory_space<vmem>>, vector<1x64xf32>
    %4 = vector.broadcast %3 : vector<1x64xf32> to vector<16x64xf32>
    %5 = arith.addf %2, %4 : vector<16x64xf32>
    %cst_5 = arith.constant 0.000000e+00 : f32
    %6 = vector.broadcast %cst_5 : f32 to vector<16x64xf32>
    %7 = arith.maximumf %5, %6 : vector<16x64xf32>
    %c0_6 = arith.constant 0 : index
    %c0_7 = arith.constant 0 : index
    %8 = vector.load %arg4[%c0_6, %c0_7] : memref<64x32xf32, #tpu.memory_space<vmem>>, vector<64x32xf32>
    %cst_8 = arith.constant dense<0.000000e+00> : vector<16x32xf32>
    %9 = tpu.matmul %7, %8, %cst_8 {dimension_numbers = #tpu.dot_dimension_numbers<[1], [0], [0], [1], [0, 0, 1, 1], [], []>} : vector<16x64xf32>, vector<64x32xf32>, vector<16x32xf32> -> vector<16x32xf32>
    %c0_9 = arith.constant 0 : index
    %c0_10 = arith.constant 0 : index
    %10 = vector.load %arg5[%c0_9, %c0_10] : memref<1x32xf32, #tpu.memory_space<vmem>>, vector<1x32xf32>
    %11 = vector.broadcast %10 : vector<1x32xf32> to vector<16x32xf32>
    %12 = arith.addf %9, %11 : vector<16x32xf32>
    %13 = arith.addf %12, %0 : vector<16x32xf32>
    %cst_11 = arith.constant dense<0.000000e+00> : vector<16xf32>
    %14 = vector.multi_reduction <add>, %13, %cst_11 [1] : vector<16x32xf32> to vector<16xf32>
    %15 = vector.shape_cast %14 : vector<16xf32> to vector<16x1xf32>
    %cst_12 = arith.constant 3.200000e+01 : f32
    %16 = vector.broadcast %cst_12 : f32 to vector<16x1xf32>
    %17 = arith.divf %15, %16 : vector<16x1xf32>
    %18 = vector.broadcast %17 : vector<16x1xf32> to vector<16x32xf32>
    %19 = arith.subf %13, %18 : vector<16x32xf32>
    %20 = arith.mulf %19, %19 : vector<16x32xf32>
    %cst_13 = arith.constant dense<0.000000e+00> : vector<16xf32>
    %21 = vector.multi_reduction <add>, %20, %cst_13 [1] : vector<16x32xf32> to vector<16xf32>
    %22 = vector.shape_cast %21 : vector<16xf32> to vector<16x1xf32>
    %cst_14 = arith.constant 3.200000e+01 : f32
    %23 = vector.broadcast %cst_14 : f32 to vector<16x1xf32>
    %24 = arith.divf %22, %23 : vector<16x1xf32>
    %25 = vector.broadcast %17 : vector<16x1xf32> to vector<16x32xf32>
    %26 = arith.subf %13, %25 : vector<16x32xf32>
    %cst_15 = arith.constant 9.99999974E-6 : f32
    %27 = vector.broadcast %cst_15 : f32 to vector<16x1xf32>
    %28 = arith.addf %24, %27 : vector<16x1xf32>
    %29 = math.rsqrt %28 : vector<16x1xf32>
    %30 = vector.broadcast %29 : vector<16x1xf32> to vector<16x32xf32>
    %31 = arith.mulf %26, %30 : vector<16x32xf32>
    %c0_16 = arith.constant 0 : index
    %c0_17 = arith.constant 0 : index
    %32 = vector.load %arg6[%c0_16, %c0_17] : memref<1x32xf32, #tpu.memory_space<vmem>>, vector<1x32xf32>
    %33 = vector.broadcast %32 : vector<1x32xf32> to vector<16x32xf32>
    %34 = arith.mulf %31, %33 : vector<16x32xf32>
    %c0_18 = arith.constant 0 : index
    %c0_19 = arith.constant 0 : index
    %35 = vector.load %arg7[%c0_18, %c0_19] : memref<1x32xf32, #tpu.memory_space<vmem>>, vector<1x32xf32>
    %36 = vector.broadcast %35 : vector<1x32xf32> to vector<16x32xf32>
    %37 = arith.addf %34, %36 : vector<16x32xf32>
    %c0_20 = arith.constant 0 : index
    %c0_21 = arith.constant 0 : index
    %38 = vector.load %arg8[%c0_20, %c0_21] : memref<16x32xf32, #tpu.memory_space<vmem>>, vector<16x32xf32>
    tpu.vector_store %arg8[%c0_20, %c0_21], %37 {strides = array<i32>} : memref<16x32xf32, #tpu.memory_space<vmem>>, vector<16x32xf32>,
    return
  }
  func.func @transform_0(%arg0: i32) -> (i32, i32) {
    %c0_i32 = arith.constant 0 : i32
    %c0_i32_0 = arith.constant 0 : i32
    return %arg0, %c0_i32 : i32, i32
  }
  func.func @transform_1(%arg0: i32) -> (i32, i32) {
    %c0_i32 = arith.constant 0 : i32
    %c0_i32_0 = arith.constant 0 : i32
    %c0_i32_1 = arith.constant 0 : i32
    return %c0_i32, %c0_i32_0 : i32, i32
  }
  func.func @transform_2(%arg0: i32) -> (i32, i32) {
    %c0_i32 = arith.constant 0 : i32
    %c0_i32_0 = arith.constant 0 : i32
    %c0_i32_1 = arith.constant 0 : i32
    return %c0_i32, %c0_i32_0 : i32, i32
  }
  func.func @transform_3(%arg0: i32) -> (i32, i32) {
    %c0_i32 = arith.constant 0 : i32
    %c0_i32_0 = arith.constant 0 : i32
    %c0_i32_1 = arith.constant 0 : i32
    return %c0_i32, %c0_i32_0 : i32, i32
  }
  func.func @transform_4(%arg0: i32) -> (i32, i32) {
    %c0_i32 = arith.constant 0 : i32
    %c0_i32_0 = arith.constant 0 : i32
    %c0_i32_1 = arith.constant 0 : i32
    return %c0_i32, %c0_i32_0 : i32, i32
  }
  func.func @transform_5(%arg0: i32) -> (i32, i32) {
    %c0_i32 = arith.constant 0 : i32
    %c0_i32_0 = arith.constant 0 : i32
    %c0_i32_1 = arith.constant 0 : i32
    return %c0_i32, %c0_i32_0 : i32, i32
  }
  func.func @transform_6(%arg0: i32) -> (i32, i32) {
    %c0_i32 = arith.constant 0 : i32
    %c0_i32_0 = arith.constant 0 : i32
    %c0_i32_1 = arith.constant 0 : i32
    return %c0_i32, %c0_i32_0 : i32, i32
  }
  func.func @transform_7(%arg0: i32) -> (i32, i32) {
    %c0_i32 = arith.constant 0 : i32
    %c0_i32_0 = arith.constant 0 : i32
    return %arg0, %c0_i32 : i32, i32
  }
}

module attributes {stable_mosaic.version = 11 : i64} {
  func.func @_ffn_add_ln_kernel(%arg0: i32, %arg1: memref<16x32xf32, #tpu.memory_space<vmem>>, %arg2: memref<32x64xf32, #tpu.memory_space<vmem>>, %arg3: memref<1x64xf32, #tpu.memory_space<vmem>>, %arg4: memref<64x32xf32, #tpu.memory_space<vmem>>, %arg5: memref<1x32xf32, #tpu.memory_space<vmem>>, %arg6: memref<1x32xf32, #tpu.memory_space<vmem>>, %arg7: memref<1x32xf32, #tpu.memory_space<vmem>>, %arg8: memref<16x32xf32, #tpu.memory_space<vmem>>) attributes {dimension_semantics = [#tpu.dimension_semantics<parallel>], iteration_bounds = array<i64: 1>, scalar_prefetch = 0 : i64, scratch_operands = 0 : i64, tpu.core_type = #tpu.core_type<tc>, window_params = [{transform_indices = @transform_0, window_bounds = array<i64: 16, 32>}, {pipeline_mode = #tpu.pipeline_mode<synchronous>, transform_indices = @transform_1, window_bounds = array<i64: 32, 64>}, {pipeline_mode = #tpu.pipeline_mode<synchronous>, transform_indices = @transform_2, window_bounds = array<i64: 1, 64>}, {pipeline_mode = #tpu.pipeline_mode<synchronous>, transform_indices = @transform_3, window_bounds = array<i64: 64, 32>}, {pipeline_mode = #tpu.pipeline_mode<synchronous>, transform_indices = @transform_4, window_bounds = array<i64: 1, 32>}, {pipeline_mode = #tpu.pipeline_mode<synchronous>, transform_indices = @transform_5, window_bounds = array<i64: 1, 32>}, {pipeline_mode = #tpu.pipeline_mode<synchronous>, transform_indices = @transform_6, window_bounds = array<i64: 1, 32>}, {transform_indices = @transform_7, window_bounds = array<i64: 16, 32>}]} {
    %c0 = arith.constant 0 : index
    %c0_0 = arith.constant 0 : index
    %0 = vector.load %arg1[%c0, %c0_0] : memref<16x32xf32, #tpu.memory_space<vmem>>, vector<16x32xf32>
    %c0_1 = arith.constant 0 : index
    %c0_2 = arith.constant 0 : index
    %1 = vector.load %arg2[%c0_1, %c0_2] : memref<32x64xf32, #tpu.memory_space<vmem>>, vector<32x64xf32>
    %cst = arith.constant dense<0.000000e+00> : vector<16x64xf32>
    %2 = tpu.matmul %0, %1, %cst {dimension_numbers = #tpu.dot_dimension_numbers<[1], [0], [0], [1], [0, 0, 1, 1], [], []>} : vector<16x32xf32>, vector<32x64xf32>, vector<16x64xf32> -> vector<16x64xf32>
    %c0_3 = arith.constant 0 : index
    %c0_4 = arith.constant 0 : index
    %3 = vector.load %arg3[%c0_3, %c0_4] : memref<1x64xf32, #tpu.memory_space<vmem>>, vector<1x64xf32>
    %4 = vector.broadcast %3 : vector<1x64xf32> to vector<16x64xf32>
    %5 = arith.addf %2, %4 : vector<16x64xf32>
    %cst_5 = arith.constant 0.000000e+00 : f32
    %6 = vector.broadcast %cst_5 : f32 to vector<16x64xf32>
    %7 = arith.maximumf %5, %6 : vector<16x64xf32>
    %c0_6 = arith.constant 0 : index
    %c0_7 = arith.constant 0 : index
    %8 = vector.load %arg4[%c0_6, %c0_7] : memref<64x32xf32, #tpu.memory_space<vmem>>, vector<64x32xf32>
    %cst_8 = arith.constant dense<0.000000e+00> : vector<16x32xf32>
    %9 = tpu.matmul %7, %8, %cst_8 {dimension_numbers = #tpu.dot_dimension_numbers<[1], [0], [0], [1], [0, 0, 1, 1], [], []>} : vector<16x64xf32>, vector<64x32xf32>, vector<16x32xf32> -> vector<16x32xf32>
    %c0_9 = arith.constant 0 : index
    %c0_10 = arith.constant 0 : index
    %10 = vector.load %arg5[%c0_9, %c0_10] : memref<1x32xf32, #tpu.memory_space<vmem>>, vector<1x32xf32>
    %11 = vector.broadcast %10 : vector<1x32xf32> to vector<16x32xf32>
    %12 = arith.addf %9, %11 : vector<16x32xf32>
    %13 = arith.addf %12, %0 : vector<16x32xf32>
    %cst_11 = arith.constant dense<0.000000e+00> : vector<16xf32>
    %14 = vector.multi_reduction <add>, %13, %cst_11 [1] : vector<16x32xf32> to vector<16xf32>
    %15 = vector.shape_cast %14 : vector<16xf32> to vector<16x1xf32>
    %cst_12 = arith.constant 3.200000e+01 : f32
    %16 = vector.broadcast %cst_12 : f32 to vector<16x1xf32>
    %17 = arith.divf %15, %16 : vector<16x1xf32>
    %18 = vector.broadcast %17 : vector<16x1xf32> to vector<16x32xf32>
    %19 = arith.subf %13, %18 : vector<16x32xf32>
    %20 = arith.mulf %19, %19 : vector<16x32xf32>
    %cst_13 = arith.constant dense<0.000000e+00> : vector<16xf32>
    %21 = vector.multi_reduction <add>, %20, %cst_13 [1] : vector<16x32xf32> to vector<16xf32>
    %22 = vector.shape_cast %21 : vector<16xf32> to vector<16x1xf32>
    %cst_14 = arith.constant 3.200000e+01 : f32
    %23 = vector.broadcast %cst_14 : f32 to vector<16x1xf32>
    %24 = arith.divf %22, %23 : vector<16x1xf32>
    %25 = vector.broadcast %17 : vector<16x1xf32> to vector<16x32xf32>
    %26 = arith.subf %13, %25 : vector<16x32xf32>
    %cst_15 = arith.constant 9.99999974E-6 : f32
    %27 = vector.broadcast %cst_15 : f32 to vector<16x1xf32>
    %28 = arith.addf %24, %27 : vector<16x1xf32>
    %29 = math.rsqrt %28 : vector<16x1xf32>
    %30 = vector.broadcast %29 : vector<16x1xf32> to vector<16x32xf32>
    %31 = arith.mulf %26, %30 : vector<16x32xf32>
    %c0_16 = arith.constant 0 : index
    %c0_17 = arith.constant 0 : index
    %32 = vector.load %arg6[%c0_16, %c0_17] : memref<1x32xf32, #tpu.memory_space<vmem>>, vector<1x32xf32>
    %33 = vector.broadcast %32 : vector<1x32xf32> to vector<16x32xf32>
    %34 = arith.mulf %31, %33 : vector<16x32xf32>
    %c0_18 = arith.constant 0 : index
    %c0_19 = arith.constant 0 : index
    %35 = vector.load %arg7[%c0_18, %c0_19] : memref<1x32xf32, #tpu.memory_space<vmem>>, vector<1x32xf32>
    %36 = vector.broadcast %35 : vector<1x32xf32> to vector<16x32xf32>
    %37 = arith.addf %34, %36 : vector<16x32xf32>
    %c0_20 = arith.constant 0 : index
    %c0_21 = arith.constant 0 : index
    %38 = vector.load %arg8[%c0_20, %c0_21] : memref<16x32xf32, #tpu.memory_space<vmem>>, vector<16x32xf32>
    tpu.vector_store %arg8[%c0_20, %c0_21], %37 {strides = array<i32>} : memref<16x32xf32, #tpu.memory_space<vmem>>, vector<16x32xf32>,
    return
  }
  func.func @transform_0(%arg0: i32) -> (i32, i32) {
    %c0_i32 = arith.constant 0 : i32
    %c0_i32_0 = arith.constant 0 : i32
    return %arg0, %c0_i32 : i32, i32
  }
  func.func @transform_1(%arg0: i32) -> (i32, i32) {
    %c0_i32 = arith.constant 0 : i32
    %c0_i32_0 = arith.constant 0 : i32
    %c0_i32_1 = arith.constant 0 : i32
    return %c0_i32, %c0_i32_0 : i32, i32
  }
  func.func @transform_2(%arg0: i32) -> (i32, i32) {
    %c0_i32 = arith.constant 0 : i32
    %c0_i32_0 = arith.constant 0 : i32
    %c0_i32_1 = arith.constant 0 : i32
    return %c0_i32, %c0_i32_0 : i32, i32
  }
  func.func @transform_3(%arg0: i32) -> (i32, i32) {
    %c0_i32 = arith.constant 0 : i32
    %c0_i32_0 = arith.constant 0 : i32
    %c0_i32_1 = arith.constant 0 : i32
    return %c0_i32, %c0_i32_0 : i32, i32
  }
  func.func @transform_4(%arg0: i32) -> (i32, i32) {
    %c0_i32 = arith.constant 0 : i32
    %c0_i32_0 = arith.constant 0 : i32
    %c0_i32_1 = arith.constant 0 : i32
    return %c0_i32, %c0_i32_0 : i32, i32
  }
  func.func @transform_5(%arg0: i32) -> (i32, i32) {
    %c0_i32 = arith.constant 0 : i32
    %c0_i32_0 = arith.constant 0 : i32
    %c0_i32_1 = arith.constant 0 : i32
    return %c0_i32, %c0_i32_0 : i32, i32
  }
  func.func @transform_6(%arg0: i32) -> (i32, i32) {
    %c0_i32 = arith.constant 0 : i32
    %c0_i32_0 = arith.constant 0 : i32
    %c0_i32_1 = arith.constant 0 : i32
    return %c0_i32, %c0_i32_0 : i32, i32
  }
  func.func @transform_7(%arg0: i32) -> (i32, i32) {
    %c0_i32 = arith.constant 0 : i32
    %c0_i32_0 = arith.constant 0 : i32
    return %arg0, %c0_i32 : i32, i32
  }
}

</mosaic_0001>

<llo_original>
// kernel: posemb_transformer_decoder.18
$region0: #{posemb_transformer_decoder.18}
  #allocation0 [shape = 'u32[]', space=smem, size = 0x4, offset = 0x4, fixed_abs, tag = 'smem constant byte address 0x4 - core index']
  #allocation1 [shape = 'u32[144,128]{1,0:T(1,128)}', space=vmem, size = 0x12000, scoped, tag = 'internal scratch']
  %s0 = inlined_call_operand.vmem [shape: f32[16,32], index: 0, kind: input, shape index: {}]
  %s1 = inlined_call_operand.vmem [shape: f32[32,96], index: 1, kind: input, shape index: {}]
  %s2 = inlined_call_operand.vmem [shape: f32[1,96], index: 2, kind: input, shape index: {}]
  %s3 = inlined_call_operand.vmem [shape: f32[16,96], index: 3, kind: output, shape index: {}]
  %s4 = sld [smem:[#allocation0]]
  $region22: #{posemb_transformer_decoder.18} parent=0
    _
  %s6 = ssub.s32 1, %s4
  %s7 = scalar_select 0, %s6, %s4
  // Predicated region
  $region2: #{posemb_transformer_decoder.18} parent=0 // pred_check
    _
  $region3: #{posemb_transformer_decoder.18} parent=0 // pred_check_branch
    %9 = sbr.rel (0) target = $region5
  $region4: #{posemb_transformer_decoder.18} parent=0 // pred_region
    _
  $region5: #{posemb_transformer_decoder.18} parent=0 // pred_fallthru
    _
  // Predicated region
  $region6: #{posemb_transformer_decoder.18} parent=0 // pred_check
    _
  $region7: #{posemb_transformer_decoder.18} parent=0 // pred_check_branch
    %11 = sbr.rel (0) target = $region9
  $region8: #{posemb_transformer_decoder.18} parent=0 // pred_region
    _
  $region9: #{posemb_transformer_decoder.18} parent=0 // pred_fallthru
    _
  // Predicated region
  $region10: #{posemb_transformer_decoder.18} parent=0 // pred_check
    _
  $region11: #{posemb_transformer_decoder.18} parent=0 // pred_check_branch
    %13 = sbr.rel (0) target = $region13
  $region12: #{posemb_transformer_decoder.18} parent=0 // pred_region
    _
  $region13: #{posemb_transformer_decoder.18} parent=0 // pred_fallthru
    _
  %v14 = vld [vmem:[%s0] sm:$0xff]
  %v15 = vld [vmem:[%s0 + $0x8] sm:$0xff]
  %v16 = vld [vmem:[%s1] sm:$0xff]
  %v17 = vld [vmem:[%s1 + $0x8] sm:$0xff]
  %v18 = vld [vmem:[%s1 + $0x10] sm:$0xff]
  %v19 = vld [vmem:[%s1 + $0x18] sm:$0xff]
  %v20 = vld [vmem:[%s2] sm:$0x1]
  %v22 = vlaneseq
  %v23 = vshrl.u32 %v22, 7
  %v24 = vsub.s32 0, %v23
  %v25 = vrot.slane %v20, %v24
  %vm27 = vcmask 261120
  %v29 = vsel %vm27, %v14, 0
  %v32 = vsel %vm27, %v15, 0
  %34 = vmatprep.subr.mxu0 0.0
  %35 = vmatpush1.msra.mxu0 %v16
  %36 = vmatprep.subr.mxu0 0.0
  %37 = vmatpush1.msra.mxu0 %v17
  %38 = vmatprep.subr.mxu0 0.0
  %39 = vmatpush1.msra.mxu0 %v18
  %40 = vmatprep.subr.mxu0 0.0
  %41 = vmatpush1.msra.mxu0 %v19
  %42 = vmatprep.subr.mxu0 0.0
  %43 = vmatpush1.msra.mxu0 0.0
  %44 = vmatprep.subr.mxu0 0.0
  %45 = vmatpush1.msra.mxu0 0.0
  %46 = vmatprep.subr.mxu0 0.0
  %47 = vmatpush1.msra.mxu0 0.0
  %48 = vmatprep.subr.mxu0 0.0
  %49 = vmatpush1.msra.mxu0 0.0
  %50 = vmatprep.subr.mxu0 0.0
  %51 = vmatpush1.msra.mxu0 0.0
  %52 = vmatprep.subr.mxu0 0.0
  %53 = vmatpush1.msra.mxu0 0.0
  %54 = vmatprep.subr.mxu0 0.0
  %55 = vmatpush1.msra.mxu0 0.0
  %56 = vmatprep.subr.mxu0 0.0
  %57 = vmatpush1.msra.mxu0 0.0
  %58 = vmatprep.subr.mxu0 0.0
  %59 = vmatpush1.msra.mxu0 0.0
  %60 = vmatprep.subr.mxu0 0.0
  %61 = vmatpush1.msra.mxu0 0.0
  %62 = vmatprep.subr.mxu0 0.0
  %63 = vmatpush1.msra.mxu0 0.0
  %64 = vmatprep.subr.mxu0 0.0
  %65 = vmatpush1.msra.mxu0 0.0
  %66 = vmatprep.subr.mxu0 0.0
  %67 = vmatpush1.msra.mxu0 0.0
  %68 = vmatprep.subr.mxu0 0.0
  %69 = vmatpush1.msra.mxu0 0.0
  %70 = vmatprep.subr.mxu0 0.0
  %71 = vmatpush1.msra.mxu0 0.0
  %72 = vmatprep.subr.mxu0 0.0
  %73 = vmatpush1.msra.mxu0 0.0
  %74 = vmatprep.subr.mxu0 0.0
  %75 = vmatpush1.msra.mxu0 0.0
  %76 = vmatprep.subr.mxu0 0.0
  %77 = vmatpush1.msra.mxu0 0.0
  %78 = vmatprep.subr.mxu0 0.0
  %79 = vmatpush1.msra.mxu0 0.0
  %80 = vmatprep.subr.mxu0 0.0
  %81 = vmatpush1.msra.mxu0 0.0
  %82 = vmatprep.subr.mxu0 0.0
  %83 = vmatpush1.msra.mxu0 0.0
  %84 = vmatprep.subr.mxu0 0.0
  %85 = vmatpush1.msra.mxu0 0.0
  %86 = vmatprep.subr.mxu0 0.0
  %87 = vmatpush1.msra.mxu0 0.0
  %88 = vmatprep.subr.mxu0 0.0
  %89 = vmatpush1.msra.mxu0 0.0
  %90 = vmatprep.subr.mxu0 0.0
  %91 = vmatpush1.msra.mxu0 0.0
  %92 = vmatprep.subr.mxu0 0.0
  %93 = vmatpush1.msra.mxu0 0.0
  %94 = vmatprep.subr.mxu0 0.0
  %95 = vmatpush1.msra.mxu0 0.0
  %96 = vmatprep.subr.mxu0 0.0
  %97 = vmatpush1.msra.mxu0 0.0
  %98 = vmatprep.mubr.f32.mxu0 0.0
  %99 = vmatmul.mubr.f32.gmra.mrb[0].mxu0 %v29
  %v100 = vpop.f32.mrb[0].mxu0
  %v101 = vadd.f32 %v25, %v100
  %v102 = vpop.f32.mrb[0].mxu0
  %103 = vmatprep.mubr.f32.mxu0 0.0
  %104 = vmatmul.mubr.f32.gmra.mrb[0].mxu0 %v32
  %v105 = vpop.f32.mrb[0].mxu0
  %v106 = vadd.f32 %v25, %v105
  %v107 = vpop.f32.mrb[0].mxu0
  %108 = vdwg.mxu0
  %vm109 = vcmask 785408
  %110 = vst.msk [vmem:[%s3] sm:$0xff] %vm109, %v101
  %111 = vst.msk [vmem:[%s3 + $0x8] sm:$0xff] %vm109, %v106
  // Predicated region
  $region14: #{posemb_transformer_decoder.18} parent=0 // pred_check
    _
  $region15: #{posemb_transformer_decoder.18} parent=0 // pred_check_branch
    %113 = sbr.rel (0) target = $region17
  $region16: #{posemb_transformer_decoder.18} parent=0 // pred_region
    _
  $region17: #{posemb_transformer_decoder.18} parent=0 // pred_fallthru
    _
  // Predicated region
  $region18: #{posemb_transformer_decoder.18} parent=0 // pred_check
    _
  $region19: #{posemb_transformer_decoder.18} parent=0 // pred_check_branch
    %115 = sbr.rel (0) target = $region21
  $region20: #{posemb_transformer_decoder.18} parent=0 // pred_region
    _
  $region21: #{posemb_transformer_decoder.18} parent=0 // pred_fallthru
    _

// kernel: posemb_transformer_decoder.17
$region0: #{posemb_transformer_decoder.17}
  #allocation0 [shape = 'u32[]', space=smem, size = 0x4, offset = 0x4, fixed_abs, tag = 'smem constant byte address 0x4 - core index']
  #allocation1 [shape = 'u32[144,128]{1,0:T(1,128)}', space=vmem, size = 0x12000, scoped, tag = 'internal scratch']
  %s0 = inlined_call_operand.vmem [shape: f32[2,8,32], index: 0, kind: input, shape index: {}]
  %s1 = inlined_call_operand.vmem [shape: f32[8,32], index: 1, kind: input, shape index: {}]
  %s2 = inlined_call_operand.vmem [shape: f32[2,8,1], index: 2, kind: input, shape index: {}]
  %s3 = inlined_call_operand.vmem [shape: f32[2,8,32], index: 3, kind: output, shape index: {}]
  %s4 = sld [smem:[#allocation0]]
  $region45: #{posemb_transformer_decoder.17} parent=0
    _
  %s6 = ssub.s32 1, %s4
  %s7 = scalar_select 0, %s6, %s4
  loop: start=0, step=1, limit=4
  $region2: #{posemb_transformer_decoder.17} parent=0 // loop_pre_header
    _
  $region3: #{posemb_transformer_decoder.17} parent=0 // loop_header
    %s9 = sphi 0, %s13
    %p10 = scmp.ge.s32.totalorder %s9, 4
    %s19 = sphi 0, %s21
    %s22 = sphi 0, %s19
    %s23 = sphi 0, %s22
    %s39 = sphi 0, %s23
    %s43 = sphi 0, %s43
    %s45 = sphi 0, %s43
    %s46 = sphi 0, %s45
    %s60 = sphi 0, %s46
    %s66 = sphi 0, %s68
    %s69 = sphi 0, %s66
    %s70 = sphi 0, %s69
    %s86 = sphi 0, %s70
    %s92 = sphi 0, %s94
    %s95 = sphi 0, %s92
    %s96 = sphi 0, %s95
    %s112 = sphi 0, %s96
  $region4: #{posemb_transformer_decoder.17} parent=0 // loop_header_branch
    %12 = sbr.rel (%p10) target = $region8
  $region5: #{posemb_transformer_decoder.17} parent=0 // loop_body
    %s14 = ssub.s32 %s9, 1
    %s15 = ssub.s32 %s9, 2
    %s16 = sadd.s32 %s9, 1
    %s17 = ssub.s32 %s9, %s16
    %p18 = scmp.eq.s32.totalorder %s17, 0
    %s20 = sadd.s32 %s19, 1
    %s21 = scalar_select %p18, %s19, %s20
    %p24 = pneg %p18
    %p25 = scmp.eq.s32.totalorder %s9, 1
    %p26 = por %p24, %p25
    %p27 = scmp.ne.s32.totalorder %s19, %s22
    %p28 = scmp.eq.s32.totalorder %s9, 0
    %p29 = por %p27, %p28
    %p30 = scmp.ne.s32.totalorder %s19, %s22
    %p31 = scmp.eq.s32.totalorder %s14, 1
    %p32 = por %p30, %p31
    %p33 = scmp.ne.s32.totalorder %s22, %s23
    %p34 = scmp.eq.s32.totalorder %s14, 0
    %p35 = por %p33, %p34
    %p36 = scmp.ne.s32.totalorder %s22, %s23
    %p37 = scmp.eq.s32.totalorder %s15, 1
    %p38 = por %p36, %p37
    %p40 = scmp.ne.s32.totalorder %s23, %s39
    %p41 = scmp.eq.s32.totalorder %s15, 0
    %p42 = por %p40, %p41
    %s44 = sadd.s32 %s43, 1
    %p47 = scmp.eq.s32.totalorder %s9, 1
    %p48 = scmp.ne.s32.totalorder %s43, %s45
    %p49 = scmp.eq.s32.totalorder %s9, 0
    %p50 = por %p48, %p49
    %p51 = scmp.ne.s32.totalorder %s43, %s45
    %p52 = scmp.eq.s32.totalorder %s14, 1
    %p53 = por %p51, %p52
    %p54 = scmp.ne.s32.totalorder %s45, %s46
    %p55 = scmp.eq.s32.totalorder %s14, 0
    %p56 = por %p54, %p55
    %p57 = scmp.ne.s32.totalorder %s45, %s46
    %p58 = scmp.eq.s32.totalorder %s15, 1
    %p59 = por %p57, %p58
    %p61 = scmp.ne.s32.totalorder %s46, %s60
    %p62 = scmp.eq.s32.totalorder %s15, 0
    %p63 = por %p61, %p62
    %s64 = ssub.s32 %s9, %s16
    %p65 = scmp.eq.s32.totalorder %s64, 0
    %s67 = sadd.s32 %s66, 1
    %s68 = scalar_select %p65, %s66, %s67
    %p71 = pneg %p65
    %p72 = scmp.eq.s32.totalorder %s9, 1
    %p73 = por %p71, %p72
    %p74 = scmp.ne.s32.totalorder %s66, %s69
    %p75 = scmp.eq.s32.totalorder %s9, 0
    %p76 = por %p74, %p75
    %p77 = scmp.ne.s32.totalorder %s66, %s69
    %p78 = scmp.eq.s32.totalorder %s14, 1
    %p79 = por %p77, %p78
    %p80 = scmp.ne.s32.totalorder %s69, %s70
    %p81 = scmp.eq.s32.totalorder %s14, 0
    %p82 = por %p80, %p81
    %p83 = scmp.ne.s32.totalorder %s69, %s70
    %p84 = scmp.eq.s32.totalorder %s15, 1
    %p85 = por %p83, %p84
    %p87 = scmp.ne.s32.totalorder %s70, %s86
    %p88 = scmp.eq.s32.totalorder %s15, 0
    %p89 = por %p87, %p88
    %s90 = ssub.s32 %s9, %s16
    %p91 = scmp.eq.s32.totalorder %s90, 0
    %s93 = sadd.s32 %s92, 1
    %s94 = scalar_select %p91, %s92, %s93
    %p97 = pneg %p91
    %p98 = scmp.eq.s32.totalorder %s9, 1
    %p99 = por %p97, %p98
    %p100 = scmp.ne.s32.totalorder %s92, %s95
    %p101 = scmp.eq.s32.totalorder %s9, 0
    %p102 = por %p100, %p101
    %p103 = scmp.ne.s32.totalorder %s92, %s95
    %p104 = scmp.eq.s32.totalorder %s14, 1
    %p105 = por %p103, %p104
    %p106 = scmp.ne.s32.totalorder %s95, %s96
    %p107 = scmp.eq.s32.totalorder %s14, 0
    %p108 = por %p106, %p107
    %p109 = scmp.ne.s32.totalorder %s95, %s96
    %p110 = scmp.eq.s32.totalorder %s15, 1
    %p111 = por %p109, %p110
    %p113 = scmp.ne.s32.totalorder %s96, %s112
    %p114 = scmp.eq.s32.totalorder %s15, 0
    %p115 = por %p113, %p114
    %p116 = scmp.le.s32.totalorder 1, %s9
    %p117 = scmp.lt.s32.totalorder %s9, 3
    %p118 = pnand %p116, %p117
    %p119 = pneg %p118
    // Predicated region
    $region9: #{posemb_transformer_decoder.17} parent=5 // pred_check
      _
    $region10: #{posemb_transformer_decoder.17} parent=5 // pred_check_branch
      %121 = sbr.rel (%p118) target = $region12
    $region11: #{posemb_transformer_decoder.17} parent=5 // pred_region
      %s122 = ssub.s32 %s9, 1
      // Predicated region
      $region13: #{posemb_transformer_decoder.17} parent=11 // pred_check
        %p123 = pneg %p56
      $region14: #{posemb_transformer_decoder.17} parent=11 // pred_check_branch
        %125 = sbr.rel (%p123) target = $region16
      $region15: #{posemb_transformer_decoder.17} parent=11 // pred_region
        _
      $region16: #{posemb_transformer_decoder.17} parent=11 // pred_fallthru
        _
    $region12: #{posemb_transformer_decoder.17} parent=5 // pred_fallthru
      _
    %p126 = scmp.lt.s32.totalorder %s9, 2
    // Predicated region
    $region17: #{posemb_transformer_decoder.17} parent=5 // pred_check
      %p127 = pneg %p126
    $region18: #{posemb_transformer_decoder.17} parent=5 // pred_check_branch
      %129 = sbr.rel (%p127) target = $region20
    $region19: #{posemb_transformer_decoder.17} parent=5 // pred_region
      // Predicated region
      $region21: #{posemb_transformer_decoder.17} parent=19 // pred_check
        %p130 = pneg %p29
      $region22: #{posemb_transformer_decoder.17} parent=19 // pred_check_branch
        %132 = sbr.rel (%p130) target = $region24
      $region23: #{posemb_transformer_decoder.17} parent=19 // pred_region
        %p133 = scmp.lt.s32.totalorder %s9, 1
        %s134 = scalar_select %p133, %s9, 1
        %s135 = smul.addr %s134, 8
        %s136 = scalar_lea.vmem %s0, %s135
      $region24: #{posemb_transformer_decoder.17} parent=19 // pred_fallthru
        _
      // Predicated region
      $region25: #{posemb_transformer_decoder.17} parent=19 // pred_check
        %p137 = pneg %p76
      $region26: #{posemb_transformer_decoder.17} parent=19 // pred_check_branch
        %139 = sbr.rel (%p137) target = $region28
      $region27: #{posemb_transformer_decoder.17} parent=19 // pred_region
        %p140 = scmp.lt.s32.totalorder %s9, 1
        %s141 = scalar_select %p140, %s9, 1
        %s142 = smul.addr %s141, 8
        %s143 = scalar_lea.vmem %s2, %s142
      $region28: #{posemb_transformer_decoder.17} parent=19 // pred_fallthru
        _
    $region20: #{posemb_transformer_decoder.17} parent=5 // pred_fallthru
      _
    %p144 = scmp.le.s32.totalorder 1, %s9
    %p145 = scmp.lt.s32.totalorder %s9, 3
    %p146 = pnand %p144, %p145
    %p147 = pneg %p146
    // Predicated region
    $region29: #{posemb_transformer_decoder.17} parent=5 // pred_check
      _
    $region30: #{posemb_transformer_decoder.17} parent=5 // pred_check_branch
      %149 = sbr.rel (%p146) target = $region32
    $region31: #{posemb_transformer_decoder.17} parent=5 // pred_region
      %s150 = ssub.s32 %s9, 1
      %p151 = scmp.lt.s32.totalorder %s14, 1
      %s152 = scalar_select %p151, %s14, 1
      %s153 = smul.addr %s152, 8
      %s154 = scalar_lea.vmem %s0, %s153
      %p155 = pneg %p35
      %p156 = pneg %p32
      %p157 = pneg %p56
      %p158 = pneg %p53
      %p159 = scmp.lt.s32.totalorder %s14, 1
      %s160 = scalar_select %p159, %s14, 1
      %s161 = smul.addr %s160, 8
      %s162 = scalar_lea.vmem %s2, %s161
      %p163 = pneg %p82
      %p164 = pneg %p79
      %p165 = pneg %p108
      %p166 = pneg %p105
      %p167 = scmp.lt.s32.totalorder %s14, 1
      %s168 = scalar_select %p167, %s14, 1
      %s169 = smul.addr %s168, 8
      %s170 = scalar_lea.vmem %s3, %s169
      %p171 = scmp.lt.s32.totalorder %s14, 1
      %s172 = scalar_select %p171, %s14, 1
      %s173 = smul.addr %s172, 8
      %s174 = scalar_lea.vmem %s0, %s173
      %p175 = scmp.lt.s32.totalorder %s14, 1
      %s176 = scalar_select %p175, %s14, 1
      %s177 = smul.addr %s176, 8
      %s178 = scalar_lea.vmem %s2, %s177
      %p179 = scmp.lt.s32.totalorder %s14, 1
      %s180 = scalar_select %p179, %s14, 1
      %s181 = smul.addr %s180, 8
      %s182 = scalar_lea.vmem %s3, %s181
      %v183 = vld [vmem:[%s174] sm:$0xff]
      %v184 = vld [vmem:[%s1] sm:$0xff]
      %v185 = vadd.f32 %v183, %v184
      %v186 = vld [vmem:[%s178] sm:$0xff]
      %188 = vset.pattern.permute.xlu0 0
      %189 = vperm.xlu0 %188, %v186
      %v190 = vpop.permute.xlu0 %189
      %v192 = vmul.f32 %v185, %v190
      %vm193 = vcmask 261120
      %194 = vst.msk [vmem:[%s182] sm:$0xff] %vm193, %v192
      %p195 = scmp.lt.s32.totalorder %s14, 1
      %s196 = scalar_select %p195, %s14, 1
      %s197 = smul.addr %s196, 8
      %s198 = scalar_lea.vmem %s3, %s197
      // Predicated region
      $region33: #{posemb_transformer_decoder.17} parent=31 // pred_check
        %p199 = pneg %p105
      $region34: #{posemb_transformer_decoder.17} parent=31 // pred_check_branch
        %201 = sbr.rel (%p199) target = $region36
      $region35: #{posemb_transformer_decoder.17} parent=31 // pred_region
        _
      $region36: #{posemb_transformer_decoder.17} parent=31 // pred_fallthru
        _
    $region32: #{posemb_transformer_decoder.17} parent=5 // pred_fallthru
      _
    %p202 = scmp.le.s32.totalorder 2, %s9
    // Predicated region
    $region37: #{posemb_transformer_decoder.17} parent=5 // pred_check
      %p203 = pneg %p202
    $region38: #{posemb_transformer_decoder.17} parent=5 // pred_check_branch
      %205 = sbr.rel (%p203) target = $region40
    $region39: #{posemb_transformer_decoder.17} parent=5 // pred_region
      %s206 = ssub.s32 %s9, 2
      // Predicated region
      $region41: #{posemb_transformer_decoder.17} parent=39 // pred_check
        %p207 = pneg %p111
      $region42: #{posemb_transformer_decoder.17} parent=39 // pred_check_branch
        %209 = sbr.rel (%p207) target = $region44
      $region43: #{posemb_transformer_decoder.17} parent=39 // pred_region
        %p210 = scmp.lt.s32.totalorder %s15, 1
        %s211 = scalar_select %p210, %s15, 1
        %s212 = smul.addr %s211, 8
        %s213 = scalar_lea.vmem %s3, %s212
      $region44: #{posemb_transformer_decoder.17} parent=39 // pred_fallthru
        _
    $region40: #{posemb_transformer_decoder.17} parent=5 // pred_fallthru
      _
  $region6: #{posemb_transformer_decoder.17} parent=0 // loop_footer
    %s13 = sadd.s32 1, %s9
  $region7: #{posemb_transformer_decoder.17} parent=0 // loop_footer_branch
    %8 = sbr.rel target = $region3
  $region8: #{posemb_transformer_decoder.17} parent=0 // loop_exit
    _

// kernel: posemb_transformer_decoder.20
$region0: #{posemb_transformer_decoder.20}
  #allocation0 [shape = 'u32[]', space=smem, size = 0x4, offset = 0x4, fixed_abs, tag = 'smem constant byte address 0x4 - core index']
  #allocation1 [shape = 'u32[144,128]{1,0:T(1,128)}', space=vmem, size = 0x12000, scoped, tag = 'internal scratch']
  %s0 = inlined_call_operand.vmem [shape: f32[16,32], index: 0, kind: input, shape index: {}]
  %s1 = inlined_call_operand.vmem [shape: f32[16,32], index: 1, kind: input, shape index: {}]
  %s2 = inlined_call_operand.vmem [shape: f32[32,32], index: 2, kind: input, shape index: {}]
  %s3 = inlined_call_operand.vmem [shape: f32[1,32], index: 3, kind: input, shape index: {}]
  %s4 = inlined_call_operand.vmem [shape: f32[1,32], index: 4, kind: input, shape index: {}]
  %s5 = inlined_call_operand.vmem [shape: f32[1,32], index: 5, kind: input, shape index: {}]
  %s6 = inlined_call_operand.vmem [shape: f32[16,32], index: 6, kind: output, shape index: {}]
  %s7 = sld [smem:[#allocation0]]
  $region34: #{posemb_transformer_decoder.20} parent=0
    _
  %s9 = ssub.s32 1, %s7
  %s10 = scalar_select 0, %s9, %s7
  // Predicated region
  $region2: #{posemb_transformer_decoder.20} parent=0 // pred_check
    _
  $region3: #{posemb_transformer_decoder.20} parent=0 // pred_check_branch
    %12 = sbr.rel (0) target = $region5
  $region4: #{posemb_transformer_decoder.20} parent=0 // pred_region
    _
  $region5: #{posemb_transformer_decoder.20} parent=0 // pred_fallthru
    _
  // Predicated region
  $region6: #{posemb_transformer_decoder.20} parent=0 // pred_check
    _
  $region7: #{posemb_transformer_decoder.20} parent=0 // pred_check_branch
    %14 = sbr.rel (0) target = $region9
  $region8: #{posemb_transformer_decoder.20} parent=0 // pred_region
    _
  $region9: #{posemb_transformer_decoder.20} parent=0 // pred_fallthru
    _
  // Predicated region
  $region10: #{posemb_transformer_decoder.20} parent=0 // pred_check
    _
  $region11: #{posemb_transformer_decoder.20} parent=0 // pred_check_branch
    %16 = sbr.rel (0) target = $region13
  $region12: #{posemb_transformer_decoder.20} parent=0 // pred_region
    _
  $region13: #{posemb_transformer_decoder.20} parent=0 // pred_fallthru
    _
  // Predicated region
  $region14: #{posemb_transformer_decoder.20} parent=0 // pred_check
    _
  $region15: #{posemb_transformer_decoder.20} parent=0 // pred_check_branch
    %18 = sbr.rel (0) target = $region17
  $region16: #{posemb_transformer_decoder.20} parent=0 // pred_region
    _
  $region17: #{posemb_transformer_decoder.20} parent=0 // pred_fallthru
    _
  // Predicated region
  $region18: #{posemb_transformer_decoder.20} parent=0 // pred_check
    _
  $region19: #{posemb_transformer_decoder.20} parent=0 // pred_check_branch
    %20 = sbr.rel (0) target = $region21
  $region20: #{posemb_transformer_decoder.20} parent=0 // pred_region
    _
  $region21: #{posemb_transformer_decoder.20} parent=0 // pred_fallthru
    _
  // Predicated region
  $region22: #{posemb_transformer_decoder.20} parent=0 // pred_check
    _
  $region23: #{posemb_transformer_decoder.20} parent=0 // pred_check_branch
    %22 = sbr.rel (0) target = $region25
  $region24: #{posemb_transformer_decoder.20} parent=0 // pred_region
    _
  $region25: #{posemb_transformer_decoder.20} parent=0 // pred_fallthru
    _
  %v23 = vld [vmem:[%s0] sm:$0xff]
  %v24 = vld [vmem:[%s0 + $0x8] sm:$0xff]
  %v25 = vld [vmem:[%s2] sm:$0xff]
  %v26 = vld [vmem:[%s2 + $0x8] sm:$0xff]
  %v27 = vld [vmem:[%s2 + $0x10] sm:$0xff]
  %v28 = vld [vmem:[%s2 + $0x18] sm:$0xff]
  %v29 = vld [vmem:[%s3] sm:$0x1]
  %v31 = vlaneseq
  %v32 = vshrl.u32 %v31, 7
  %v33 = vsub.s32 0, %v32
  %v34 = vrot.slane %v29, %v33
  %vm36 = vcmask 261120
  %v38 = vsel %vm36, %v23, 0
  %v41 = vsel %vm36, %v24, 0
  %43 = vmatprep.subr.mxu0 0.0
  %44 = vmatpush1.msra.mxu0 %v25
  %45 = vmatprep.subr.mxu0 0.0
  %46 = vmatpush1.msra.mxu0 %v26
  %47 = vmatprep.subr.mxu0 0.0
  %48 = vmatpush1.msra.mxu0 %v27
  %49 = vmatprep.subr.mxu0 0.0
  %50 = vmatpush1.msra.mxu0 %v28
  %51 = vmatprep.subr.mxu0 0.0
  %52 = vmatpush1.msra.mxu0 0.0
  %53 = vmatprep.subr.mxu0 0.0
  %54 = vmatpush1.msra.mxu0 0.0
  %55 = vmatprep.subr.mxu0 0.0
  %56 = vmatpush1.msra.mxu0 0.0
  %57 = vmatprep.subr.mxu0 0.0
  %58 = vmatpush1.msra.mxu0 0.0
  %59 = vmatprep.subr.mxu0 0.0
  %60 = vmatpush1.msra.mxu0 0.0
  %61 = vmatprep.subr.mxu0 0.0
  %62 = vmatpush1.msra.mxu0 0.0
  %63 = vmatprep.subr.mxu0 0.0
  %64 = vmatpush1.msra.mxu0 0.0
  %65 = vmatprep.subr.mxu0 0.0
  %66 = vmatpush1.msra.mxu0 0.0
  %67 = vmatprep.subr.mxu0 0.0
  %68 = vmatpush1.msra.mxu0 0.0
  %69 = vmatprep.subr.mxu0 0.0
  %70 = vmatpush1.msra.mxu0 0.0
  %71 = vmatprep.subr.mxu0 0.0
  %72 = vmatpush1.msra.mxu0 0.0
  %73 = vmatprep.subr.mxu0 0.0
  %74 = vmatpush1.msra.mxu0 0.0
  %75 = vmatprep.subr.mxu0 0.0
  %76 = vmatpush1.msra.mxu0 0.0
  %77 = vmatprep.subr.mxu0 0.0
  %78 = vmatpush1.msra.mxu0 0.0
  %79 = vmatprep.subr.mxu0 0.0
  %80 = vmatpush1.msra.mxu0 0.0
  %81 = vmatprep.subr.mxu0 0.0
  %82 = vmatpush1.msra.mxu0 0.0
  %83 = vmatprep.subr.mxu0 0.0
  %84 = vmatpush1.msra.mxu0 0.0
  %85 = vmatprep.subr.mxu0 0.0
  %86 = vmatpush1.msra.mxu0 0.0
  %87 = vmatprep.subr.mxu0 0.0
  %88 = vmatpush1.msra.mxu0 0.0
  %89 = vmatprep.subr.mxu0 0.0
  %90 = vmatpush1.msra.mxu0 0.0
  %91 = vmatprep.subr.mxu0 0.0
  %92 = vmatpush1.msra.mxu0 0.0
  %93 = vmatprep.subr.mxu0 0.0
  %94 = vmatpush1.msra.mxu0 0.0
  %95 = vmatprep.subr.mxu0 0.0
  %96 = vmatpush1.msra.mxu0 0.0
  %97 = vmatprep.subr.mxu0 0.0
  %98 = vmatpush1.msra.mxu0 0.0
  %99 = vmatprep.subr.mxu0 0.0
  %100 = vmatpush1.msra.mxu0 0.0
  %101 = vmatprep.subr.mxu0 0.0
  %102 = vmatpush1.msra.mxu0 0.0
  %103 = vmatprep.subr.mxu0 0.0
  %104 = vmatpush1.msra.mxu0 0.0
  %105 = vmatprep.subr.mxu0 0.0
  %106 = vmatpush1.msra.mxu0 0.0
  %107 = vmatprep.mubr.f32.mxu0 0.0
  %108 = vmatmul.mubr.f32.gmra.mrb[0].mxu0 %v38
  %v109 = vpop.f32.mrb[0].mxu0
  %v110 = vadd.f32 %v34, %v109
  %v111 = vpop.f32.mrb[0].mxu0
  %112 = vmatprep.mubr.f32.mxu0 0.0
  %113 = vmatmul.mubr.f32.gmra.mrb[0].mxu0 %v41
  %v114 = vpop.f32.mrb[0].mxu0
  %v115 = vadd.f32 %v34, %v114
  %v116 = vpop.f32.mrb[0].mxu0
  %117 = vdwg.mxu0
  %v118 = vld [vmem:[%s1] sm:$0xff]
  %v119 = vld [vmem:[%s1 + $0x8] sm:$0xff]
  %v120 = vadd.f32 %v110, %v118
  %v121 = vadd.f32 %v115, %v119
  %v122 = vsel %vm36, %v120, 0.0
  %123 = vadd.xlane.f32.xlu0 %v122
  %v124 = vpop.xlane.xlu0 %123
  %v125 = vsel %vm36, %v121, 0.0
  %126 = vadd.xlane.f32.xlu0 %v125
  %v127 = vpop.xlane.xlu0 %126
  %v128 = vrcp.pop 32.0
  %v129 = vmul.f32 %v124, %v128
  %v130 = vmul.f32 %v127, %v128
  %v131 = vsub.f32 %v120, %v129
  %v132 = vsub.f32 %v121, %v130
  %v133 = vmul.f32 %v131, %v131
  %v134 = vmul.f32 %v132, %v132
  %v135 = vsel %vm36, %v133, 0.0
  %136 = vadd.xlane.f32.xlu0 %v135
  %v137 = vpop.xlane.xlu0 %136
  %v138 = vsel %vm36, %v134, 0.0
  %139 = vadd.xlane.f32.xlu0 %v138
  %v140 = vpop.xlane.xlu0 %139
  %v141 = vmul.f32 %v137, %v128
  %v142 = vmul.f32 %v140, %v128
  %v143 = vadd.f32 %v141, 1e-05
  %v144 = vadd.f32 %v142, 1e-05
  %v145 = vrsqrt.pop %v143
  %v146 = vrsqrt.pop %v144
  %v147 = vmul.f32 %v131, %v145
  %v148 = vmul.f32 %v132, %v146
  %v149 = vld [vmem:[%s4] sm:$0x1]
  %v151 = vlaneseq
  %v152 = vshrl.u32 %v151, 7
  %v153 = vsub.s32 0, %v152
  %v154 = vrot.slane %v149, %v153
  %v156 = vmul.f32 %v147, %v154
  %v157 = vmul.f32 %v148, %v154
  %v158 = vld [vmem:[%s5] sm:$0x1]
  %v160 = vlaneseq
  %v161 = vshrl.u32 %v160, 7
  %v162 = vsub.s32 0, %v161
  %v163 = vrot.slane %v158, %v162
  %v165 = vadd.f32 %v156, %v163
  %v166 = vadd.f32 %v157, %v163
  %167 = vst.msk [vmem:[%s6] sm:$0xff] %vm36, %v165
  %168 = vst.msk [vmem:[%s6 + $0x8] sm:$0xff] %vm36, %v166
  // Predicated region
  $region26: #{posemb_transformer_decoder.20} parent=0 // pred_check
    _
  $region27: #{posemb_transformer_decoder.20} parent=0 // pred_check_branch
    %170 = sbr.rel (0) target = $region29
  $region28: #{posemb_transformer_decoder.20} parent=0 // pred_region
    _
  $region29: #{posemb_transformer_decoder.20} parent=0 // pred_fallthru
    _
  // Predicated region
  $region30: #{posemb_transformer_decoder.20} parent=0 // pred_check
    _
  $region31: #{posemb_transformer_decoder.20} parent=0 // pred_check_branch
    %172 = sbr.rel (0) target = $region33
  $region32: #{posemb_transformer_decoder.20} parent=0 // pred_region
    _
  $region33: #{posemb_transformer_decoder.20} parent=0 // pred_fallthru
    _

// kernel: posemb_transformer_decoder.19
$region0: #{posemb_transformer_decoder.19}
  #allocation0 [shape = 'u32[]', space=smem, size = 0x4, offset = 0x4, fixed_abs, tag = 'smem constant byte address 0x4 - core index']
  #allocation1 [shape = 'u32[144,128]{1,0:T(1,128)}', space=vmem, size = 0x12000, scoped, tag = 'internal scratch']
  %s0 = inlined_call_operand.vmem [shape: f32[2,8,96], index: 0, kind: input, shape index: {}]
  %s1 = inlined_call_operand.vmem [shape: f32[2,1,8], index: 1, kind: input, shape index: {}]
  %s2 = inlined_call_operand.vmem [shape: f32[2,8,32], index: 2, kind: output, shape index: {}]
  %s3 = sld [smem:[#allocation0]]
  $region41: #{posemb_transformer_decoder.19} parent=0
    _
  %s5 = ssub.s32 1, %s3
  %s6 = scalar_select 0, %s5, %s3
  loop: start=0, step=1, limit=4
  $region2: #{posemb_transformer_decoder.19} parent=0 // loop_pre_header
    _
  $region3: #{posemb_transformer_decoder.19} parent=0 // loop_header
    %s8 = sphi 0, %s12
    %p9 = scmp.ge.s32.totalorder %s8, 4
    %s18 = sphi 0, %s20
    %s21 = sphi 0, %s18
    %s22 = sphi 0, %s21
    %s38 = sphi 0, %s22
    %s44 = sphi 0, %s46
    %s47 = sphi 0, %s44
    %s48 = sphi 0, %s47
    %s64 = sphi 0, %s48
    %s70 = sphi 0, %s72
    %s73 = sphi 0, %s70
    %s74 = sphi 0, %s73
    %s90 = sphi 0, %s74
  $region4: #{posemb_transformer_decoder.19} parent=0 // loop_header_branch
    %11 = sbr.rel (%p9) target = $region8
  $region5: #{posemb_transformer_decoder.19} parent=0 // loop_body
    %s13 = ssub.s32 %s8, 1
    %s14 = ssub.s32 %s8, 2
    %s15 = sadd.s32 %s8, 1
    %s16 = ssub.s32 %s8, %s15
    %p17 = scmp.eq.s32.totalorder %s16, 0
    %s19 = sadd.s32 %s18, 1
    %s20 = scalar_select %p17, %s18, %s19
    %p23 = pneg %p17
    %p24 = scmp.eq.s32.totalorder %s8, 1
    %p25 = por %p23, %p24
    %p26 = scmp.ne.s32.totalorder %s18, %s21
    %p27 = scmp.eq.s32.totalorder %s8, 0
    %p28 = por %p26, %p27
    %p29 = scmp.ne.s32.totalorder %s18, %s21
    %p30 = scmp.eq.s32.totalorder %s13, 1
    %p31 = por %p29, %p30
    %p32 = scmp.ne.s32.totalorder %s21, %s22
    %p33 = scmp.eq.s32.totalorder %s13, 0
    %p34 = por %p32, %p33
    %p35 = scmp.ne.s32.totalorder %s21, %s22
    %p36 = scmp.eq.s32.totalorder %s14, 1
    %p37 = por %p35, %p36
    %p39 = scmp.ne.s32.totalorder %s22, %s38
    %p40 = scmp.eq.s32.totalorder %s14, 0
    %p41 = por %p39, %p40
    %s42 = ssub.s32 %s8, %s15
    %p43 = scmp.eq.s32.totalorder %s42, 0
    %s45 = sadd.s32 %s44, 1
    %s46 = scalar_select %p43, %s44, %s45
    %p49 = pneg %p43
    %p50 = scmp.eq.s32.totalorder %s8, 1
    %p51 = por %p49, %p50
    %p52 = scmp.ne.s32.totalorder %s44, %s47
    %p53 = scmp.eq.s32.totalorder %s8, 0
    %p54 = por %p52, %p53
    %p55 = scmp.ne.s32.totalorder %s44, %s47
    %p56 = scmp.eq.s32.totalorder %s13, 1
    %p57 = por %p55, %p56
    %p58 = scmp.ne.s32.totalorder %s47, %s48
    %p59 = scmp.eq.s32.totalorder %s13, 0
    %p60 = por %p58, %p59
    %p61 = scmp.ne.s32.totalorder %s47, %s48
    %p62 = scmp.eq.s32.totalorder %s14, 1
    %p63 = por %p61, %p62
    %p65 = scmp.ne.s32.totalorder %s48, %s64
    %p66 = scmp.eq.s32.totalorder %s14, 0
    %p67 = por %p65, %p66
    %s68 = ssub.s32 %s8, %s15
    %p69 = scmp.eq.s32.totalorder %s68, 0
    %s71 = sadd.s32 %s70, 1
    %s72 = scalar_select %p69, %s70, %s71
    %p75 = pneg %p69
    %p76 = scmp.eq.s32.totalorder %s8, 1
    %p77 = por %p75, %p76
    %p78 = scmp.ne.s32.totalorder %s70, %s73
    %p79 = scmp.eq.s32.totalorder %s8, 0
    %p80 = por %p78, %p79
    %p81 = scmp.ne.s32.totalorder %s70, %s73
    %p82 = scmp.eq.s32.totalorder %s13, 1
    %p83 = por %p81, %p82
    %p84 = scmp.ne.s32.totalorder %s73, %s74
    %p85 = scmp.eq.s32.totalorder %s13, 0
    %p86 = por %p84, %p85
    %p87 = scmp.ne.s32.totalorder %s73, %s74
    %p88 = scmp.eq.s32.totalorder %s14, 1
    %p89 = por %p87, %p88
    %p91 = scmp.ne.s32.totalorder %s74, %s90
    %p92 = scmp.eq.s32.totalorder %s14, 0
    %p93 = por %p91, %p92
    %p94 = scmp.le.s32.totalorder 1, %s8
    %p95 = scmp.lt.s32.totalorder %s8, 3
    %p96 = pnand %p94, %p95
    %p97 = pneg %p96
    // Predicated region
    $region9: #{posemb_transformer_decoder.19} parent=5 // pred_check
      _
    $region10: #{posemb_transformer_decoder.19} parent=5 // pred_check_branch
      %99 = sbr.rel (%p96) target = $region12
    $region11: #{posemb_transformer_decoder.19} parent=5 // pred_region
      %s100 = ssub.s32 %s8, 1
    $region12: #{posemb_transformer_decoder.19} parent=5 // pred_fallthru
      _
    %p101 = scmp.lt.s32.totalorder %s8, 2
    // Predicated region
    $region13: #{posemb_transformer_decoder.19} parent=5 // pred_check
      %p102 = pneg %p101
    $region14: #{posemb_transformer_decoder.19} parent=5 // pred_check_branch
      %104 = sbr.rel (%p102) target = $region16
    $region15: #{posemb_transformer_decoder.19} parent=5 // pred_region
      // Predicated region
      $region17: #{posemb_transformer_decoder.19} parent=15 // pred_check
        %p105 = pneg %p28
      $region18: #{posemb_transformer_decoder.19} parent=15 // pred_check_branch
        %107 = sbr.rel (%p105) target = $region20
      $region19: #{posemb_transformer_decoder.19} parent=15 // pred_region
        %p108 = scmp.lt.s32.totalorder %s8, 1
        %s109 = scalar_select %p108, %s8, 1
        %s110 = smul.addr %s109, 8
        %s111 = scalar_lea.vmem %s0, %s110
      $region20: #{posemb_transformer_decoder.19} parent=15 // pred_fallthru
        _
      // Predicated region
      $region21: #{posemb_transformer_decoder.19} parent=15 // pred_check
        %p112 = pneg %p54
      $region22: #{posemb_transformer_decoder.19} parent=15 // pred_check_branch
        %114 = sbr.rel (%p112) target = $region24
      $region23: #{posemb_transformer_decoder.19} parent=15 // pred_region
        %p115 = scmp.lt.s32.totalorder %s8, 1
        %s116 = scalar_select %p115, %s8, 1
        %s117 = scalar_lea.vmem %s1, %s116
      $region24: #{posemb_transformer_decoder.19} parent=15 // pred_fallthru
        _
    $region16: #{posemb_transformer_decoder.19} parent=5 // pred_fallthru
      _
    %p118 = scmp.le.s32.totalorder 1, %s8
    %p119 = scmp.lt.s32.totalorder %s8, 3
    %p120 = pnand %p118, %p119
    %p121 = pneg %p120
    // Predicated region
    $region25: #{posemb_transformer_decoder.19} parent=5 // pred_check
      _
    $region26: #{posemb_transformer_decoder.19} parent=5 // pred_check_branch
      %123 = sbr.rel (%p120) target = $region28
    $region27: #{posemb_transformer_decoder.19} parent=5 // pred_region
      %s124 = ssub.s32 %s8, 1
      %p125 = scmp.lt.s32.totalorder %s13, 1
      %s126 = scalar_select %p125, %s13, 1
      %s127 = smul.addr %s126, 8
      %s128 = scalar_lea.vmem %s0, %s127
      %p129 = pneg %p34
      %p130 = pneg %p31
      %p131 = scmp.lt.s32.totalorder %s13, 1
      %s132 = scalar_select %p131, %s13, 1
      %s133 = scalar_lea.vmem %s1, %s132
      %p134 = pneg %p60
      %p135 = pneg %p57
      %p136 = pneg %p86
      %p137 = pneg %p83
      %p138 = scmp.lt.s32.totalorder %s13, 1
      %s139 = scalar_select %p138, %s13, 1
      %s140 = smul.addr %s139, 8
      %s141 = scalar_lea.vmem %s2, %s140
      %p142 = scmp.lt.s32.totalorder %s13, 1
      %s143 = scalar_select %p142, %s13, 1
      %s144 = smul.addr %s143, 8
      %s145 = scalar_lea.vmem %s0, %s144
      %p146 = scmp.lt.s32.totalorder %s13, 1
      %s147 = scalar_select %p146, %s13, 1
      %s148 = scalar_lea.vmem %s1, %s147
      %p149 = scmp.lt.s32.totalorder %s13, 1
      %s150 = scalar_select %p149, %s13, 1
      %s151 = smul.addr %s150, 8
      %s152 = scalar_lea.vmem %s2, %s151
      %v153 = vld [vmem:[%s145] sm:$0xff]
      %v154 = vld [vmem:[%s148] sm:$0x1]
      %v155 = vmul.f32 %v154, -1e+09
      %v156 = vlaneseq
      %v157 = vshrl.u32 %v156, 7
      %v158 = vlaneseq
      %v159 = vand.u32 %v158, 127
      %vm160 = vcmp.gt.s32.totalorder %v159, %v157
      %v161 = vsel %vm160, -1e+09, 0.0
      %v163 = vlaneseq
      %v164 = vshrl.u32 %v163, 7
      %v165 = vsub.s32 0, %v164
      %v166 = vrot.slane %v155, %v165
      %v168 = vadd.f32 %v166, %v161
      %170 = vrot.lane.b32.xlu0 %v153, 96
      %v171 = vpop.permute.xlu0 %170
      %vm172 = vcmask 64512
      %v173 = vsel %vm172, %v153, 0
      %v175 = vsel %vm172, %v171, 0
      %177 = vmatprep.subr.mxu0 0.0
      %178 = vmatpush1.xpose.msra.mxu0 %v175
      %179 = vmatprep.subr.mxu0 0.0
      %180 = vmatpush1.xpose.msra.mxu0 0.0
      %181 = vmatprep.subr.mxu0 0.0
      %182 = vmatpush1.xpose.msra.mxu0 0.0
      %183 = vmatprep.subr.mxu0 0.0
      %184 = vmatpush1.xpose.msra.mxu0 0.0
      %185 = vmatprep.subr.mxu0 0.0
      %186 = vmatpush1.xpose.msra.mxu0 0.0
      %187 = vmatprep.subr.mxu0 0.0
      %188 = vmatpush1.xpose.msra.mxu0 0.0
      %189 = vmatprep.subr.mxu0 0.0
      %190 = vmatpush1.xpose.msra.mxu0 0.0
      %191 = vmatprep.subr.mxu0 0.0
      %192 = vmatpush1.xpose.msra.mxu0 0.0
      %193 = vmatprep.subr.mxu0 0.0
      %194 = vmatpush1.xpose.msra.mxu0 0.0
      %195 = vmatprep.subr.mxu0 0.0
      %196 = vmatpush1.xpose.msra.mxu0 0.0
      %197 = vmatprep.subr.mxu0 0.0
      %198 = vmatpush1.xpose.msra.mxu0 0.0
      %199 = vmatprep.subr.mxu0 0.0
      %200 = vmatpush1.xpose.msra.mxu0 0.0
      %201 = vmatprep.subr.mxu0 0.0
      %202 = vmatpush1.xpose.msra.mxu0 0.0
      %203 = vmatprep.subr.mxu0 0.0
      %204 = vmatpush1.xpose.msra.mxu0 0.0
      %205 = vmatprep.subr.mxu0 0.0
      %206 = vmatpush1.xpose.msra.mxu0 0.0
      %207 = vmatprep.subr.mxu0 0.0
      %208 = vmatpush1.xpose.msra.mxu0 0.0
      %209 = vmatprep.subr.mxu0 0.0
      %210 = vmatpush1.xpose.msra.mxu0 0.0
      %211 = vmatprep.subr.mxu0 0.0
      %212 = vmatpush1.xpose.msra.mxu0 0.0
      %213 = vmatprep.subr.mxu0 0.0
      %214 = vmatpush1.xpose.msra.mxu0 0.0
      %215 = vmatprep.subr.mxu0 0.0
      %216 = vmatpush1.xpose.msra.mxu0 0.0
      %217 = vmatprep.subr.mxu0 0.0
      %218 = vmatpush1.xpose.msra.mxu0 0.0
      %219 = vmatprep.subr.mxu0 0.0
      %220 = vmatpush1.xpose.msra.mxu0 0.0
      %221 = vmatprep.subr.mxu0 0.0
      %222 = vmatpush1.xpose.msra.mxu0 0.0
      %223 = vmatprep.subr.mxu0 0.0
      %224 = vmatpush1.xpose.msra.mxu0 0.0
      %225 = vmatprep.subr.mxu0 0.0
      %226 = vmatpush1.xpose.msra.mxu0 0.0
      %227 = vmatprep.subr.mxu0 0.0
      %228 = vmatpush1.xpose.msra.mxu0 0.0
      %229 = vmatprep.subr.mxu0 0.0
      %230 = vmatpush1.xpose.msra.mxu0 0.0
      %231 = vmatprep.subr.mxu0 0.0
      %232 = vmatpush1.xpose.msra.mxu0 0.0
      %233 = vmatprep.subr.mxu0 0.0
      %234 = vmatpush1.xpose.msra.mxu0 0.0
      %235 = vmatprep.subr.mxu0 0.0
      %236 = vmatpush1.xpose.msra.mxu0 0.0
      %237 = vmatprep.subr.mxu0 0.0
      %238 = vmatpush1.xpose.msra.mxu0 0.0
      %239 = vmatprep.subr.mxu0 0.0
      %240 = vmatpush1.xpose.msra.mxu0 0.0
      %241 = vmatprep.mubr.f32.mxu0 0.0
      %242 = vmatmul.mubr.f32.gmra.mrb[0].mxu0 %v173
      %v243 = vpop.f32.mrb[0].mxu0
      %v244 = vadd.f32 0.0, %v243
      %v245 = vpop.f32.mrb[0].mxu0
      %246 = vdwg.mxu0
      %v247 = vmul.f32 %v244, 0.35355338
      %v248 = vadd.f32 %v247, %v168
      %v249 = vsel %vm172, %v248, -inf
      %250 = vmax.xlane.f32.xlu0 %v249
      %v251 = vpop.xlane.xlu0 %250
      %v252 = vsub.f32 %v248, %v251
      %v253 = vmul.f32 %v252, 1.442695
      %v254 = vpow.pop %v253
      %v255 = vsel %vm172, %v254, 0.0
      %256 = vadd.xlane.f32.xlu0 %v255
      %v257 = vpop.xlane.xlu0 %256
      %v258 = vrcp.pop %v257
      %v259 = vmul.f32 %v254, %v258
      %260 = vrot.lane.b32.xlu0 %v153, 64
      %v261 = vpop.permute.xlu0 %260
      %v264 = vsel %vm172, %v259, 0
      %266 = vmatprep.subr.mxu0 0.0
      %267 = vmatpush1.msra.mxu0 %v261
      %268 = vmatprep.subr.mxu0 0.0
      %269 = vmatpush1.msra.mxu0 0.0
      %270 = vmatprep.subr.mxu0 0.0
      %271 = vmatpush1.msra.mxu0 0.0
      %272 = vmatprep.subr.mxu0 0.0
      %273 = vmatpush1.msra.mxu0 0.0
      %274 = vmatprep.subr.mxu0 0.0
      %275 = vmatpush1.msra.mxu0 0.0
      %276 = vmatprep.subr.mxu0 0.0
      %277 = vmatpush1.msra.mxu0 0.0
      %278 = vmatprep.subr.mxu0 0.0
      %279 = vmatpush1.msra.mxu0 0.0
      %280 = vmatprep.subr.mxu0 0.0
      %281 = vmatpush1.msra.mxu0 0.0
      %282 = vmatprep.subr.mxu0 0.0
      %283 = vmatpush1.msra.mxu0 0.0
      %284 = vmatprep.subr.mxu0 0.0
      %285 = vmatpush1.msra.mxu0 0.0
      %286 = vmatprep.subr.mxu0 0.0
      %287 = vmatpush1.msra.mxu0 0.0
      %288 = vmatprep.subr.mxu0 0.0
      %289 = vmatpush1.msra.mxu0 0.0
      %290 = vmatprep.subr.mxu0 0.0
      %291 = vmatpush1.msra.mxu0 0.0
      %292 = vmatprep.subr.mxu0 0.0
      %293 = vmatpush1.msra.mxu0 0.0
      %294 = vmatprep.subr.mxu0 0.0
      %295 = vmatpush1.msra.mxu0 0.0
      %296 = vmatprep.subr.mxu0 0.0
      %297 = vmatpush1.msra.mxu0 0.0
      %298 = vmatprep.subr.mxu0 0.0
      %299 = vmatpush1.msra.mxu0 0.0
      %300 = vmatprep.subr.mxu0 0.0
      %301 = vmatpush1.msra.mxu0 0.0
      %302 = vmatprep.subr.mxu0 0.0
      %303 = vmatpush1.msra.mxu0 0.0
      %304 = vmatprep.subr.mxu0 0.0
      %305 = vmatpush1.msra.mxu0 0.0
      %306 = vmatprep.subr.mxu0 0.0
      %307 = vmatpush1.msra.mxu0 0.0
      %308 = vmatprep.subr.mxu0 0.0
      %309 = vmatpush1.msra.mxu0 0.0
      %310 = vmatprep.subr.mxu0 0.0
      %311 = vmatpush1.msra.mxu0 0.0
      %312 = vmatprep.subr.mxu0 0.0
      %313 = vmatpush1.msra.mxu0 0.0
      %314 = vmatprep.subr.mxu0 0.0
      %315 = vmatpush1.msra.mxu0 0.0
      %316 = vmatprep.subr.mxu0 0.0
      %317 = vmatpush1.msra.mxu0 0.0
      %318 = vmatprep.subr.mxu0 0.0
      %319 = vmatpush1.msra.mxu0 0.0
      %320 = vmatprep.subr.mxu0 0.0
      %321 = vmatpush1.msra.mxu0 0.0
      %322 = vmatprep.subr.mxu0 0.0
      %323 = vmatpush1.msra.mxu0 0.0
      %324 = vmatprep.subr.mxu0 0.0
      %325 = vmatpush1.msra.mxu0 0.0
      %326 = vmatprep.subr.mxu0 0.0
      %327 = vmatpush1.msra.mxu0 0.0
      %328 = vmatprep.subr.mxu0 0.0
      %329 = vmatpush1.msra.mxu0 0.0
      %330 = vmatprep.mubr.f32.mxu0 0.0
      %331 = vmatmul.mubr.f32.gmra.mrb[0].mxu0 %v264
      %v332 = vpop.f32.mrb[0].mxu0
      %v333 = vadd.f32 0.0, %v332
      %v334 = vpop.f32.mrb[0].mxu0
      %335 = vdwg.mxu0
      %336 = vrot.lane.b32.xlu0 %v153, 120
      %v337 = vpop.permute.xlu0 %336
      %338 = vrot.lane.b32.xlu0 %v153, 88
      %v339 = vpop.permute.xlu0 %338
      %v340 = vsel %vm172, %v337, 0
      %v342 = vsel %vm172, %v339, 0
      %344 = vmatprep.subr.mxu0 0.0
      %345 = vmatpush1.xpose.msra.mxu0 %v342
      %346 = vmatprep.subr.mxu0 0.0
      %347 = vmatpush1.xpose.msra.mxu0 0.0
      %348 = vmatprep.subr.mxu0 0.0
      %349 = vmatpush1.xpose.msra.mxu0 0.0
      %350 = vmatprep.subr.mxu0 0.0
      %351 = vmatpush1.xpose.msra.mxu0 0.0
      %352 = vmatprep.subr.mxu0 0.0
      %353 = vmatpush1.xpose.msra.mxu0 0.0
      %354 = vmatprep.subr.mxu0 0.0
      %355 = vmatpush1.xpose.msra.mxu0 0.0
      %356 = vmatprep.subr.mxu0 0.0
      %357 = vmatpush1.xpose.msra.mxu0 0.0
      %358 = vmatprep.subr.mxu0 0.0
      %359 = vmatpush1.xpose.msra.mxu0 0.0
      %360 = vmatprep.subr.mxu0 0.0
      %361 = vmatpush1.xpose.msra.mxu0 0.0
      %362 = vmatprep.subr.mxu0 0.0
      %363 = vmatpush1.xpose.msra.mxu0 0.0
      %364 = vmatprep.subr.mxu0 0.0
      %365 = vmatpush1.xpose.msra.mxu0 0.0
      %366 = vmatprep.subr.mxu0 0.0
      %367 = vmatpush1.xpose.msra.mxu0 0.0
      %368 = vmatprep.subr.mxu0 0.0
      %369 = vmatpush1.xpose.msra.mxu0 0.0
      %370 = vmatprep.subr.mxu0 0.0
      %371 = vmatpush1.xpose.msra.mxu0 0.0
      %372 = vmatprep.subr.mxu0 0.0
      %373 = vmatpush1.xpose.msra.mxu0 0.0
      %374 = vmatprep.subr.mxu0 0.0
      %375 = vmatpush1.xpose.msra.mxu0 0.0
      %376 = vmatprep.subr.mxu0 0.0
      %377 = vmatpush1.xpose.msra.mxu0 0.0
      %378 = vmatprep.subr.mxu0 0.0
      %379 = vmatpush1.xpose.msra.mxu0 0.0
      %380 = vmatprep.subr.mxu0 0.0
      %381 = vmatpush1.xpose.msra.mxu0 0.0
      %382 = vmatprep.subr.mxu0 0.0
      %383 = vmatpush1.xpose.msra.mxu0 0.0
      %384 = vmatprep.subr.mxu0 0.0
      %385 = vmatpush1.xpose.msra.mxu0 0.0
      %386 = vmatprep.subr.mxu0 0.0
      %387 = vmatpush1.xpose.msra.mxu0 0.0
      %388 = vmatprep.subr.mxu0 0.0
      %389 = vmatpush1.xpose.msra.mxu0 0.0
      %390 = vmatprep.subr.mxu0 0.0
      %391 = vmatpush1.xpose.msra.mxu0 0.0
      %392 = vmatprep.subr.mxu0 0.0
      %393 = vmatpush1.xpose.msra.mxu0 0.0
      %394 = vmatprep.subr.mxu0 0.0
      %395 = vmatpush1.xpose.msra.mxu0 0.0
      %396 = vmatprep.subr.mxu0 0.0
      %397 = vmatpush1.xpose.msra.mxu0 0.0
      %398 = vmatprep.subr.mxu0 0.0
      %399 = vmatpush1.xpose.msra.mxu0 0.0
      %400 = vmatprep.subr.mxu0 0.0
      %401 = vmatpush1.xpose.msra.mxu0 0.0
      %402 = vmatprep.subr.mxu0 0.0
      %403 = vmatpush1.xpose.msra.mxu0 0.0
      %404 = vmatprep.subr.mxu0 0.0
      %405 = vmatpush1.xpose.msra.mxu0 0.0
      %406 = vmatprep.subr.mxu0 0.0
      %407 = vmatpush1.xpose.msra.mxu0 0.0
      %408 = vmatprep.mubr.f32.mxu0 0.0
      %409 = vmatmul.mubr.f32.gmra.mrb[0].mxu0 %v340
      %v410 = vpop.f32.mrb[0].mxu0
      %v411 = vadd.f32 0.0, %v410
      %v412 = vpop.f32.mrb[0].mxu0
      %413 = vdwg.mxu0
      %v414 = vmul.f32 %v411, 0.35355338
      %v415 = vadd.f32 %v414, %v168
      %v416 = vsel %vm172, %v415, -inf
      %417 = vmax.xlane.f32.xlu0 %v416
      %v418 = vpop.xlane.xlu0 %417
      %v419 = vsub.f32 %v415, %v418
      %v420 = vmul.f32 %v419, 1.442695
      %v421 = vpow.pop %v420
      %v422 = vsel %vm172, %v421, 0.0
      %423 = vadd.xlane.f32.xlu0 %v422
      %v424 = vpop.xlane.xlu0 %423
      %v425 = vrcp.pop %v424
      %v426 = vmul.f32 %v421, %v425
      %427 = vrot.lane.b32.xlu0 %v153, 56
      %v428 = vpop.permute.xlu0 %427
      %v431 = vsel %vm172, %v426, 0
      %433 = vmatprep.subr.mxu0 0.0
      %434 = vmatpush1.msra.mxu0 %v428
      %435 = vmatprep.subr.mxu0 0.0
      %436 = vmatpush1.msra.mxu0 0.0
      %437 = vmatprep.subr.mxu0 0.0
      %438 = vmatpush1.msra.mxu0 0.0
      %439 = vmatprep.subr.mxu0 0.0
      %440 = vmatpush1.msra.mxu0 0.0
      %441 = vmatprep.subr.mxu0 0.0
      %442 = vmatpush1.msra.mxu0 0.0
      %443 = vmatprep.subr.mxu0 0.0
      %444 = vmatpush1.msra.mxu0 0.0
      %445 = vmatprep.subr.mxu0 0.0
      %446 = vmatpush1.msra.mxu0 0.0
      %447 = vmatprep.subr.mxu0 0.0
      %448 = vmatpush1.msra.mxu0 0.0
      %449 = vmatprep.subr.mxu0 0.0
      %450 = vmatpush1.msra.mxu0 0.0
      %451 = vmatprep.subr.mxu0 0.0
      %452 = vmatpush1.msra.mxu0 0.0
      %453 = vmatprep.subr.mxu0 0.0
      %454 = vmatpush1.msra.mxu0 0.0
      %455 = vmatprep.subr.mxu0 0.0
      %456 = vmatpush1.msra.mxu0 0.0
      %457 = vmatprep.subr.mxu0 0.0
      %458 = vmatpush1.msra.mxu0 0.0
      %459 = vmatprep.subr.mxu0 0.0
      %460 = vmatpush1.msra.mxu0 0.0
      %461 = vmatprep.subr.mxu0 0.0
      %462 = vmatpush1.msra.mxu0 0.0
      %463 = vmatprep.subr.mxu0 0.0
      %464 = vmatpush1.msra.mxu0 0.0
      %465 = vmatprep.subr.mxu0 0.0
      %466 = vmatpush1.msra.mxu0 0.0
      %467 = vmatprep.subr.mxu0 0.0
      %468 = vmatpush1.msra.mxu0 0.0
      %469 = vmatprep.subr.mxu0 0.0
      %470 = vmatpush1.msra.mxu0 0.0
      %471 = vmatprep.subr.mxu0 0.0
      %472 = vmatpush1.msra.mxu0 0.0
      %473 = vmatprep.subr.mxu0 0.0
      %474 = vmatpush1.msra.mxu0 0.0
      %475 = vmatprep.subr.mxu0 0.0
      %476 = vmatpush1.msra.mxu0 0.0
      %477 = vmatprep.subr.mxu0 0.0
      %478 = vmatpush1.msra.mxu0 0.0
      %479 = vmatprep.subr.mxu0 0.0
      %480 = vmatpush1.msra.mxu0 0.0
      %481 = vmatprep.subr.mxu0 0.0
      %482 = vmatpush1.msra.mxu0 0.0
      %483 = vmatprep.subr.mxu0 0.0
      %484 = vmatpush1.msra.mxu0 0.0
      %485 = vmatprep.subr.mxu0 0.0
      %486 = vmatpush1.msra.mxu0 0.0
      %487 = vmatprep.subr.mxu0 0.0
      %488 = vmatpush1.msra.mxu0 0.0
      %489 = vmatprep.subr.mxu0 0.0
      %490 = vmatpush1.msra.mxu0 0.0
      %491 = vmatprep.subr.mxu0 0.0
      %492 = vmatpush1.msra.mxu0 0.0
      %493 = vmatprep.subr.mxu0 0.0
      %494 = vmatpush1.msra.mxu0 0.0
      %495 = vmatprep.subr.mxu0 0.0
      %496 = vmatpush1.msra.mxu0 0.0
      %497 = vmatprep.mubr.f32.mxu0 0.0
      %498 = vmatmul.mubr.f32.gmra.mrb[0].mxu0 %v431
      %v499 = vpop.f32.mrb[0].mxu0
      %v500 = vadd.f32 0.0, %v499
      %v501 = vpop.f32.mrb[0].mxu0
      %502 = vdwg.mxu0
      %503 = vrot.lane.b32.xlu0 %v153, 112
      %v504 = vpop.permute.xlu0 %503
      %505 = vrot.lane.b32.xlu0 %v153, 80
      %v506 = vpop.permute.xlu0 %505
      %v507 = vsel %vm172, %v504, 0
      %v509 = vsel %vm172, %v506, 0
      %511 = vmatprep.subr.mxu0 0.0
      %512 = vmatpush1.xpose.msra.mxu0 %v509
      %513 = vmatprep.subr.mxu0 0.0
      %514 = vmatpush1.xpose.msra.mxu0 0.0
      %515 = vmatprep.subr.mxu0 0.0
      %516 = vmatpush1.xpose.msra.mxu0 0.0
      %517 = vmatprep.subr.mxu0 0.0
      %518 = vmatpush1.xpose.msra.mxu0 0.0
      %519 = vmatprep.subr.mxu0 0.0
      %520 = vmatpush1.xpose.msra.mxu0 0.0
      %521 = vmatprep.subr.mxu0 0.0
      %522 = vmatpush1.xpose.msra.mxu0 0.0
      %523 = vmatprep.subr.mxu0 0.0
      %524 = vmatpush1.xpose.msra.mxu0 0.0
      %525 = vmatprep.subr.mxu0 0.0
      %526 = vmatpush1.xpose.msra.mxu0 0.0
      %527 = vmatprep.subr.mxu0 0.0
      %528 = vmatpush1.xpose.msra.mxu0 0.0
      %529 = vmatprep.subr.mxu0 0.0
      %530 = vmatpush1.xpose.msra.mxu0 0.0
      %531 = vmatprep.subr.mxu0 0.0
      %532 = vmatpush1.xpose.msra.mxu0 0.0
      %533 = vmatprep.subr.mxu0 0.0
      %534 = vmatpush1.xpose.msra.mxu0 0.0
      %535 = vmatprep.subr.mxu0 0.0
      %536 = vmatpush1.xpose.msra.mxu0 0.0
      %537 = vmatprep.subr.mxu0 0.0
      %538 = vmatpush1.xpose.msra.mxu0 0.0
      %539 = vmatprep.subr.mxu0 0.0
      %540 = vmatpush1.xpose.msra.mxu0 0.0
      %541 = vmatprep.subr.mxu0 0.0
      %542 = vmatpush1.xpose.msra.mxu0 0.0
      %543 = vmatprep.subr.mxu0 0.0
      %544 = vmatpush1.xpose.msra.mxu0 0.0
      %545 = vmatprep.subr.mxu0 0.0
      %546 = vmatpush1.xpose.msra.mxu0 0.0
      %547 = vmatprep.subr.mxu0 0.0
      %548 = vmatpush1.xpose.msra.mxu0 0.0
      %549 = vmatprep.subr.mxu0 0.0
      %550 = vmatpush1.xpose.msra.mxu0 0.0
      %551 = vmatprep.subr.mxu0 0.0
      %552 = vmatpush1.xpose.msra.mxu0 0.0
      %553 = vmatprep.subr.mxu0 0.0
      %554 = vmatpush1.xpose.msra.mxu0 0.0
      %555 = vmatprep.subr.mxu0 0.0
      %556 = vmatpush1.xpose.msra.mxu0 0.0
      %557 = vmatprep.subr.mxu0 0.0
      %558 = vmatpush1.xpose.msra.mxu0 0.0
      %559 = vmatprep.subr.mxu0 0.0
      %560 = vmatpush1.xpose.msra.mxu0 0.0
      %561 = vmatprep.subr.mxu0 0.0
      %562 = vmatpush1.xpose.msra.mxu0 0.0
      %563 = vmatprep.subr.mxu0 0.0
      %564 = vmatpush1.xpose.msra.mxu0 0.0
      %565 = vmatprep.subr.mxu0 0.0
      %566 = vmatpush1.xpose.msra.mxu0 0.0
      %567 = vmatprep.subr.mxu0 0.0
      %568 = vmatpush1.xpose.msra.mxu0 0.0
      %569 = vmatprep.subr.mxu0 0.0
      %570 = vmatpush1.xpose.msra.mxu0 0.0
      %571 = vmatprep.subr.mxu0 0.0
      %572 = vmatpush1.xpose.msra.mxu0 0.0
      %573 = vmatprep.subr.mxu0 0.0
      %574 = vmatpush1.xpose.msra.mxu0 0.0
      %575 = vmatprep.mubr.f32.mxu0 0.0
      %576 = vmatmul.mubr.f32.gmra.mrb[0].mxu0 %v507
      %v577 = vpop.f32.mrb[0].mxu0
      %v578 = vadd.f32 0.0, %v577
      %v579 = vpop.f32.mrb[0].mxu0
      %580 = vdwg.mxu0
      %v581 = vmul.f32 %v578, 0.35355338
      %v582 = vadd.f32 %v581, %v168
      %v583 = vsel %vm172, %v582, -inf
      %584 = vmax.xlane.f32.xlu0 %v583
      %v585 = vpop.xlane.xlu0 %584
      %v586 = vsub.f32 %v582, %v585
      %v587 = vmul.f32 %v586, 1.442695
      %v588 = vpow.pop %v587
      %v589 = vsel %vm172, %v588, 0.0
      %590 = vadd.xlane.f32.xlu0 %v589
      %v591 = vpop.xlane.xlu0 %590
      %v592 = vrcp.pop %v591
      %v593 = vmul.f32 %v588, %v592
      %594 = vrot.lane.b32.xlu0 %v153, 48
      %v595 = vpop.permute.xlu0 %594
      %v598 = vsel %vm172, %v593, 0
      %600 = vmatprep.subr.mxu0 0.0
      %601 = vmatpush1.msra.mxu0 %v595
      %602 = vmatprep.subr.mxu0 0.0
      %603 = vmatpush1.msra.mxu0 0.0
      %604 = vmatprep.subr.mxu0 0.0
      %605 = vmatpush1.msra.mxu0 0.0
      %606 = vmatprep.subr.mxu0 0.0
      %607 = vmatpush1.msra.mxu0 0.0
      %608 = vmatprep.subr.mxu0 0.0
      %609 = vmatpush1.msra.mxu0 0.0
      %610 = vmatprep.subr.mxu0 0.0
      %611 = vmatpush1.msra.mxu0 0.0
      %612 = vmatprep.subr.mxu0 0.0
      %613 = vmatpush1.msra.mxu0 0.0
      %614 = vmatprep.subr.mxu0 0.0
      %615 = vmatpush1.msra.mxu0 0.0
      %616 = vmatprep.subr.mxu0 0.0
      %617 = vmatpush1.msra.mxu0 0.0
      %618 = vmatprep.subr.mxu0 0.0
      %619 = vmatpush1.msra.mxu0 0.0
      %620 = vmatprep.subr.mxu0 0.0
      %621 = vmatpush1.msra.mxu0 0.0
      %622 = vmatprep.subr.mxu0 0.0
      %623 = vmatpush1.msra.mxu0 0.0
      %624 = vmatprep.subr.mxu0 0.0
      %625 = vmatpush1.msra.mxu0 0.0
      %626 = vmatprep.subr.mxu0 0.0
      %627 = vmatpush1.msra.mxu0 0.0
      %628 = vmatprep.subr.mxu0 0.0
      %629 = vmatpush1.msra.mxu0 0.0
      %630 = vmatprep.subr.mxu0 0.0
      %631 = vmatpush1.msra.mxu0 0.0
      %632 = vmatprep.subr.mxu0 0.0
      %633 = vmatpush1.msra.mxu0 0.0
      %634 = vmatprep.subr.mxu0 0.0
      %635 = vmatpush1.msra.mxu0 0.0
      %636 = vmatprep.subr.mxu0 0.0
      %637 = vmatpush1.msra.mxu0 0.0
      %638 = vmatprep.subr.mxu0 0.0
      %639 = vmatpush1.msra.mxu0 0.0
      %640 = vmatprep.subr.mxu0 0.0
      %641 = vmatpush1.msra.mxu0 0.0
      %642 = vmatprep.subr.mxu0 0.0
      %643 = vmatpush1.msra.mxu0 0.0
      %644 = vmatprep.subr.mxu0 0.0
      %645 = vmatpush1.msra.mxu0 0.0
      %646 = vmatprep.subr.mxu0 0.0
      %647 = vmatpush1.msra.mxu0 0.0
      %648 = vmatprep.subr.mxu0 0.0
      %649 = vmatpush1.msra.mxu0 0.0
      %650 = vmatprep.subr.mxu0 0.0
      %651 = vmatpush1.msra.mxu0 0.0
      %652 = vmatprep.subr.mxu0 0.0
      %653 = vmatpush1.msra.mxu0 0.0
      %654 = vmatprep.subr.mxu0 0.0
      %655 = vmatpush1.msra.mxu0 0.0
      %656 = vmatprep.subr.mxu0 0.0
      %657 = vmatpush1.msra.mxu0 0.0
      %658 = vmatprep.subr.mxu0 0.0
      %659 = vmatpush1.msra.mxu0 0.0
      %660 = vmatprep.subr.mxu0 0.0
      %661 = vmatpush1.msra.mxu0 0.0
      %662 = vmatprep.subr.mxu0 0.0
      %663 = vmatpush1.msra.mxu0 0.0
      %664 = vmatprep.mubr.f32.mxu0 0.0
      %665 = vmatmul.mubr.f32.gmra.mrb[0].mxu0 %v598
      %v666 = vpop.f32.mrb[0].mxu0
      %v667 = vadd.f32 0.0, %v666
      %v668 = vpop.f32.mrb[0].mxu0
      %669 = vdwg.mxu0
      %670 = vrot.lane.b32.xlu0 %v153, 104
      %v671 = vpop.permute.xlu0 %670
      %672 = vrot.lane.b32.xlu0 %v153, 72
      %v673 = vpop.permute.xlu0 %672
      %v674 = vsel %vm172, %v671, 0
      %v676 = vsel %vm172, %v673, 0
      %678 = vmatprep.subr.mxu0 0.0
      %679 = vmatpush1.xpose.msra.mxu0 %v676
      %680 = vmatprep.subr.mxu0 0.0
      %681 = vmatpush1.xpose.msra.mxu0 0.0
      %682 = vmatprep.subr.mxu0 0.0
      %683 = vmatpush1.xpose.msra.mxu0 0.0
      %684 = vmatprep.subr.mxu0 0.0
      %685 = vmatpush1.xpose.msra.mxu0 0.0
      %686 = vmatprep.subr.mxu0 0.0
      %687 = vmatpush1.xpose.msra.mxu0 0.0
      %688 = vmatprep.subr.mxu0 0.0
      %689 = vmatpush1.xpose.msra.mxu0 0.0
      %690 = vmatprep.subr.mxu0 0.0
      %691 = vmatpush1.xpose.msra.mxu0 0.0
      %692 = vmatprep.subr.mxu0 0.0
      %693 = vmatpush1.xpose.msra.mxu0 0.0
      %694 = vmatprep.subr.mxu0 0.0
      %695 = vmatpush1.xpose.msra.mxu0 0.0
      %696 = vmatprep.subr.mxu0 0.0
      %697 = vmatpush1.xpose.msra.mxu0 0.0
      %698 = vmatprep.subr.mxu0 0.0
      %699 = vmatpush1.xpose.msra.mxu0 0.0
      %700 = vmatprep.subr.mxu0 0.0
      %701 = vmatpush1.xpose.msra.mxu0 0.0
      %702 = vmatprep.subr.mxu0 0.0
      %703 = vmatpush1.xpose.msra.mxu0 0.0
      %704 = vmatprep.subr.mxu0 0.0
      %705 = vmatpush1.xpose.msra.mxu0 0.0
      %706 = vmatprep.subr.mxu0 0.0
      %707 = vmatpush1.xpose.msra.mxu0 0.0
      %708 = vmatprep.subr.mxu0 0.0
      %709 = vmatpush1.xpose.msra.mxu0 0.0
      %710 = vmatprep.subr.mxu0 0.0
      %711 = vmatpush1.xpose.msra.mxu0 0.0
      %712 = vmatprep.subr.mxu0 0.0
      %713 = vmatpush1.xpose.msra.mxu0 0.0
      %714 = vmatprep.subr.mxu0 0.0
      %715 = vmatpush1.xpose.msra.mxu0 0.0
      %716 = vmatprep.subr.mxu0 0.0
      %717 = vmatpush1.xpose.msra.mxu0 0.0
      %718 = vmatprep.subr.mxu0 0.0
      %719 = vmatpush1.xpose.msra.mxu0 0.0
      %720 = vmatprep.subr.mxu0 0.0
      %721 = vmatpush1.xpose.msra.mxu0 0.0
      %722 = vmatprep.subr.mxu0 0.0
      %723 = vmatpush1.xpose.msra.mxu0 0.0
      %724 = vmatprep.subr.mxu0 0.0
      %725 = vmatpush1.xpose.msra.mxu0 0.0
      %726 = vmatprep.subr.mxu0 0.0
      %727 = vmatpush1.xpose.msra.mxu0 0.0
      %728 = vmatprep.subr.mxu0 0.0
      %729 = vmatpush1.xpose.msra.mxu0 0.0
      %730 = vmatprep.subr.mxu0 0.0
      %731 = vmatpush1.xpose.msra.mxu0 0.0
      %732 = vmatprep.subr.mxu0 0.0
      %733 = vmatpush1.xpose.msra.mxu0 0.0
      %734 = vmatprep.subr.mxu0 0.0
      %735 = vmatpush1.xpose.msra.mxu0 0.0
      %736 = vmatprep.subr.mxu0 0.0
      %737 = vmatpush1.xpose.msra.mxu0 0.0
      %738 = vmatprep.subr.mxu0 0.0
      %739 = vmatpush1.xpose.msra.mxu0 0.0
      %740 = vmatprep.subr.mxu0 0.0
      %741 = vmatpush1.xpose.msra.mxu0 0.0
      %742 = vmatprep.mubr.f32.mxu0 0.0
      %743 = vmatmul.mubr.f32.gmra.mrb[0].mxu0 %v674
      %v744 = vpop.f32.mrb[0].mxu0
      %v745 = vadd.f32 0.0, %v744
      %v746 = vpop.f32.mrb[0].mxu0
      %747 = vdwg.mxu0
      %v748 = vmul.f32 %v745, 0.35355338
      %v749 = vadd.f32 %v748, %v168
      %v750 = vsel %vm172, %v749, -inf
      %751 = vmax.xlane.f32.xlu0 %v750
      %v752 = vpop.xlane.xlu0 %751
      %v753 = vsub.f32 %v749, %v752
      %v754 = vmul.f32 %v753, 1.442695
      %v755 = vpow.pop %v754
      %v756 = vsel %vm172, %v755, 0.0
      %757 = vadd.xlane.f32.xlu0 %v756
      %v758 = vpop.xlane.xlu0 %757
      %v759 = vrcp.pop %v758
      %v760 = vmul.f32 %v755, %v759
      %761 = vrot.lane.b32.xlu0 %v153, 40
      %v762 = vpop.permute.xlu0 %761
      %v765 = vsel %vm172, %v760, 0
      %767 = vmatprep.subr.mxu0 0.0
      %768 = vmatpush1.msra.mxu0 %v762
      %769 = vmatprep.subr.mxu0 0.0
      %770 = vmatpush1.msra.mxu0 0.0
      %771 = vmatprep.subr.mxu0 0.0
      %772 = vmatpush1.msra.mxu0 0.0
      %773 = vmatprep.subr.mxu0 0.0
      %774 = vmatpush1.msra.mxu0 0.0
      %775 = vmatprep.subr.mxu0 0.0
      %776 = vmatpush1.msra.mxu0 0.0
      %777 = vmatprep.subr.mxu0 0.0
      %778 = vmatpush1.msra.mxu0 0.0
      %779 = vmatprep.subr.mxu0 0.0
      %780 = vmatpush1.msra.mxu0 0.0
      %781 = vmatprep.subr.mxu0 0.0
      %782 = vmatpush1.msra.mxu0 0.0
      %783 = vmatprep.subr.mxu0 0.0
      %784 = vmatpush1.msra.mxu0 0.0
      %785 = vmatprep.subr.mxu0 0.0
      %786 = vmatpush1.msra.mxu0 0.0
      %787 = vmatprep.subr.mxu0 0.0
      %788 = vmatpush1.msra.mxu0 0.0
      %789 = vmatprep.subr.mxu0 0.0
      %790 = vmatpush1.msra.mxu0 0.0
      %791 = vmatprep.subr.mxu0 0.0
      %792 = vmatpush1.msra.mxu0 0.0
      %793 = vmatprep.subr.mxu0 0.0
      %794 = vmatpush1.msra.mxu0 0.0
      %795 = vmatprep.subr.mxu0 0.0
      %796 = vmatpush1.msra.mxu0 0.0
      %797 = vmatprep.subr.mxu0 0.0
      %798 = vmatpush1.msra.mxu0 0.0
      %799 = vmatprep.subr.mxu0 0.0
      %800 = vmatpush1.msra.mxu0 0.0
      %801 = vmatprep.subr.mxu0 0.0
      %802 = vmatpush1.msra.mxu0 0.0
      %803 = vmatprep.subr.mxu0 0.0
      %804 = vmatpush1.msra.mxu0 0.0
      %805 = vmatprep.subr.mxu0 0.0
      %806 = vmatpush1.msra.mxu0 0.0
      %807 = vmatprep.subr.mxu0 0.0
      %808 = vmatpush1.msra.mxu0 0.0
      %809 = vmatprep.subr.mxu0 0.0
      %810 = vmatpush1.msra.mxu0 0.0
      %811 = vmatprep.subr.mxu0 0.0
      %812 = vmatpush1.msra.mxu0 0.0
      %813 = vmatprep.subr.mxu0 0.0
      %814 = vmatpush1.msra.mxu0 0.0
      %815 = vmatprep.subr.mxu0 0.0
      %816 = vmatpush1.msra.mxu0 0.0
      %817 = vmatprep.subr.mxu0 0.0
      %818 = vmatpush1.msra.mxu0 0.0
      %819 = vmatprep.subr.mxu0 0.0
      %820 = vmatpush1.msra.mxu0 0.0
      %821 = vmatprep.subr.mxu0 0.0
      %822 = vmatpush1.msra.mxu0 0.0
      %823 = vmatprep.subr.mxu0 0.0
      %824 = vmatpush1.msra.mxu0 0.0
      %825 = vmatprep.subr.mxu0 0.0
      %826 = vmatpush1.msra.mxu0 0.0
      %827 = vmatprep.subr.mxu0 0.0
      %828 = vmatpush1.msra.mxu0 0.0
      %829 = vmatprep.subr.mxu0 0.0
      %830 = vmatpush1.msra.mxu0 0.0
      %831 = vmatprep.mubr.f32.mxu0 0.0
      %832 = vmatmul.mubr.f32.gmra.mrb[0].mxu0 %v765
      %v833 = vpop.f32.mrb[0].mxu0
      %v834 = vadd.f32 0.0, %v833
      %v835 = vpop.f32.mrb[0].mxu0
      %836 = vdwg.mxu0
      %838 = vrot.lane.b32.xlu0 %v500, 8
      %v839 = vpop.permute.xlu0 %838
      %842 = vrot.lane.b32.xlu0 %v667, 16
      %v843 = vpop.permute.xlu0 %842
      %846 = vrot.lane.b32.xlu0 %v834, 24
      %v847 = vpop.permute.xlu0 %846
      %v849 = vsel %vm172, %v333, %v839
      %vm850 = vcmask 130048
      %v851 = vsel %vm850, %v849, %v843
      %vm852 = vcmask 195584
      %v853 = vsel %vm852, %v851, %v847
      %vm854 = vcmask 261120
      %855 = vst.msk [vmem:[%s152] sm:$0xff] %vm854, %v853
      %p856 = scmp.lt.s32.totalorder %s13, 1
      %s857 = scalar_select %p856, %s13, 1
      %s858 = smul.addr %s857, 8
      %s859 = scalar_lea.vmem %s2, %s858
      // Predicated region
      $region29: #{posemb_transformer_decoder.19} parent=27 // pred_check
        %p860 = pneg %p83
      $region30: #{posemb_transformer_decoder.19} parent=27 // pred_check_branch
        %862 = sbr.rel (%p860) target = $region32
      $region31: #{posemb_transformer_decoder.19} parent=27 // pred_region
        _
      $region32: #{posemb_transformer_decoder.19} parent=27 // pred_fallthru
        _
    $region28: #{posemb_transformer_decoder.19} parent=5 // pred_fallthru
      _
    %p863 = scmp.le.s32.totalorder 2, %s8
    // Predicated region
    $region33: #{posemb_transformer_decoder.19} parent=5 // pred_check
      %p864 = pneg %p863
    $region34: #{posemb_transformer_decoder.19} parent=5 // pred_check_branch
      %866 = sbr.rel (%p864) target = $region36
    $region35: #{posemb_transformer_decoder.19} parent=5 // pred_region
      %s867 = ssub.s32 %s8, 2
      // Predicated region
      $region37: #{posemb_transformer_decoder.19} parent=35 // pred_check
        %p868 = pneg %p89
      $region38: #{posemb_transformer_decoder.19} parent=35 // pred_check_branch
        %870 = sbr.rel (%p868) target = $region40
      $region39: #{posemb_transformer_decoder.19} parent=35 // pred_region
        %p871 = scmp.lt.s32.totalorder %s14, 1
        %s872 = scalar_select %p871, %s14, 1
        %s873 = smul.addr %s872, 8
        %s874 = scalar_lea.vmem %s2, %s873
      $region40: #{posemb_transformer_decoder.19} parent=35 // pred_fallthru
        _
    $region36: #{posemb_transformer_decoder.19} parent=5 // pred_fallthru
      _
  $region6: #{posemb_transformer_decoder.19} parent=0 // loop_footer
    %s12 = sadd.s32 1, %s8
  $region7: #{posemb_transformer_decoder.19} parent=0 // loop_footer_branch
    %7 = sbr.rel target = $region3
  $region8: #{posemb_transformer_decoder.19} parent=0 // loop_exit
    _

// kernel: posemb_transformer_decoder.22
$region0: #{posemb_transformer_decoder.22}
  #allocation0 [shape = 'u32[]', space=smem, size = 0x4, offset = 0x4, fixed_abs, tag = 'smem constant byte address 0x4 - core index']
  #allocation1 [shape = 'u32[144,128]{1,0:T(1,128)}', space=vmem, size = 0x12000, scoped, tag = 'internal scratch']
  %s0 = inlined_call_operand.vmem [shape: f32[16,32], index: 0, kind: input, shape index: {}]
  %s1 = inlined_call_operand.vmem [shape: f32[32,64], index: 1, kind: input, shape index: {}]
  %s2 = inlined_call_operand.vmem [shape: f32[1,64], index: 2, kind: input, shape index: {}]
  %s3 = inlined_call_operand.vmem [shape: f32[16,64], index: 3, kind: output, shape index: {}]
  %s4 = sld [smem:[#allocation0]]
  $region22: #{posemb_transformer_decoder.22} parent=0
    _
  %s6 = ssub.s32 1, %s4
  %s7 = scalar_select 0, %s6, %s4
  // Predicated region
  $region2: #{posemb_transformer_decoder.22} parent=0 // pred_check
    _
  $region3: #{posemb_transformer_decoder.22} parent=0 // pred_check_branch
    %9 = sbr.rel (0) target = $region5
  $region4: #{posemb_transformer_decoder.22} parent=0 // pred_region
    _
  $region5: #{posemb_transformer_decoder.22} parent=0 // pred_fallthru
    _
  // Predicated region
  $region6: #{posemb_transformer_decoder.22} parent=0 // pred_check
    _
  $region7: #{posemb_transformer_decoder.22} parent=0 // pred_check_branch
    %11 = sbr.rel (0) target = $region9
  $region8: #{posemb_transformer_decoder.22} parent=0 // pred_region
    _
  $region9: #{posemb_transformer_decoder.22} parent=0 // pred_fallthru
    _
  // Predicated region
  $region10: #{posemb_transformer_decoder.22} parent=0 // pred_check
    _
  $region11: #{posemb_transformer_decoder.22} parent=0 // pred_check_branch
    %13 = sbr.rel (0) target = $region13
  $region12: #{posemb_transformer_decoder.22} parent=0 // pred_region
    _
  $region13: #{posemb_transformer_decoder.22} parent=0 // pred_fallthru
    _
  %v14 = vld [vmem:[%s0] sm:$0xff]
  %v15 = vld [vmem:[%s0 + $0x8] sm:$0xff]
  %v16 = vld [vmem:[%s1] sm:$0xff]
  %v17 = vld [vmem:[%s1 + $0x8] sm:$0xff]
  %v18 = vld [vmem:[%s1 + $0x10] sm:$0xff]
  %v19 = vld [vmem:[%s1 + $0x18] sm:$0xff]
  %v20 = vld [vmem:[%s2] sm:$0x1]
  %v22 = vlaneseq
  %v23 = vshrl.u32 %v22, 7
  %v24 = vsub.s32 0, %v23
  %v25 = vrot.slane %v20, %v24
  %vm27 = vcmask 261120
  %v29 = vsel %vm27, %v14, 0
  %v32 = vsel %vm27, %v15, 0
  %34 = vmatprep.subr.mxu0 0.0
  %35 = vmatpush1.msra.mxu0 %v16
  %36 = vmatprep.subr.mxu0 0.0
  %37 = vmatpush1.msra.mxu0 %v17
  %38 = vmatprep.subr.mxu0 0.0
  %39 = vmatpush1.msra.mxu0 %v18
  %40 = vmatprep.subr.mxu0 0.0
  %41 = vmatpush1.msra.mxu0 %v19
  %42 = vmatprep.subr.mxu0 0.0
  %43 = vmatpush1.msra.mxu0 0.0
  %44 = vmatprep.subr.mxu0 0.0
  %45 = vmatpush1.msra.mxu0 0.0
  %46 = vmatprep.subr.mxu0 0.0
  %47 = vmatpush1.msra.mxu0 0.0
  %48 = vmatprep.subr.mxu0 0.0
  %49 = vmatpush1.msra.mxu0 0.0
  %50 = vmatprep.subr.mxu0 0.0
  %51 = vmatpush1.msra.mxu0 0.0
  %52 = vmatprep.subr.mxu0 0.0
  %53 = vmatpush1.msra.mxu0 0.0
  %54 = vmatprep.subr.mxu0 0.0
  %55 = vmatpush1.msra.mxu0 0.0
  %56 = vmatprep.subr.mxu0 0.0
  %57 = vmatpush1.msra.mxu0 0.0
  %58 = vmatprep.subr.mxu0 0.0
  %59 = vmatpush1.msra.mxu0 0.0
  %60 = vmatprep.subr.mxu0 0.0
  %61 = vmatpush1.msra.mxu0 0.0
  %62 = vmatprep.subr.mxu0 0.0
  %63 = vmatpush1.msra.mxu0 0.0
  %64 = vmatprep.subr.mxu0 0.0
  %65 = vmatpush1.msra.mxu0 0.0
  %66 = vmatprep.subr.mxu0 0.0
  %67 = vmatpush1.msra.mxu0 0.0
  %68 = vmatprep.subr.mxu0 0.0
  %69 = vmatpush1.msra.mxu0 0.0
  %70 = vmatprep.subr.mxu0 0.0
  %71 = vmatpush1.msra.mxu0 0.0
  %72 = vmatprep.subr.mxu0 0.0
  %73 = vmatpush1.msra.mxu0 0.0
  %74 = vmatprep.subr.mxu0 0.0
  %75 = vmatpush1.msra.mxu0 0.0
  %76 = vmatprep.subr.mxu0 0.0
  %77 = vmatpush1.msra.mxu0 0.0
  %78 = vmatprep.subr.mxu0 0.0
  %79 = vmatpush1.msra.mxu0 0.0
  %80 = vmatprep.subr.mxu0 0.0
  %81 = vmatpush1.msra.mxu0 0.0
  %82 = vmatprep.subr.mxu0 0.0
  %83 = vmatpush1.msra.mxu0 0.0
  %84 = vmatprep.subr.mxu0 0.0
  %85 = vmatpush1.msra.mxu0 0.0
  %86 = vmatprep.subr.mxu0 0.0
  %87 = vmatpush1.msra.mxu0 0.0
  %88 = vmatprep.subr.mxu0 0.0
  %89 = vmatpush1.msra.mxu0 0.0
  %90 = vmatprep.subr.mxu0 0.0
  %91 = vmatpush1.msra.mxu0 0.0
  %92 = vmatprep.subr.mxu0 0.0
  %93 = vmatpush1.msra.mxu0 0.0
  %94 = vmatprep.subr.mxu0 0.0
  %95 = vmatpush1.msra.mxu0 0.0
  %96 = vmatprep.subr.mxu0 0.0
  %97 = vmatpush1.msra.mxu0 0.0
  %98 = vmatprep.mubr.f32.mxu0 0.0
  %99 = vmatmul.mubr.f32.gmra.mrb[0].mxu0 %v29
  %v100 = vpop.f32.mrb[0].mxu0
  %v101 = vadd.f32 %v25, %v100
  %v102 = vpop.f32.mrb[0].mxu0
  %103 = vmatprep.mubr.f32.mxu0 0.0
  %104 = vmatmul.mubr.f32.gmra.mrb[0].mxu0 %v32
  %v105 = vpop.f32.mrb[0].mxu0
  %v106 = vadd.f32 %v25, %v105
  %v107 = vpop.f32.mrb[0].mxu0
  %108 = vdwg.mxu0
  %vm109 = vcmask 523264
  %110 = vst.msk [vmem:[%s3] sm:$0xff] %vm109, %v101
  %111 = vst.msk [vmem:[%s3 + $0x8] sm:$0xff] %vm109, %v106
  // Predicated region
  $region14: #{posemb_transformer_decoder.22} parent=0 // pred_check
    _
  $region15: #{posemb_transformer_decoder.22} parent=0 // pred_check_branch
    %113 = sbr.rel (0) target = $region17
  $region16: #{posemb_transformer_decoder.22} parent=0 // pred_region
    _
  $region17: #{posemb_transformer_decoder.22} parent=0 // pred_fallthru
    _
  // Predicated region
  $region18: #{posemb_transformer_decoder.22} parent=0 // pred_check
    _
  $region19: #{posemb_transformer_decoder.22} parent=0 // pred_check_branch
    %115 = sbr.rel (0) target = $region21
  $region20: #{posemb_transformer_decoder.22} parent=0 // pred_region
    _
  $region21: #{posemb_transformer_decoder.22} parent=0 // pred_fallthru
    _

// kernel: posemb_transformer_decoder.21
$region0: #{posemb_transformer_decoder.21}
  #allocation0 [shape = 'u32[]', space=smem, size = 0x4, offset = 0x4, fixed_abs, tag = 'smem constant byte address 0x4 - core index']
  #allocation1 [shape = 'u32[144,128]{1,0:T(1,128)}', space=vmem, size = 0x12000, scoped, tag = 'internal scratch']
  %s0 = inlined_call_operand.vmem [shape: f32[16,32], index: 0, kind: input, shape index: {}]
  %s1 = inlined_call_operand.vmem [shape: f32[32,32], index: 1, kind: input, shape index: {}]
  %s2 = inlined_call_operand.vmem [shape: f32[1,32], index: 2, kind: input, shape index: {}]
  %s3 = inlined_call_operand.vmem [shape: f32[16,32], index: 3, kind: output, shape index: {}]
  %s4 = sld [smem:[#allocation0]]
  $region22: #{posemb_transformer_decoder.21} parent=0
    _
  %s6 = ssub.s32 1, %s4
  %s7 = scalar_select 0, %s6, %s4
  // Predicated region
  $region2: #{posemb_transformer_decoder.21} parent=0 // pred_check
    _
  $region3: #{posemb_transformer_decoder.21} parent=0 // pred_check_branch
    %9 = sbr.rel (0) target = $region5
  $region4: #{posemb_transformer_decoder.21} parent=0 // pred_region
    _
  $region5: #{posemb_transformer_decoder.21} parent=0 // pred_fallthru
    _
  // Predicated region
  $region6: #{posemb_transformer_decoder.21} parent=0 // pred_check
    _
  $region7: #{posemb_transformer_decoder.21} parent=0 // pred_check_branch
    %11 = sbr.rel (0) target = $region9
  $region8: #{posemb_transformer_decoder.21} parent=0 // pred_region
    _
  $region9: #{posemb_transformer_decoder.21} parent=0 // pred_fallthru
    _
  // Predicated region
  $region10: #{posemb_transformer_decoder.21} parent=0 // pred_check
    _
  $region11: #{posemb_transformer_decoder.21} parent=0 // pred_check_branch
    %13 = sbr.rel (0) target = $region13
  $region12: #{posemb_transformer_decoder.21} parent=0 // pred_region
    _
  $region13: #{posemb_transformer_decoder.21} parent=0 // pred_fallthru
    _
  %v14 = vld [vmem:[%s0] sm:$0xff]
  %v15 = vld [vmem:[%s0 + $0x8] sm:$0xff]
  %v16 = vld [vmem:[%s1] sm:$0xff]
  %v17 = vld [vmem:[%s1 + $0x8] sm:$0xff]
  %v18 = vld [vmem:[%s1 + $0x10] sm:$0xff]
  %v19 = vld [vmem:[%s1 + $0x18] sm:$0xff]
  %v20 = vld [vmem:[%s2] sm:$0x1]
  %v22 = vlaneseq
  %v23 = vshrl.u32 %v22, 7
  %v24 = vsub.s32 0, %v23
  %v25 = vrot.slane %v20, %v24
  %vm27 = vcmask 261120
  %v29 = vsel %vm27, %v14, 0
  %v32 = vsel %vm27, %v15, 0
  %34 = vmatprep.subr.mxu0 0.0
  %35 = vmatpush1.msra.mxu0 %v16
  %36 = vmatprep.subr.mxu0 0.0
  %37 = vmatpush1.msra.mxu0 %v17
  %38 = vmatprep.subr.mxu0 0.0
  %39 = vmatpush1.msra.mxu0 %v18
  %40 = vmatprep.subr.mxu0 0.0
  %41 = vmatpush1.msra.mxu0 %v19
  %42 = vmatprep.subr.mxu0 0.0
  %43 = vmatpush1.msra.mxu0 0.0
  %44 = vmatprep.subr.mxu0 0.0
  %45 = vmatpush1.msra.mxu0 0.0
  %46 = vmatprep.subr.mxu0 0.0
  %47 = vmatpush1.msra.mxu0 0.0
  %48 = vmatprep.subr.mxu0 0.0
  %49 = vmatpush1.msra.mxu0 0.0
  %50 = vmatprep.subr.mxu0 0.0
  %51 = vmatpush1.msra.mxu0 0.0
  %52 = vmatprep.subr.mxu0 0.0
  %53 = vmatpush1.msra.mxu0 0.0
  %54 = vmatprep.subr.mxu0 0.0
  %55 = vmatpush1.msra.mxu0 0.0
  %56 = vmatprep.subr.mxu0 0.0
  %57 = vmatpush1.msra.mxu0 0.0
  %58 = vmatprep.subr.mxu0 0.0
  %59 = vmatpush1.msra.mxu0 0.0
  %60 = vmatprep.subr.mxu0 0.0
  %61 = vmatpush1.msra.mxu0 0.0
  %62 = vmatprep.subr.mxu0 0.0
  %63 = vmatpush1.msra.mxu0 0.0
  %64 = vmatprep.subr.mxu0 0.0
  %65 = vmatpush1.msra.mxu0 0.0
  %66 = vmatprep.subr.mxu0 0.0
  %67 = vmatpush1.msra.mxu0 0.0
  %68 = vmatprep.subr.mxu0 0.0
  %69 = vmatpush1.msra.mxu0 0.0
  %70 = vmatprep.subr.mxu0 0.0
  %71 = vmatpush1.msra.mxu0 0.0
  %72 = vmatprep.subr.mxu0 0.0
  %73 = vmatpush1.msra.mxu0 0.0
  %74 = vmatprep.subr.mxu0 0.0
  %75 = vmatpush1.msra.mxu0 0.0
  %76 = vmatprep.subr.mxu0 0.0
  %77 = vmatpush1.msra.mxu0 0.0
  %78 = vmatprep.subr.mxu0 0.0
  %79 = vmatpush1.msra.mxu0 0.0
  %80 = vmatprep.subr.mxu0 0.0
  %81 = vmatpush1.msra.mxu0 0.0
  %82 = vmatprep.subr.mxu0 0.0
  %83 = vmatpush1.msra.mxu0 0.0
  %84 = vmatprep.subr.mxu0 0.0
  %85 = vmatpush1.msra.mxu0 0.0
  %86 = vmatprep.subr.mxu0 0.0
  %87 = vmatpush1.msra.mxu0 0.0
  %88 = vmatprep.subr.mxu0 0.0
  %89 = vmatpush1.msra.mxu0 0.0
  %90 = vmatprep.subr.mxu0 0.0
  %91 = vmatpush1.msra.mxu0 0.0
  %92 = vmatprep.subr.mxu0 0.0
  %93 = vmatpush1.msra.mxu0 0.0
  %94 = vmatprep.subr.mxu0 0.0
  %95 = vmatpush1.msra.mxu0 0.0
  %96 = vmatprep.subr.mxu0 0.0
  %97 = vmatpush1.msra.mxu0 0.0
  %98 = vmatprep.mubr.f32.mxu0 0.0
  %99 = vmatmul.mubr.f32.gmra.mrb[0].mxu0 %v29
  %v100 = vpop.f32.mrb[0].mxu0
  %v101 = vadd.f32 %v25, %v100
  %v102 = vpop.f32.mrb[0].mxu0
  %103 = vmatprep.mubr.f32.mxu0 0.0
  %104 = vmatmul.mubr.f32.gmra.mrb[0].mxu0 %v32
  %v105 = vpop.f32.mrb[0].mxu0
  %v106 = vadd.f32 %v25, %v105
  %v107 = vpop.f32.mrb[0].mxu0
  %108 = vdwg.mxu0
  %109 = vst.msk [vmem:[%s3] sm:$0xff] %vm27, %v101
  %110 = vst.msk [vmem:[%s3 + $0x8] sm:$0xff] %vm27, %v106
  // Predicated region
  $region14: #{posemb_transformer_decoder.21} parent=0 // pred_check
    _
  $region15: #{posemb_transformer_decoder.21} parent=0 // pred_check_branch
    %112 = sbr.rel (0) target = $region17
  $region16: #{posemb_transformer_decoder.21} parent=0 // pred_region
    _
  $region17: #{posemb_transformer_decoder.21} parent=0 // pred_fallthru
    _
  // Predicated region
  $region18: #{posemb_transformer_decoder.21} parent=0 // pred_check
    _
  $region19: #{posemb_transformer_decoder.21} parent=0 // pred_check_branch
    %114 = sbr.rel (0) target = $region21
  $region20: #{posemb_transformer_decoder.21} parent=0 // pred_region
    _
  $region21: #{posemb_transformer_decoder.21} parent=0 // pred_fallthru
    _

// kernel: posemb_transformer_decoder.33
$region0: #{posemb_transformer_decoder.33}
  #allocation0 [shape = 'u32[]', space=smem, size = 0x4, offset = 0x4, fixed_abs, tag = 'smem constant byte address 0x4 - core index']
  #allocation1 [shape = 'u32[144,128]{1,0:T(1,128)}', space=vmem, size = 0x12000, scoped, tag = 'internal scratch']
  %s0 = inlined_call_operand.vmem [shape: f32[16,32], index: 0, kind: input, shape index: {}]
  %s1 = inlined_call_operand.vmem [shape: f32[32,64], index: 1, kind: input, shape index: {}]
  %s2 = inlined_call_operand.vmem [shape: f32[1,64], index: 2, kind: input, shape index: {}]
  %s3 = inlined_call_operand.vmem [shape: f32[64,32], index: 3, kind: input, shape index: {}]
  %s4 = inlined_call_operand.vmem [shape: f32[1,32], index: 4, kind: input, shape index: {}]
  %s5 = inlined_call_operand.vmem [shape: f32[1,32], index: 5, kind: input, shape index: {}]
  %s6 = inlined_call_operand.vmem [shape: f32[1,32], index: 6, kind: input, shape index: {}]
  %s7 = inlined_call_operand.hbm [shape: f32[16,32], index: 7, kind: output, shape index: {}]
  %s8 = sld [smem:[#allocation0]]
  $region38: #{posemb_transformer_decoder.33} parent=0
    _
  %s10 = ssub.s32 1, %s8
  %s11 = scalar_select 0, %s10, %s8
  $region1: #{posemb_transformer_decoder.33} parent=0
    #allocation2 [shape = 'u8[8192]{0}', space=vmem, size = 0x2000, scoped, tag = 'output window, operand 0, single buffered']
    #allocation3 [shape = 's32[1]{0}', space=sflag, size = 0x4, scoped, tag = 'scoped memory for posemb_transformer_decoder.33']
    %12 = vsyncpa [#allocation3], 0
    // Predicated region
    $region2: #{posemb_transformer_decoder.33} parent=1 // pred_check
      _
    $region3: #{posemb_transformer_decoder.33} parent=1 // pred_check_branch
      %14 = sbr.rel (0) target = $region5
    $region4: #{posemb_transformer_decoder.33} parent=1 // pred_region
      _
    $region5: #{posemb_transformer_decoder.33} parent=1 // pred_fallthru
      _
    // Predicated region
    $region6: #{posemb_transformer_decoder.33} parent=1 // pred_check
      _
    $region7: #{posemb_transformer_decoder.33} parent=1 // pred_check_branch
      %16 = sbr.rel (0) target = $region9
    $region8: #{posemb_transformer_decoder.33} parent=1 // pred_region
      _
    $region9: #{posemb_transformer_decoder.33} parent=1 // pred_fallthru
      _
    // Predicated region
    $region10: #{posemb_transformer_decoder.33} parent=1 // pred_check
      _
    $region11: #{posemb_transformer_decoder.33} parent=1 // pred_check_branch
      %18 = sbr.rel (0) target = $region13
    $region12: #{posemb_transformer_decoder.33} parent=1 // pred_region
      _
    $region13: #{posemb_transformer_decoder.33} parent=1 // pred_fallthru
      _
    // Predicated region
    $region14: #{posemb_transformer_decoder.33} parent=1 // pred_check
      _
    $region15: #{posemb_transformer_decoder.33} parent=1 // pred_check_branch
      %20 = sbr.rel (0) target = $region17
    $region16: #{posemb_transformer_decoder.33} parent=1 // pred_region
      _
    $region17: #{posemb_transformer_decoder.33} parent=1 // pred_fallthru
      _
    // Predicated region
    $region18: #{posemb_transformer_decoder.33} parent=1 // pred_check
      _
    $region19: #{posemb_transformer_decoder.33} parent=1 // pred_check_branch
      %22 = sbr.rel (0) target = $region21
    $region20: #{posemb_transformer_decoder.33} parent=1 // pred_region
      _
    $region21: #{posemb_transformer_decoder.33} parent=1 // pred_fallthru
      _
    // Predicated region
    $region22: #{posemb_transformer_decoder.33} parent=1 // pred_check
      _
    $region23: #{posemb_transformer_decoder.33} parent=1 // pred_check_branch
      %24 = sbr.rel (0) target = $region25
    $region24: #{posemb_transformer_decoder.33} parent=1 // pred_region
      _
    $region25: #{posemb_transformer_decoder.33} parent=1 // pred_fallthru
      _
    // Predicated region
    $region26: #{posemb_transformer_decoder.33} parent=1 // pred_check
      _
    $region27: #{posemb_transformer_decoder.33} parent=1 // pred_check_branch
      %26 = sbr.rel (0) target = $region29
    $region28: #{posemb_transformer_decoder.33} parent=1 // pred_region
      _
    $region29: #{posemb_transformer_decoder.33} parent=1 // pred_fallthru
      _
    %v27 = vld [vmem:[%s0] sm:$0xff]
    %v28 = vld [vmem:[%s0 + $0x8] sm:$0xff]
    %v29 = vld [vmem:[%s1] sm:$0xff]
    %v30 = vld [vmem:[%s1 + $0x8] sm:$0xff]
    %v31 = vld [vmem:[%s1 + $0x10] sm:$0xff]
    %v32 = vld [vmem:[%s1 + $0x18] sm:$0xff]
    %v33 = vld [vmem:[%s2] sm:$0x1]
    %v35 = vlaneseq
    %v36 = vshrl.u32 %v35, 7
    %v37 = vsub.s32 0, %v36
    %v38 = vrot.slane %v33, %v37
    %vm40 = vcmask 261120
    %v42 = vsel %vm40, %v27, 0
    %v45 = vsel %vm40, %v28, 0
    %47 = vmatprep.subr.mxu0 0.0
    %48 = vmatpush1.msra.mxu0 %v29
    %49 = vmatprep.subr.mxu0 0.0
    %50 = vmatpush1.msra.mxu0 %v30
    %51 = vmatprep.subr.mxu0 0.0
    %52 = vmatpush1.msra.mxu0 %v31
    %53 = vmatprep.subr.mxu0 0.0
    %54 = vmatpush1.msra.mxu0 %v32
    %55 = vmatprep.subr.mxu0 0.0
    %56 = vmatpush1.msra.mxu0 0.0
    %57 = vmatprep.subr.mxu0 0.0
    %58 = vmatpush1.msra.mxu0 0.0
    %59 = vmatprep.subr.mxu0 0.0
    %60 = vmatpush1.msra.mxu0 0.0
    %61 = vmatprep.subr.mxu0 0.0
    %62 = vmatpush1.msra.mxu0 0.0
    %63 = vmatprep.subr.mxu0 0.0
    %64 = vmatpush1.msra.mxu0 0.0
    %65 = vmatprep.subr.mxu0 0.0
    %66 = vmatpush1.msra.mxu0 0.0
    %67 = vmatprep.subr.mxu0 0.0
    %68 = vmatpush1.msra.mxu0 0.0
    %69 = vmatprep.subr.mxu0 0.0
    %70 = vmatpush1.msra.mxu0 0.0
    %71 = vmatprep.subr.mxu0 0.0
    %72 = vmatpush1.msra.mxu0 0.0
    %73 = vmatprep.subr.mxu0 0.0
    %74 = vmatpush1.msra.mxu0 0.0
    %75 = vmatprep.subr.mxu0 0.0
    %76 = vmatpush1.msra.mxu0 0.0
    %77 = vmatprep.subr.mxu0 0.0
    %78 = vmatpush1.msra.mxu0 0.0
    %79 = vmatprep.subr.mxu0 0.0
    %80 = vmatpush1.msra.mxu0 0.0
    %81 = vmatprep.subr.mxu0 0.0
    %82 = vmatpush1.msra.mxu0 0.0
    %83 = vmatprep.subr.mxu0 0.0
    %84 = vmatpush1.msra.mxu0 0.0
    %85 = vmatprep.subr.mxu0 0.0
    %86 = vmatpush1.msra.mxu0 0.0
    %87 = vmatprep.subr.mxu0 0.0
    %88 = vmatpush1.msra.mxu0 0.0
    %89 = vmatprep.subr.mxu0 0.0
    %90 = vmatpush1.msra.mxu0 0.0
    %91 = vmatprep.subr.mxu0 0.0
    %92 = vmatpush1.msra.mxu0 0.0
    %93 = vmatprep.subr.mxu0 0.0
    %94 = vmatpush1.msra.mxu0 0.0
    %95 = vmatprep.subr.mxu0 0.0
    %96 = vmatpush1.msra.mxu0 0.0
    %97 = vmatprep.subr.mxu0 0.0
    %98 = vmatpush1.msra.mxu0 0.0
    %99 = vmatprep.subr.mxu0 0.0
    %100 = vmatpush1.msra.mxu0 0.0
    %101 = vmatprep.subr.mxu0 0.0
    %102 = vmatpush1.msra.mxu0 0.0
    %103 = vmatprep.subr.mxu0 0.0
    %104 = vmatpush1.msra.mxu0 0.0
    %105 = vmatprep.subr.mxu0 0.0
    %106 = vmatpush1.msra.mxu0 0.0
    %107 = vmatprep.subr.mxu0 0.0
    %108 = vmatpush1.msra.mxu0 0.0
    %109 = vmatprep.subr.mxu0 0.0
    %110 = vmatpush1.msra.mxu0 0.0
    %111 = vmatprep.mubr.f32.mxu0 0.0
    %112 = vmatmul.mubr.f32.gmra.mrb[0].mxu0 %v42
    %v113 = vpop.f32.mrb[0].mxu0
    %v114 = vadd.f32 %v38, %v113
    %v115 = vpop.f32.mrb[0].mxu0
    %116 = vmatprep.mubr.f32.mxu0 0.0
    %117 = vmatmul.mubr.f32.gmra.mrb[0].mxu0 %v45
    %v118 = vpop.f32.mrb[0].mxu0
    %v119 = vadd.f32 %v38, %v118
    %v120 = vpop.f32.mrb[0].mxu0
    %121 = vdwg.mxu0
    %v122 = vmax.f32 %v114, 0.0
    %v123 = vmax.f32 %v119, 0.0
    %v124 = vld [vmem:[%s3] sm:$0xff]
    %v125 = vld [vmem:[%s3 + $0x8] sm:$0xff]
    %v126 = vld [vmem:[%s3 + $0x10] sm:$0xff]
    %v127 = vld [vmem:[%s3 + $0x18] sm:$0xff]
    %v128 = vld [vmem:[%s3 + $0x20] sm:$0xff]
    %v129 = vld [vmem:[%s3 + $0x28] sm:$0xff]
    %v130 = vld [vmem:[%s3 + $0x30] sm:$0xff]
    %v131 = vld [vmem:[%s3 + $0x38] sm:$0xff]
    %v132 = vld [vmem:[%s4] sm:$0x1]
    %v134 = vlaneseq
    %v135 = vshrl.u32 %v134, 7
    %v136 = vsub.s32 0, %v135
    %v137 = vrot.slane %v132, %v136
    %vm139 = vcmask 523264
    %v141 = vsel %vm139, %v122, 0
    %v144 = vsel %vm139, %v123, 0
    %146 = vmatprep.subr.mxu0 0.0
    %147 = vmatpush1.msra.mxu0 %v124
    %148 = vmatprep.subr.mxu0 0.0
    %149 = vmatpush1.msra.mxu0 %v125
    %150 = vmatprep.subr.mxu0 0.0
    %151 = vmatpush1.msra.mxu0 %v126
    %152 = vmatprep.subr.mxu0 0.0
    %153 = vmatpush1.msra.mxu0 %v127
    %154 = vmatprep.subr.mxu0 0.0
    %155 = vmatpush1.msra.mxu0 %v128
    %156 = vmatprep.subr.mxu0 0.0
    %157 = vmatpush1.msra.mxu0 %v129
    %158 = vmatprep.subr.mxu0 0.0
    %159 = vmatpush1.msra.mxu0 %v130
    %160 = vmatprep.subr.mxu0 0.0
    %161 = vmatpush1.msra.mxu0 %v131
    %162 = vmatprep.subr.mxu0 0.0
    %163 = vmatpush1.msra.mxu0 0.0
    %164 = vmatprep.subr.mxu0 0.0
    %165 = vmatpush1.msra.mxu0 0.0
    %166 = vmatprep.subr.mxu0 0.0
    %167 = vmatpush1.msra.mxu0 0.0
    %168 = vmatprep.subr.mxu0 0.0
    %169 = vmatpush1.msra.mxu0 0.0
    %170 = vmatprep.subr.mxu0 0.0
    %171 = vmatpush1.msra.mxu0 0.0
    %172 = vmatprep.subr.mxu0 0.0
    %173 = vmatpush1.msra.mxu0 0.0
    %174 = vmatprep.subr.mxu0 0.0
    %175 = vmatpush1.msra.mxu0 0.0
    %176 = vmatprep.subr.mxu0 0.0
    %177 = vmatpush1.msra.mxu0 0.0
    %178 = vmatprep.subr.mxu0 0.0
    %179 = vmatpush1.msra.mxu0 0.0
    %180 = vmatprep.subr.mxu0 0.0
    %181 = vmatpush1.msra.mxu0 0.0
    %182 = vmatprep.subr.mxu0 0.0
    %183 = vmatpush1.msra.mxu0 0.0
    %184 = vmatprep.subr.mxu0 0.0
    %185 = vmatpush1.msra.mxu0 0.0
    %186 = vmatprep.subr.mxu0 0.0
    %187 = vmatpush1.msra.mxu0 0.0
    %188 = vmatprep.subr.mxu0 0.0
    %189 = vmatpush1.msra.mxu0 0.0
    %190 = vmatprep.subr.mxu0 0.0
    %191 = vmatpush1.msra.mxu0 0.0
    %192 = vmatprep.subr.mxu0 0.0
    %193 = vmatpush1.msra.mxu0 0.0
    %194 = vmatprep.subr.mxu0 0.0
    %195 = vmatpush1.msra.mxu0 0.0
    %196 = vmatprep.subr.mxu0 0.0
    %197 = vmatpush1.msra.mxu0 0.0
    %198 = vmatprep.subr.mxu0 0.0
    %199 = vmatpush1.msra.mxu0 0.0
    %200 = vmatprep.subr.mxu0 0.0
    %201 = vmatpush1.msra.mxu0 0.0
    %202 = vmatprep.subr.mxu0 0.0
    %203 = vmatpush1.msra.mxu0 0.0
    %204 = vmatprep.subr.mxu0 0.0
    %205 = vmatpush1.msra.mxu0 0.0
    %206 = vmatprep.subr.mxu0 0.0
    %207 = vmatpush1.msra.mxu0 0.0
    %208 = vmatprep.subr.mxu0 0.0
    %209 = vmatpush1.msra.mxu0 0.0
    %210 = vmatprep.mubr.f32.mxu0 0.0
    %211 = vmatmul.mubr.f32.gmra.mrb[0].mxu0 %v141
    %v212 = vpop.f32.mrb[0].mxu0
    %v213 = vadd.f32 %v137, %v212
    %v214 = vpop.f32.mrb[0].mxu0
    %215 = vmatprep.mubr.f32.mxu0 0.0
    %216 = vmatmul.mubr.f32.gmra.mrb[0].mxu0 %v144
    %v217 = vpop.f32.mrb[0].mxu0
    %v218 = vadd.f32 %v137, %v217
    %v219 = vpop.f32.mrb[0].mxu0
    %220 = vdwg.mxu0
    %v221 = vadd.f32 %v213, %v27
    %v222 = vadd.f32 %v218, %v28
    %v223 = vsel %vm40, %v221, 0.0
    %224 = vadd.xlane.f32.xlu0 %v223
    %v225 = vpop.xlane.xlu0 %224
    %v226 = vsel %vm40, %v222, 0.0
    %227 = vadd.xlane.f32.xlu0 %v226
    %v228 = vpop.xlane.xlu0 %227
    %v229 = vrcp.pop 32.0
    %v230 = vmul.f32 %v225, %v229
    %v231 = vmul.f32 %v228, %v229
    %v232 = vsub.f32 %v221, %v230
    %v233 = vsub.f32 %v222, %v231
    %v234 = vmul.f32 %v232, %v232
    %v235 = vmul.f32 %v233, %v233
    %v236 = vsel %vm40, %v234, 0.0
    %237 = vadd.xlane.f32.xlu0 %v236
    %v238 = vpop.xlane.xlu0 %237
    %v239 = vsel %vm40, %v235, 0.0
    %240 = vadd.xlane.f32.xlu0 %v239
    %v241 = vpop.xlane.xlu0 %240
    %v242 = vmul.f32 %v238, %v229
    %v243 = vmul.f32 %v241, %v229
    %v244 = vadd.f32 %v242, 1e-05
    %v245 = vadd.f32 %v243, 1e-05
    %v246 = vrsqrt.pop %v244
    %v247 = vrsqrt.pop %v245
    %v248 = vmul.f32 %v232, %v246
    %v249 = vmul.f32 %v233, %v247
    %v250 = vld [vmem:[%s5] sm:$0x1]
    %v252 = vlaneseq
    %v253 = vshrl.u32 %v252, 7
    %v254 = vsub.s32 0, %v253
    %v255 = vrot.slane %v250, %v254
    %v257 = vmul.f32 %v248, %v255
    %v258 = vmul.f32 %v249, %v255
    %v259 = vld [vmem:[%s6] sm:$0x1]
    %v261 = vlaneseq
    %v262 = vshrl.u32 %v261, 7
    %v263 = vsub.s32 0, %v262
    %v264 = vrot.slane %v259, %v263
    %v266 = vadd.f32 %v257, %v264
    %v267 = vadd.f32 %v258, %v264
    %268 = vst.msk [vmem:[#allocation2] sm:$0xff] %vm40, %v266
    %269 = vst.msk [vmem:[#allocation2 + $0x8] sm:$0xff] %vm40, %v267
    // Predicated region
    $region30: #{posemb_transformer_decoder.33} parent=1 // pred_check
      _
    $region31: #{posemb_transformer_decoder.33} parent=1 // pred_check_branch
      %271 = sbr.rel (0) target = $region33
    $region32: #{posemb_transformer_decoder.33} parent=1 // pred_region
      %s273 = ssub.s32 256, 256
      %274 = vsyncadd [#allocation3], %s273
      %s275 = sshll.u32 [#allocation2], 4
      %s276 = int_to_ptr.vmem [resolvable:$true] %s275
      %281 = dma.vmem_to_hbm [thread:$0]  %s276, 256, %s7, [#allocation3], 128, 128, 8
    $region33: #{posemb_transformer_decoder.33} parent=1 // pred_fallthru
      _
    // Predicated region
    $region34: #{posemb_transformer_decoder.33} parent=1 // pred_check
      _
    $region35: #{posemb_transformer_decoder.33} parent=1 // pred_check_branch
      %283 = sbr.rel (0) target = $region37
    $region36: #{posemb_transformer_decoder.33} parent=1 // pred_region
      %284 = dma.done [#allocation3], 256
    $region37: #{posemb_transformer_decoder.33} parent=1 // pred_fallthru
      _
    %285 = vsyncpa [#allocation3], 1

// kernel: posemb_transformer_decoder.25
$region0: #{posemb_transformer_decoder.25}
  #allocation0 [shape = 'u32[]', space=smem, size = 0x4, offset = 0x4, fixed_abs, tag = 'smem constant byte address 0x4 - core index']
  #allocation1 [shape = 'u32[144,128]{1,0:T(1,128)}', space=vmem, size = 0x12000, scoped, tag = 'internal scratch']
  %s0 = inlined_call_operand.vmem [shape: f32[16,32], index: 0, kind: input, shape index: {}]
  %s1 = inlined_call_operand.vmem [shape: f32[32,64], index: 1, kind: input, shape index: {}]
  %s2 = inlined_call_operand.vmem [shape: f32[1,64], index: 2, kind: input, shape index: {}]
  %s3 = inlined_call_operand.vmem [shape: f32[64,32], index: 3, kind: input, shape index: {}]
  %s4 = inlined_call_operand.vmem [shape: f32[1,32], index: 4, kind: input, shape index: {}]
  %s5 = inlined_call_operand.vmem [shape: f32[1,32], index: 5, kind: input, shape index: {}]
  %s6 = inlined_call_operand.vmem [shape: f32[1,32], index: 6, kind: input, shape index: {}]
  %s7 = inlined_call_operand.vmem [shape: f32[16,32], index: 7, kind: output, shape index: {}]
  %s8 = sld [smem:[#allocation0]]
  $region38: #{posemb_transformer_decoder.25} parent=0
    _
  %s10 = ssub.s32 1, %s8
  %s11 = scalar_select 0, %s10, %s8
  // Predicated region
  $region2: #{posemb_transformer_decoder.25} parent=0 // pred_check
    _
  $region3: #{posemb_transformer_decoder.25} parent=0 // pred_check_branch
    %13 = sbr.rel (0) target = $region5
  $region4: #{posemb_transformer_decoder.25} parent=0 // pred_region
    _
  $region5: #{posemb_transformer_decoder.25} parent=0 // pred_fallthru
    _
  // Predicated region
  $region6: #{posemb_transformer_decoder.25} parent=0 // pred_check
    _
  $region7: #{posemb_transformer_decoder.25} parent=0 // pred_check_branch
    %15 = sbr.rel (0) target = $region9
  $region8: #{posemb_transformer_decoder.25} parent=0 // pred_region
    _
  $region9: #{posemb_transformer_decoder.25} parent=0 // pred_fallthru
    _
  // Predicated region
  $region10: #{posemb_transformer_decoder.25} parent=0 // pred_check
    _
  $region11: #{posemb_transformer_decoder.25} parent=0 // pred_check_branch
    %17 = sbr.rel (0) target = $region13
  $region12: #{posemb_transformer_decoder.25} parent=0 // pred_region
    _
  $region13: #{posemb_transformer_decoder.25} parent=0 // pred_fallthru
    _
  // Predicated region
  $region14: #{posemb_transformer_decoder.25} parent=0 // pred_check
    _
  $region15: #{posemb_transformer_decoder.25} parent=0 // pred_check_branch
    %19 = sbr.rel (0) target = $region17
  $region16: #{posemb_transformer_decoder.25} parent=0 // pred_region
    _
  $region17: #{posemb_transformer_decoder.25} parent=0 // pred_fallthru
    _
  // Predicated region
  $region18: #{posemb_transformer_decoder.25} parent=0 // pred_check
    _
  $region19: #{posemb_transformer_decoder.25} parent=0 // pred_check_branch
    %21 = sbr.rel (0) target = $region21
  $region20: #{posemb_transformer_decoder.25} parent=0 // pred_region
    _
  $region21: #{posemb_transformer_decoder.25} parent=0 // pred_fallthru
    _
  // Predicated region
  $region22: #{posemb_transformer_decoder.25} parent=0 // pred_check
    _
  $region23: #{posemb_transformer_decoder.25} parent=0 // pred_check_branch
    %23 = sbr.rel (0) target = $region25
  $region24: #{posemb_transformer_decoder.25} parent=0 // pred_region
    _
  $region25: #{posemb_transformer_decoder.25} parent=0 // pred_fallthru
    _
  // Predicated region
  $region26: #{posemb_transformer_decoder.25} parent=0 // pred_check
    _
  $region27: #{posemb_transformer_decoder.25} parent=0 // pred_check_branch
    %25 = sbr.rel (0) target = $region29
  $region28: #{posemb_transformer_decoder.25} parent=0 // pred_region
    _
  $region29: #{posemb_transformer_decoder.25} parent=0 // pred_fallthru
    _
  %v26 = vld [vmem:[%s0] sm:$0xff]
  %v27 = vld [vmem:[%s0 + $0x8] sm:$0xff]
  %v28 = vld [vmem:[%s1] sm:$0xff]
  %v29 = vld [vmem:[%s1 + $0x8] sm:$0xff]
  %v30 = vld [vmem:[%s1 + $0x10] sm:$0xff]
  %v31 = vld [vmem:[%s1 + $0x18] sm:$0xff]
  %v32 = vld [vmem:[%s2] sm:$0x1]
  %v34 = vlaneseq
  %v35 = vshrl.u32 %v34, 7
  %v36 = vsub.s32 0, %v35
  %v37 = vrot.slane %v32, %v36
  %vm39 = vcmask 261120
  %v41 = vsel %vm39, %v26, 0
  %v44 = vsel %vm39, %v27, 0
  %46 = vmatprep.subr.mxu0 0.0
  %47 = vmatpush1.msra.mxu0 %v28
  %48 = vmatprep.subr.mxu0 0.0
  %49 = vmatpush1.msra.mxu0 %v29
  %50 = vmatprep.subr.mxu0 0.0
  %51 = vmatpush1.msra.mxu0 %v30
  %52 = vmatprep.subr.mxu0 0.0
  %53 = vmatpush1.msra.mxu0 %v31
  %54 = vmatprep.subr.mxu0 0.0
  %55 = vmatpush1.msra.mxu0 0.0
  %56 = vmatprep.subr.mxu0 0.0
  %57 = vmatpush1.msra.mxu0 0.0
  %58 = vmatprep.subr.mxu0 0.0
  %59 = vmatpush1.msra.mxu0 0.0
  %60 = vmatprep.subr.mxu0 0.0
  %61 = vmatpush1.msra.mxu0 0.0
  %62 = vmatprep.subr.mxu0 0.0
  %63 = vmatpush1.msra.mxu0 0.0
  %64 = vmatprep.subr.mxu0 0.0
  %65 = vmatpush1.msra.mxu0 0.0
  %66 = vmatprep.subr.mxu0 0.0
  %67 = vmatpush1.msra.mxu0 0.0
  %68 = vmatprep.subr.mxu0 0.0
  %69 = vmatpush1.msra.mxu0 0.0
  %70 = vmatprep.subr.mxu0 0.0
  %71 = vmatpush1.msra.mxu0 0.0
  %72 = vmatprep.subr.mxu0 0.0
  %73 = vmatpush1.msra.mxu0 0.0
  %74 = vmatprep.subr.mxu0 0.0
  %75 = vmatpush1.msra.mxu0 0.0
  %76 = vmatprep.subr.mxu0 0.0
  %77 = vmatpush1.msra.mxu0 0.0
  %78 = vmatprep.subr.mxu0 0.0
  %79 = vmatpush1.msra.mxu0 0.0
  %80 = vmatprep.subr.mxu0 0.0
  %81 = vmatpush1.msra.mxu0 0.0
  %82 = vmatprep.subr.mxu0 0.0
  %83 = vmatpush1.msra.mxu0 0.0
  %84 = vmatprep.subr.mxu0 0.0
  %85 = vmatpush1.msra.mxu0 0.0
  %86 = vmatprep.subr.mxu0 0.0
  %87 = vmatpush1.msra.mxu0 0.0
  %88 = vmatprep.subr.mxu0 0.0
  %89 = vmatpush1.msra.mxu0 0.0
  %90 = vmatprep.subr.mxu0 0.0
  %91 = vmatpush1.msra.mxu0 0.0
  %92 = vmatprep.subr.mxu0 0.0
  %93 = vmatpush1.msra.mxu0 0.0
  %94 = vmatprep.subr.mxu0 0.0
  %95 = vmatpush1.msra.mxu0 0.0
  %96 = vmatprep.subr.mxu0 0.0
  %97 = vmatpush1.msra.mxu0 0.0
  %98 = vmatprep.subr.mxu0 0.0
  %99 = vmatpush1.msra.mxu0 0.0
  %100 = vmatprep.subr.mxu0 0.0
  %101 = vmatpush1.msra.mxu0 0.0
  %102 = vmatprep.subr.mxu0 0.0
  %103 = vmatpush1.msra.mxu0 0.0
  %104 = vmatprep.subr.mxu0 0.0
  %105 = vmatpush1.msra.mxu0 0.0
  %106 = vmatprep.subr.mxu0 0.0
  %107 = vmatpush1.msra.mxu0 0.0
  %108 = vmatprep.subr.mxu0 0.0
  %109 = vmatpush1.msra.mxu0 0.0
  %110 = vmatprep.mubr.f32.mxu0 0.0
  %111 = vmatmul.mubr.f32.gmra.mrb[0].mxu0 %v41
  %v112 = vpop.f32.mrb[0].mxu0
  %v113 = vadd.f32 %v37, %v112
  %v114 = vpop.f32.mrb[0].mxu0
  %115 = vmatprep.mubr.f32.mxu0 0.0
  %116 = vmatmul.mubr.f32.gmra.mrb[0].mxu0 %v44
  %v117 = vpop.f32.mrb[0].mxu0
  %v118 = vadd.f32 %v37, %v117
  %v119 = vpop.f32.mrb[0].mxu0
  %120 = vdwg.mxu0
  %v121 = vmax.f32 %v113, 0.0
  %v122 = vmax.f32 %v118, 0.0
  %v123 = vld [vmem:[%s3] sm:$0xff]
  %v124 = vld [vmem:[%s3 + $0x8] sm:$0xff]
  %v125 = vld [vmem:[%s3 + $0x10] sm:$0xff]
  %v126 = vld [vmem:[%s3 + $0x18] sm:$0xff]
  %v127 = vld [vmem:[%s3 + $0x20] sm:$0xff]
  %v128 = vld [vmem:[%s3 + $0x28] sm:$0xff]
  %v129 = vld [vmem:[%s3 + $0x30] sm:$0xff]
  %v130 = vld [vmem:[%s3 + $0x38] sm:$0xff]
  %v131 = vld [vmem:[%s4] sm:$0x1]
  %v133 = vlaneseq
  %v134 = vshrl.u32 %v133, 7
  %v135 = vsub.s32 0, %v134
  %v136 = vrot.slane %v131, %v135
  %vm138 = vcmask 523264
  %v140 = vsel %vm138, %v121, 0
  %v143 = vsel %vm138, %v122, 0
  %145 = vmatprep.subr.mxu0 0.0
  %146 = vmatpush1.msra.mxu0 %v123
  %147 = vmatprep.subr.mxu0 0.0
  %148 = vmatpush1.msra.mxu0 %v124
  %149 = vmatprep.subr.mxu0 0.0
  %150 = vmatpush1.msra.mxu0 %v125
  %151 = vmatprep.subr.mxu0 0.0
  %152 = vmatpush1.msra.mxu0 %v126
  %153 = vmatprep.subr.mxu0 0.0
  %154 = vmatpush1.msra.mxu0 %v127
  %155 = vmatprep.subr.mxu0 0.0
  %156 = vmatpush1.msra.mxu0 %v128
  %157 = vmatprep.subr.mxu0 0.0
  %158 = vmatpush1.msra.mxu0 %v129
  %159 = vmatprep.subr.mxu0 0.0
  %160 = vmatpush1.msra.mxu0 %v130
  %161 = vmatprep.subr.mxu0 0.0
  %162 = vmatpush1.msra.mxu0 0.0
  %163 = vmatprep.subr.mxu0 0.0
  %164 = vmatpush1.msra.mxu0 0.0
  %165 = vmatprep.subr.mxu0 0.0
  %166 = vmatpush1.msra.mxu0 0.0
  %167 = vmatprep.subr.mxu0 0.0
  %168 = vmatpush1.msra.mxu0 0.0
  %169 = vmatprep.subr.mxu0 0.0
  %170 = vmatpush1.msra.mxu0 0.0
  %171 = vmatprep.subr.mxu0 0.0
  %172 = vmatpush1.msra.mxu0 0.0
  %173 = vmatprep.subr.mxu0 0.0
  %174 = vmatpush1.msra.mxu0 0.0
  %175 = vmatprep.subr.mxu0 0.0
  %176 = vmatpush1.msra.mxu0 0.0
  %177 = vmatprep.subr.mxu0 0.0
  %178 = vmatpush1.msra.mxu0 0.0
  %179 = vmatprep.subr.mxu0 0.0
  %180 = vmatpush1.msra.mxu0 0.0
  %181 = vmatprep.subr.mxu0 0.0
  %182 = vmatpush1.msra.mxu0 0.0
  %183 = vmatprep.subr.mxu0 0.0
  %184 = vmatpush1.msra.mxu0 0.0
  %185 = vmatprep.subr.mxu0 0.0
  %186 = vmatpush1.msra.mxu0 0.0
  %187 = vmatprep.subr.mxu0 0.0
  %188 = vmatpush1.msra.mxu0 0.0
  %189 = vmatprep.subr.mxu0 0.0
  %190 = vmatpush1.msra.mxu0 0.0
  %191 = vmatprep.subr.mxu0 0.0
  %192 = vmatpush1.msra.mxu0 0.0
  %193 = vmatprep.subr.mxu0 0.0
  %194 = vmatpush1.msra.mxu0 0.0
  %195 = vmatprep.subr.mxu0 0.0
  %196 = vmatpush1.msra.mxu0 0.0
  %197 = vmatprep.subr.mxu0 0.0
  %198 = vmatpush1.msra.mxu0 0.0
  %199 = vmatprep.subr.mxu0 0.0
  %200 = vmatpush1.msra.mxu0 0.0
  %201 = vmatprep.subr.mxu0 0.0
  %202 = vmatpush1.msra.mxu0 0.0
  %203 = vmatprep.subr.mxu0 0.0
  %204 = vmatpush1.msra.mxu0 0.0
  %205 = vmatprep.subr.mxu0 0.0
  %206 = vmatpush1.msra.mxu0 0.0
  %207 = vmatprep.subr.mxu0 0.0
  %208 = vmatpush1.msra.mxu0 0.0
  %209 = vmatprep.mubr.f32.mxu0 0.0
  %210 = vmatmul.mubr.f32.gmra.mrb[0].mxu0 %v140
  %v211 = vpop.f32.mrb[0].mxu0
  %v212 = vadd.f32 %v136, %v211
  %v213 = vpop.f32.mrb[0].mxu0
  %214 = vmatprep.mubr.f32.mxu0 0.0
  %215 = vmatmul.mubr.f32.gmra.mrb[0].mxu0 %v143
  %v216 = vpop.f32.mrb[0].mxu0
  %v217 = vadd.f32 %v136, %v216
  %v218 = vpop.f32.mrb[0].mxu0
  %219 = vdwg.mxu0
  %v220 = vadd.f32 %v212, %v26
  %v221 = vadd.f32 %v217, %v27
  %v222 = vsel %vm39, %v220, 0.0
  %223 = vadd.xlane.f32.xlu0 %v222
  %v224 = vpop.xlane.xlu0 %223
  %v225 = vsel %vm39, %v221, 0.0
  %226 = vadd.xlane.f32.xlu0 %v225
  %v227 = vpop.xlane.xlu0 %226
  %v228 = vrcp.pop 32.0
  %v229 = vmul.f32 %v224, %v228
  %v230 = vmul.f32 %v227, %v228
  %v231 = vsub.f32 %v220, %v229
  %v232 = vsub.f32 %v221, %v230
  %v233 = vmul.f32 %v231, %v231
  %v234 = vmul.f32 %v232, %v232
  %v235 = vsel %vm39, %v233, 0.0
  %236 = vadd.xlane.f32.xlu0 %v235
  %v237 = vpop.xlane.xlu0 %236
  %v238 = vsel %vm39, %v234, 0.0
  %239 = vadd.xlane.f32.xlu0 %v238
  %v240 = vpop.xlane.xlu0 %239
  %v241 = vmul.f32 %v237, %v228
  %v242 = vmul.f32 %v240, %v228
  %v243 = vadd.f32 %v241, 1e-05
  %v244 = vadd.f32 %v242, 1e-05
  %v245 = vrsqrt.pop %v243
  %v246 = vrsqrt.pop %v244
  %v247 = vmul.f32 %v231, %v245
  %v248 = vmul.f32 %v232, %v246
  %v249 = vld [vmem:[%s5] sm:$0x1]
  %v251 = vlaneseq
  %v252 = vshrl.u32 %v251, 7
  %v253 = vsub.s32 0, %v252
  %v254 = vrot.slane %v249, %v253
  %v256 = vmul.f32 %v247, %v254
  %v257 = vmul.f32 %v248, %v254
  %v258 = vld [vmem:[%s6] sm:$0x1]
  %v260 = vlaneseq
  %v261 = vshrl.u32 %v260, 7
  %v262 = vsub.s32 0, %v261
  %v263 = vrot.slane %v258, %v262
  %v265 = vadd.f32 %v256, %v263
  %v266 = vadd.f32 %v257, %v263
  %267 = vst.msk [vmem:[%s7] sm:$0xff] %vm39, %v265
  %268 = vst.msk [vmem:[%s7 + $0x8] sm:$0xff] %vm39, %v266
  // Predicated region
  $region30: #{posemb_transformer_decoder.25} parent=0 // pred_check
    _
  $region31: #{posemb_transformer_decoder.25} parent=0 // pred_check_branch
    %270 = sbr.rel (0) target = $region33
  $region32: #{posemb_transformer_decoder.25} parent=0 // pred_region
    _
  $region33: #{posemb_transformer_decoder.25} parent=0 // pred_fallthru
    _
  // Predicated region
  $region34: #{posemb_transformer_decoder.25} parent=0 // pred_check
    _
  $region35: #{posemb_transformer_decoder.25} parent=0 // pred_check_branch
    %272 = sbr.rel (0) target = $region37
  $region36: #{posemb_transformer_decoder.25} parent=0 // pred_region
    _
  $region37: #{posemb_transformer_decoder.25} parent=0 // pred_fallthru
    _

// kernel: posemb_transformer_decoder.23
$region0: #{posemb_transformer_decoder.23}
  #allocation0 [shape = 'u32[]', space=smem, size = 0x4, offset = 0x4, fixed_abs, tag = 'smem constant byte address 0x4 - core index']
  #allocation1 [shape = 'u32[144,128]{1,0:T(1,128)}', space=vmem, size = 0x12000, scoped, tag = 'internal scratch']
  %s0 = inlined_call_operand.vmem [shape: f32[2,8,32], index: 0, kind: input, shape index: {}]
  %s1 = inlined_call_operand.vmem [shape: f32[2,8,64], index: 1, kind: input, shape index: {}]
  %s2 = inlined_call_operand.vmem [shape: f32[2,1,8], index: 2, kind: input, shape index: {}]
  %s3 = inlined_call_operand.vmem [shape: f32[2,8,32], index: 3, kind: output, shape index: {}]
  %s4 = sld [smem:[#allocation0]]
  $region45: #{posemb_transformer_decoder.23} parent=0
    _
  %s6 = ssub.s32 1, %s4
  %s7 = scalar_select 0, %s6, %s4
  loop: start=0, step=1, limit=4
  $region2: #{posemb_transformer_decoder.23} parent=0 // loop_pre_header
    _
  $region3: #{posemb_transformer_decoder.23} parent=0 // loop_header
    %s9 = sphi 0, %s13
    %p10 = scmp.ge.s32.totalorder %s9, 4
    %s19 = sphi 0, %s21
    %s22 = sphi 0, %s19
    %s23 = sphi 0, %s22
    %s39 = sphi 0, %s23
    %s45 = sphi 0, %s47
    %s48 = sphi 0, %s45
    %s49 = sphi 0, %s48
    %s65 = sphi 0, %s49
    %s71 = sphi 0, %s73
    %s74 = sphi 0, %s71
    %s75 = sphi 0, %s74
    %s91 = sphi 0, %s75
    %s97 = sphi 0, %s99
    %s100 = sphi 0, %s97
    %s101 = sphi 0, %s100
    %s117 = sphi 0, %s101
  $region4: #{posemb_transformer_decoder.23} parent=0 // loop_header_branch
    %12 = sbr.rel (%p10) target = $region8
  $region5: #{posemb_transformer_decoder.23} parent=0 // loop_body
    %s14 = ssub.s32 %s9, 1
    %s15 = ssub.s32 %s9, 2
    %s16 = sadd.s32 %s9, 1
    %s17 = ssub.s32 %s9, %s16
    %p18 = scmp.eq.s32.totalorder %s17, 0
    %s20 = sadd.s32 %s19, 1
    %s21 = scalar_select %p18, %s19, %s20
    %p24 = pneg %p18
    %p25 = scmp.eq.s32.totalorder %s9, 1
    %p26 = por %p24, %p25
    %p27 = scmp.ne.s32.totalorder %s19, %s22
    %p28 = scmp.eq.s32.totalorder %s9, 0
    %p29 = por %p27, %p28
    %p30 = scmp.ne.s32.totalorder %s19, %s22
    %p31 = scmp.eq.s32.totalorder %s14, 1
    %p32 = por %p30, %p31
    %p33 = scmp.ne.s32.totalorder %s22, %s23
    %p34 = scmp.eq.s32.totalorder %s14, 0
    %p35 = por %p33, %p34
    %p36 = scmp.ne.s32.totalorder %s22, %s23
    %p37 = scmp.eq.s32.totalorder %s15, 1
    %p38 = por %p36, %p37
    %p40 = scmp.ne.s32.totalorder %s23, %s39
    %p41 = scmp.eq.s32.totalorder %s15, 0
    %p42 = por %p40, %p41
    %s43 = ssub.s32 %s9, %s16
    %p44 = scmp.eq.s32.totalorder %s43, 0
    %s46 = sadd.s32 %s45, 1
    %s47 = scalar_select %p44, %s45, %s46
    %p50 = pneg %p44
    %p51 = scmp.eq.s32.totalorder %s9, 1
    %p52 = por %p50, %p51
    %p53 = scmp.ne.s32.totalorder %s45, %s48
    %p54 = scmp.eq.s32.totalorder %s9, 0
    %p55 = por %p53, %p54
    %p56 = scmp.ne.s32.totalorder %s45, %s48
    %p57 = scmp.eq.s32.totalorder %s14, 1
    %p58 = por %p56, %p57
    %p59 = scmp.ne.s32.totalorder %s48, %s49
    %p60 = scmp.eq.s32.totalorder %s14, 0
    %p61 = por %p59, %p60
    %p62 = scmp.ne.s32.totalorder %s48, %s49
    %p63 = scmp.eq.s32.totalorder %s15, 1
    %p64 = por %p62, %p63
    %p66 = scmp.ne.s32.totalorder %s49, %s65
    %p67 = scmp.eq.s32.totalorder %s15, 0
    %p68 = por %p66, %p67
    %s69 = ssub.s32 %s9, %s16
    %p70 = scmp.eq.s32.totalorder %s69, 0
    %s72 = sadd.s32 %s71, 1
    %s73 = scalar_select %p70, %s71, %s72
    %p76 = pneg %p70
    %p77 = scmp.eq.s32.totalorder %s9, 1
    %p78 = por %p76, %p77
    %p79 = scmp.ne.s32.totalorder %s71, %s74
    %p80 = scmp.eq.s32.totalorder %s9, 0
    %p81 = por %p79, %p80
    %p82 = scmp.ne.s32.totalorder %s71, %s74
    %p83 = scmp.eq.s32.totalorder %s14, 1
    %p84 = por %p82, %p83
    %p85 = scmp.ne.s32.totalorder %s74, %s75
    %p86 = scmp.eq.s32.totalorder %s14, 0
    %p87 = por %p85, %p86
    %p88 = scmp.ne.s32.totalorder %s74, %s75
    %p89 = scmp.eq.s32.totalorder %s15, 1
    %p90 = por %p88, %p89
    %p92 = scmp.ne.s32.totalorder %s75, %s91
    %p93 = scmp.eq.s32.totalorder %s15, 0
    %p94 = por %p92, %p93
    %s95 = ssub.s32 %s9, %s16
    %p96 = scmp.eq.s32.totalorder %s95, 0
    %s98 = sadd.s32 %s97, 1
    %s99 = scalar_select %p96, %s97, %s98
    %p102 = pneg %p96
    %p103 = scmp.eq.s32.totalorder %s9, 1
    %p104 = por %p102, %p103
    %p105 = scmp.ne.s32.totalorder %s97, %s100
    %p106 = scmp.eq.s32.totalorder %s9, 0
    %p107 = por %p105, %p106
    %p108 = scmp.ne.s32.totalorder %s97, %s100
    %p109 = scmp.eq.s32.totalorder %s14, 1
    %p110 = por %p108, %p109
    %p111 = scmp.ne.s32.totalorder %s100, %s101
    %p112 = scmp.eq.s32.totalorder %s14, 0
    %p113 = por %p111, %p112
    %p114 = scmp.ne.s32.totalorder %s100, %s101
    %p115 = scmp.eq.s32.totalorder %s15, 1
    %p116 = por %p114, %p115
    %p118 = scmp.ne.s32.totalorder %s101, %s117
    %p119 = scmp.eq.s32.totalorder %s15, 0
    %p120 = por %p118, %p119
    %p121 = scmp.le.s32.totalorder 1, %s9
    %p122 = scmp.lt.s32.totalorder %s9, 3
    %p123 = pnand %p121, %p122
    %p124 = pneg %p123
    // Predicated region
    $region9: #{posemb_transformer_decoder.23} parent=5 // pred_check
      _
    $region10: #{posemb_transformer_decoder.23} parent=5 // pred_check_branch
      %126 = sbr.rel (%p123) target = $region12
    $region11: #{posemb_transformer_decoder.23} parent=5 // pred_region
      %s127 = ssub.s32 %s9, 1
    $region12: #{posemb_transformer_decoder.23} parent=5 // pred_fallthru
      _
    %p128 = scmp.lt.s32.totalorder %s9, 2
    // Predicated region
    $region13: #{posemb_transformer_decoder.23} parent=5 // pred_check
      %p129 = pneg %p128
    $region14: #{posemb_transformer_decoder.23} parent=5 // pred_check_branch
      %131 = sbr.rel (%p129) target = $region16
    $region15: #{posemb_transformer_decoder.23} parent=5 // pred_region
      // Predicated region
      $region17: #{posemb_transformer_decoder.23} parent=15 // pred_check
        %p132 = pneg %p29
      $region18: #{posemb_transformer_decoder.23} parent=15 // pred_check_branch
        %134 = sbr.rel (%p132) target = $region20
      $region19: #{posemb_transformer_decoder.23} parent=15 // pred_region
        %p135 = scmp.lt.s32.totalorder %s9, 1
        %s136 = scalar_select %p135, %s9, 1
        %s137 = smul.addr %s136, 8
        %s138 = scalar_lea.vmem %s0, %s137
      $region20: #{posemb_transformer_decoder.23} parent=15 // pred_fallthru
        _
      // Predicated region
      $region21: #{posemb_transformer_decoder.23} parent=15 // pred_check
        %p139 = pneg %p55
      $region22: #{posemb_transformer_decoder.23} parent=15 // pred_check_branch
        %141 = sbr.rel (%p139) target = $region24
      $region23: #{posemb_transformer_decoder.23} parent=15 // pred_region
        %p142 = scmp.lt.s32.totalorder %s9, 1
        %s143 = scalar_select %p142, %s9, 1
        %s144 = smul.addr %s143, 8
        %s145 = scalar_lea.vmem %s1, %s144
      $region24: #{posemb_transformer_decoder.23} parent=15 // pred_fallthru
        _
      // Predicated region
      $region25: #{posemb_transformer_decoder.23} parent=15 // pred_check
        %p146 = pneg %p81
      $region26: #{posemb_transformer_decoder.23} parent=15 // pred_check_branch
        %148 = sbr.rel (%p146) target = $region28
      $region27: #{posemb_transformer_decoder.23} parent=15 // pred_region
        %p149 = scmp.lt.s32.totalorder %s9, 1
        %s150 = scalar_select %p149, %s9, 1
        %s151 = scalar_lea.vmem %s2, %s150
      $region28: #{posemb_transformer_decoder.23} parent=15 // pred_fallthru
        _
    $region16: #{posemb_transformer_decoder.23} parent=5 // pred_fallthru
      _
    %p152 = scmp.le.s32.totalorder 1, %s9
    %p153 = scmp.lt.s32.totalorder %s9, 3
    %p154 = pnand %p152, %p153
    %p155 = pneg %p154
    // Predicated region
    $region29: #{posemb_transformer_decoder.23} parent=5 // pred_check
      _
    $region30: #{posemb_transformer_decoder.23} parent=5 // pred_check_branch
      %157 = sbr.rel (%p154) target = $region32
    $region31: #{posemb_transformer_decoder.23} parent=5 // pred_region
      %s158 = ssub.s32 %s9, 1
      %p159 = scmp.lt.s32.totalorder %s14, 1
      %s160 = scalar_select %p159, %s14, 1
      %s161 = smul.addr %s160, 8
      %s162 = scalar_lea.vmem %s0, %s161
      %p163 = pneg %p35
      %p164 = pneg %p32
      %p165 = scmp.lt.s32.totalorder %s14, 1
      %s166 = scalar_select %p165, %s14, 1
      %s167 = smul.addr %s166, 8
      %s168 = scalar_lea.vmem %s1, %s167
      %p169 = pneg %p61
      %p170 = pneg %p58
      %p171 = scmp.lt.s32.totalorder %s14, 1
      %s172 = scalar_select %p171, %s14, 1
      %s173 = scalar_lea.vmem %s2, %s172
      %p174 = pneg %p87
      %p175 = pneg %p84
      %p176 = pneg %p113
      %p177 = pneg %p110
      %p178 = scmp.lt.s32.totalorder %s14, 1
      %s179 = scalar_select %p178, %s14, 1
      %s180 = smul.addr %s179, 8
      %s181 = scalar_lea.vmem %s3, %s180
      %p182 = scmp.lt.s32.totalorder %s14, 1
      %s183 = scalar_select %p182, %s14, 1
      %s184 = smul.addr %s183, 8
      %s185 = scalar_lea.vmem %s0, %s184
      %p186 = scmp.lt.s32.totalorder %s14, 1
      %s187 = scalar_select %p186, %s14, 1
      %s188 = smul.addr %s187, 8
      %s189 = scalar_lea.vmem %s1, %s188
      %p190 = scmp.lt.s32.totalorder %s14, 1
      %s191 = scalar_select %p190, %s14, 1
      %s192 = scalar_lea.vmem %s2, %s191
      %p193 = scmp.lt.s32.totalorder %s14, 1
      %s194 = scalar_select %p193, %s14, 1
      %s195 = smul.addr %s194, 8
      %s196 = scalar_lea.vmem %s3, %s195
      %v197 = vld [vmem:[%s185] sm:$0xff]
      %v198 = vld [vmem:[%s189] sm:$0xff]
      %v199 = vld [vmem:[%s192] sm:$0x1]
      %v200 = vmul.f32 %v199, -1e+09
      %vm201 = vcmask 64512
      %v203 = vsel %vm201, %v197, 0
      %v206 = vsel %vm201, %v198, 0
      %208 = vmatprep.subr.mxu0 0.0
      %209 = vmatpush1.xpose.msra.mxu0 %v206
      %210 = vmatprep.subr.mxu0 0.0
      %211 = vmatpush1.xpose.msra.mxu0 0.0
      %212 = vmatprep.subr.mxu0 0.0
      %213 = vmatpush1.xpose.msra.mxu0 0.0
      %214 = vmatprep.subr.mxu0 0.0
      %215 = vmatpush1.xpose.msra.mxu0 0.0
      %216 = vmatprep.subr.mxu0 0.0
      %217 = vmatpush1.xpose.msra.mxu0 0.0
      %218 = vmatprep.subr.mxu0 0.0
      %219 = vmatpush1.xpose.msra.mxu0 0.0
      %220 = vmatprep.subr.mxu0 0.0
      %221 = vmatpush1.xpose.msra.mxu0 0.0
      %222 = vmatprep.subr.mxu0 0.0
      %223 = vmatpush1.xpose.msra.mxu0 0.0
      %224 = vmatprep.subr.mxu0 0.0
      %225 = vmatpush1.xpose.msra.mxu0 0.0
      %226 = vmatprep.subr.mxu0 0.0
      %227 = vmatpush1.xpose.msra.mxu0 0.0
      %228 = vmatprep.subr.mxu0 0.0
      %229 = vmatpush1.xpose.msra.mxu0 0.0
      %230 = vmatprep.subr.mxu0 0.0
      %231 = vmatpush1.xpose.msra.mxu0 0.0
      %232 = vmatprep.subr.mxu0 0.0
      %233 = vmatpush1.xpose.msra.mxu0 0.0
      %234 = vmatprep.subr.mxu0 0.0
      %235 = vmatpush1.xpose.msra.mxu0 0.0
      %236 = vmatprep.subr.mxu0 0.0
      %237 = vmatpush1.xpose.msra.mxu0 0.0
      %238 = vmatprep.subr.mxu0 0.0
      %239 = vmatpush1.xpose.msra.mxu0 0.0
      %240 = vmatprep.subr.mxu0 0.0
      %241 = vmatpush1.xpose.msra.mxu0 0.0
      %242 = vmatprep.subr.mxu0 0.0
      %243 = vmatpush1.xpose.msra.mxu0 0.0
      %244 = vmatprep.subr.mxu0 0.0
      %245 = vmatpush1.xpose.msra.mxu0 0.0
      %246 = vmatprep.subr.mxu0 0.0
      %247 = vmatpush1.xpose.msra.mxu0 0.0
      %248 = vmatprep.subr.mxu0 0.0
      %249 = vmatpush1.xpose.msra.mxu0 0.0
      %250 = vmatprep.subr.mxu0 0.0
      %251 = vmatpush1.xpose.msra.mxu0 0.0
      %252 = vmatprep.subr.mxu0 0.0
      %253 = vmatpush1.xpose.msra.mxu0 0.0
      %254 = vmatprep.subr.mxu0 0.0
      %255 = vmatpush1.xpose.msra.mxu0 0.0
      %256 = vmatprep.subr.mxu0 0.0
      %257 = vmatpush1.xpose.msra.mxu0 0.0
      %258 = vmatprep.subr.mxu0 0.0
      %259 = vmatpush1.xpose.msra.mxu0 0.0
      %260 = vmatprep.subr.mxu0 0.0
      %261 = vmatpush1.xpose.msra.mxu0 0.0
      %262 = vmatprep.subr.mxu0 0.0
      %263 = vmatpush1.xpose.msra.mxu0 0.0
      %264 = vmatprep.subr.mxu0 0.0
      %265 = vmatpush1.xpose.msra.mxu0 0.0
      %266 = vmatprep.subr.mxu0 0.0
      %267 = vmatpush1.xpose.msra.mxu0 0.0
      %268 = vmatprep.subr.mxu0 0.0
      %269 = vmatpush1.xpose.msra.mxu0 0.0
      %270 = vmatprep.subr.mxu0 0.0
      %271 = vmatpush1.xpose.msra.mxu0 0.0
      %272 = vmatprep.mubr.f32.mxu0 0.0
      %273 = vmatmul.mubr.f32.gmra.mrb[0].mxu0 %v203
      %v274 = vpop.f32.mrb[0].mxu0
      %v275 = vadd.f32 0.0, %v274
      %v276 = vpop.f32.mrb[0].mxu0
      %277 = vdwg.mxu0
      %v278 = vmul.f32 %v275, 0.35355338
      %v280 = vlaneseq
      %v281 = vshrl.u32 %v280, 7
      %v282 = vsub.s32 0, %v281
      %v283 = vrot.slane %v200, %v282
      %v285 = vadd.f32 %v278, %v283
      %v286 = vsel %vm201, %v285, -inf
      %287 = vmax.xlane.f32.xlu0 %v286
      %v288 = vpop.xlane.xlu0 %287
      %v289 = vsub.f32 %v285, %v288
      %v290 = vmul.f32 %v289, 1.442695
      %v291 = vpow.pop %v290
      %v292 = vsel %vm201, %v291, 0.0
      %293 = vadd.xlane.f32.xlu0 %v292
      %v294 = vpop.xlane.xlu0 %293
      %v295 = vrcp.pop %v294
      %v296 = vmul.f32 %v291, %v295
      %297 = vrot.lane.b32.xlu0 %v198, 96
      %v298 = vpop.permute.xlu0 %297
      %v301 = vsel %vm201, %v296, 0
      %303 = vmatprep.subr.mxu0 0.0
      %304 = vmatpush1.msra.mxu0 %v298
      %305 = vmatprep.subr.mxu0 0.0
      %306 = vmatpush1.msra.mxu0 0.0
      %307 = vmatprep.subr.mxu0 0.0
      %308 = vmatpush1.msra.mxu0 0.0
      %309 = vmatprep.subr.mxu0 0.0
      %310 = vmatpush1.msra.mxu0 0.0
      %311 = vmatprep.subr.mxu0 0.0
      %312 = vmatpush1.msra.mxu0 0.0
      %313 = vmatprep.subr.mxu0 0.0
      %314 = vmatpush1.msra.mxu0 0.0
      %315 = vmatprep.subr.mxu0 0.0
      %316 = vmatpush1.msra.mxu0 0.0
      %317 = vmatprep.subr.mxu0 0.0
      %318 = vmatpush1.msra.mxu0 0.0
      %319 = vmatprep.subr.mxu0 0.0
      %320 = vmatpush1.msra.mxu0 0.0
      %321 = vmatprep.subr.mxu0 0.0
      %322 = vmatpush1.msra.mxu0 0.0
      %323 = vmatprep.subr.mxu0 0.0
      %324 = vmatpush1.msra.mxu0 0.0
      %325 = vmatprep.subr.mxu0 0.0
      %326 = vmatpush1.msra.mxu0 0.0
      %327 = vmatprep.subr.mxu0 0.0
      %328 = vmatpush1.msra.mxu0 0.0
      %329 = vmatprep.subr.mxu0 0.0
      %330 = vmatpush1.msra.mxu0 0.0
      %331 = vmatprep.subr.mxu0 0.0
      %332 = vmatpush1.msra.mxu0 0.0
      %333 = vmatprep.subr.mxu0 0.0
      %334 = vmatpush1.msra.mxu0 0.0
      %335 = vmatprep.subr.mxu0 0.0
      %336 = vmatpush1.msra.mxu0 0.0
      %337 = vmatprep.subr.mxu0 0.0
      %338 = vmatpush1.msra.mxu0 0.0
      %339 = vmatprep.subr.mxu0 0.0
      %340 = vmatpush1.msra.mxu0 0.0
      %341 = vmatprep.subr.mxu0 0.0
      %342 = vmatpush1.msra.mxu0 0.0
      %343 = vmatprep.subr.mxu0 0.0
      %344 = vmatpush1.msra.mxu0 0.0
      %345 = vmatprep.subr.mxu0 0.0
      %346 = vmatpush1.msra.mxu0 0.0
      %347 = vmatprep.subr.mxu0 0.0
      %348 = vmatpush1.msra.mxu0 0.0
      %349 = vmatprep.subr.mxu0 0.0
      %350 = vmatpush1.msra.mxu0 0.0
      %351 = vmatprep.subr.mxu0 0.0
      %352 = vmatpush1.msra.mxu0 0.0
      %353 = vmatprep.subr.mxu0 0.0
      %354 = vmatpush1.msra.mxu0 0.0
      %355 = vmatprep.subr.mxu0 0.0
      %356 = vmatpush1.msra.mxu0 0.0
      %357 = vmatprep.subr.mxu0 0.0
      %358 = vmatpush1.msra.mxu0 0.0
      %359 = vmatprep.subr.mxu0 0.0
      %360 = vmatpush1.msra.mxu0 0.0
      %361 = vmatprep.subr.mxu0 0.0
      %362 = vmatpush1.msra.mxu0 0.0
      %363 = vmatprep.subr.mxu0 0.0
      %364 = vmatpush1.msra.mxu0 0.0
      %365 = vmatprep.subr.mxu0 0.0
      %366 = vmatpush1.msra.mxu0 0.0
      %367 = vmatprep.mubr.f32.mxu0 0.0
      %368 = vmatmul.mubr.f32.gmra.mrb[0].mxu0 %v301
      %v369 = vpop.f32.mrb[0].mxu0
      %v370 = vadd.f32 0.0, %v369
      %v371 = vpop.f32.mrb[0].mxu0
      %372 = vdwg.mxu0
      %373 = vrot.lane.b32.xlu0 %v197, 120
      %v374 = vpop.permute.xlu0 %373
      %375 = vrot.lane.b32.xlu0 %v198, 120
      %v376 = vpop.permute.xlu0 %375
      %v377 = vsel %vm201, %v374, 0
      %v379 = vsel %vm201, %v376, 0
      %381 = vmatprep.subr.mxu0 0.0
      %382 = vmatpush1.xpose.msra.mxu0 %v379
      %383 = vmatprep.subr.mxu0 0.0
      %384 = vmatpush1.xpose.msra.mxu0 0.0
      %385 = vmatprep.subr.mxu0 0.0
      %386 = vmatpush1.xpose.msra.mxu0 0.0
      %387 = vmatprep.subr.mxu0 0.0
      %388 = vmatpush1.xpose.msra.mxu0 0.0
      %389 = vmatprep.subr.mxu0 0.0
      %390 = vmatpush1.xpose.msra.mxu0 0.0
      %391 = vmatprep.subr.mxu0 0.0
      %392 = vmatpush1.xpose.msra.mxu0 0.0
      %393 = vmatprep.subr.mxu0 0.0
      %394 = vmatpush1.xpose.msra.mxu0 0.0
      %395 = vmatprep.subr.mxu0 0.0
      %396 = vmatpush1.xpose.msra.mxu0 0.0
      %397 = vmatprep.subr.mxu0 0.0
      %398 = vmatpush1.xpose.msra.mxu0 0.0
      %399 = vmatprep.subr.mxu0 0.0
      %400 = vmatpush1.xpose.msra.mxu0 0.0
      %401 = vmatprep.subr.mxu0 0.0
      %402 = vmatpush1.xpose.msra.mxu0 0.0
      %403 = vmatprep.subr.mxu0 0.0
      %404 = vmatpush1.xpose.msra.mxu0 0.0
      %405 = vmatprep.subr.mxu0 0.0
      %406 = vmatpush1.xpose.msra.mxu0 0.0
      %407 = vmatprep.subr.mxu0 0.0
      %408 = vmatpush1.xpose.msra.mxu0 0.0
      %409 = vmatprep.subr.mxu0 0.0
      %410 = vmatpush1.xpose.msra.mxu0 0.0
      %411 = vmatprep.subr.mxu0 0.0
      %412 = vmatpush1.xpose.msra.mxu0 0.0
      %413 = vmatprep.subr.mxu0 0.0
      %414 = vmatpush1.xpose.msra.mxu0 0.0
      %415 = vmatprep.subr.mxu0 0.0
      %416 = vmatpush1.xpose.msra.mxu0 0.0
      %417 = vmatprep.subr.mxu0 0.0
      %418 = vmatpush1.xpose.msra.mxu0 0.0
      %419 = vmatprep.subr.mxu0 0.0
      %420 = vmatpush1.xpose.msra.mxu0 0.0
      %421 = vmatprep.subr.mxu0 0.0
      %422 = vmatpush1.xpose.msra.mxu0 0.0
      %423 = vmatprep.subr.mxu0 0.0
      %424 = vmatpush1.xpose.msra.mxu0 0.0
      %425 = vmatprep.subr.mxu0 0.0
      %426 = vmatpush1.xpose.msra.mxu0 0.0
      %427 = vmatprep.subr.mxu0 0.0
      %428 = vmatpush1.xpose.msra.mxu0 0.0
      %429 = vmatprep.subr.mxu0 0.0
      %430 = vmatpush1.xpose.msra.mxu0 0.0
      %431 = vmatprep.subr.mxu0 0.0
      %432 = vmatpush1.xpose.msra.mxu0 0.0
      %433 = vmatprep.subr.mxu0 0.0
      %434 = vmatpush1.xpose.msra.mxu0 0.0
      %435 = vmatprep.subr.mxu0 0.0
      %436 = vmatpush1.xpose.msra.mxu0 0.0
      %437 = vmatprep.subr.mxu0 0.0
      %438 = vmatpush1.xpose.msra.mxu0 0.0
      %439 = vmatprep.subr.mxu0 0.0
      %440 = vmatpush1.xpose.msra.mxu0 0.0
      %441 = vmatprep.subr.mxu0 0.0
      %442 = vmatpush1.xpose.msra.mxu0 0.0
      %443 = vmatprep.subr.mxu0 0.0
      %444 = vmatpush1.xpose.msra.mxu0 0.0
      %445 = vmatprep.mubr.f32.mxu0 0.0
      %446 = vmatmul.mubr.f32.gmra.mrb[0].mxu0 %v377
      %v447 = vpop.f32.mrb[0].mxu0
      %v448 = vadd.f32 0.0, %v447
      %v449 = vpop.f32.mrb[0].mxu0
      %450 = vdwg.mxu0
      %v451 = vmul.f32 %v448, 0.35355338
      %v452 = vadd.f32 %v451, %v283
      %v453 = vsel %vm201, %v452, -inf
      %454 = vmax.xlane.f32.xlu0 %v453
      %v455 = vpop.xlane.xlu0 %454
      %v456 = vsub.f32 %v452, %v455
      %v457 = vmul.f32 %v456, 1.442695
      %v458 = vpow.pop %v457
      %v459 = vsel %vm201, %v458, 0.0
      %460 = vadd.xlane.f32.xlu0 %v459
      %v461 = vpop.xlane.xlu0 %460
      %v462 = vrcp.pop %v461
      %v463 = vmul.f32 %v458, %v462
      %464 = vrot.lane.b32.xlu0 %v198, 88
      %v465 = vpop.permute.xlu0 %464
      %v468 = vsel %vm201, %v463, 0
      %470 = vmatprep.subr.mxu0 0.0
      %471 = vmatpush1.msra.mxu0 %v465
      %472 = vmatprep.subr.mxu0 0.0
      %473 = vmatpush1.msra.mxu0 0.0
      %474 = vmatprep.subr.mxu0 0.0
      %475 = vmatpush1.msra.mxu0 0.0
      %476 = vmatprep.subr.mxu0 0.0
      %477 = vmatpush1.msra.mxu0 0.0
      %478 = vmatprep.subr.mxu0 0.0
      %479 = vmatpush1.msra.mxu0 0.0
      %480 = vmatprep.subr.mxu0 0.0
      %481 = vmatpush1.msra.mxu0 0.0
      %482 = vmatprep.subr.mxu0 0.0
      %483 = vmatpush1.msra.mxu0 0.0
      %484 = vmatprep.subr.mxu0 0.0
      %485 = vmatpush1.msra.mxu0 0.0
      %486 = vmatprep.subr.mxu0 0.0
      %487 = vmatpush1.msra.mxu0 0.0
      %488 = vmatprep.subr.mxu0 0.0
      %489 = vmatpush1.msra.mxu0 0.0
      %490 = vmatprep.subr.mxu0 0.0
      %491 = vmatpush1.msra.mxu0 0.0
      %492 = vmatprep.subr.mxu0 0.0
      %493 = vmatpush1.msra.mxu0 0.0
      %494 = vmatprep.subr.mxu0 0.0
      %495 = vmatpush1.msra.mxu0 0.0
      %496 = vmatprep.subr.mxu0 0.0
      %497 = vmatpush1.msra.mxu0 0.0
      %498 = vmatprep.subr.mxu0 0.0
      %499 = vmatpush1.msra.mxu0 0.0
      %500 = vmatprep.subr.mxu0 0.0
      %501 = vmatpush1.msra.mxu0 0.0
      %502 = vmatprep.subr.mxu0 0.0
      %503 = vmatpush1.msra.mxu0 0.0
      %504 = vmatprep.subr.mxu0 0.0
      %505 = vmatpush1.msra.mxu0 0.0
      %506 = vmatprep.subr.mxu0 0.0
      %507 = vmatpush1.msra.mxu0 0.0
      %508 = vmatprep.subr.mxu0 0.0
      %509 = vmatpush1.msra.mxu0 0.0
      %510 = vmatprep.subr.mxu0 0.0
      %511 = vmatpush1.msra.mxu0 0.0
      %512 = vmatprep.subr.mxu0 0.0
      %513 = vmatpush1.msra.mxu0 0.0
      %514 = vmatprep.subr.mxu0 0.0
      %515 = vmatpush1.msra.mxu0 0.0
      %516 = vmatprep.subr.mxu0 0.0
      %517 = vmatpush1.msra.mxu0 0.0
      %518 = vmatprep.subr.mxu0 0.0
      %519 = vmatpush1.msra.mxu0 0.0
      %520 = vmatprep.subr.mxu0 0.0
      %521 = vmatpush1.msra.mxu0 0.0
      %522 = vmatprep.subr.mxu0 0.0
      %523 = vmatpush1.msra.mxu0 0.0
      %524 = vmatprep.subr.mxu0 0.0
      %525 = vmatpush1.msra.mxu0 0.0
      %526 = vmatprep.subr.mxu0 0.0
      %527 = vmatpush1.msra.mxu0 0.0
      %528 = vmatprep.subr.mxu0 0.0
      %529 = vmatpush1.msra.mxu0 0.0
      %530 = vmatprep.subr.mxu0 0.0
      %531 = vmatpush1.msra.mxu0 0.0
      %532 = vmatprep.subr.mxu0 0.0
      %533 = vmatpush1.msra.mxu0 0.0
      %534 = vmatprep.mubr.f32.mxu0 0.0
      %535 = vmatmul.mubr.f32.gmra.mrb[0].mxu0 %v468
      %v536 = vpop.f32.mrb[0].mxu0
      %v537 = vadd.f32 0.0, %v536
      %v538 = vpop.f32.mrb[0].mxu0
      %539 = vdwg.mxu0
      %540 = vrot.lane.b32.xlu0 %v197, 112
      %v541 = vpop.permute.xlu0 %540
      %542 = vrot.lane.b32.xlu0 %v198, 112
      %v543 = vpop.permute.xlu0 %542
      %v544 = vsel %vm201, %v541, 0
      %v546 = vsel %vm201, %v543, 0
      %548 = vmatprep.subr.mxu0 0.0
      %549 = vmatpush1.xpose.msra.mxu0 %v546
      %550 = vmatprep.subr.mxu0 0.0
      %551 = vmatpush1.xpose.msra.mxu0 0.0
      %552 = vmatprep.subr.mxu0 0.0
      %553 = vmatpush1.xpose.msra.mxu0 0.0
      %554 = vmatprep.subr.mxu0 0.0
      %555 = vmatpush1.xpose.msra.mxu0 0.0
      %556 = vmatprep.subr.mxu0 0.0
      %557 = vmatpush1.xpose.msra.mxu0 0.0
      %558 = vmatprep.subr.mxu0 0.0
      %559 = vmatpush1.xpose.msra.mxu0 0.0
      %560 = vmatprep.subr.mxu0 0.0
      %561 = vmatpush1.xpose.msra.mxu0 0.0
      %562 = vmatprep.subr.mxu0 0.0
      %563 = vmatpush1.xpose.msra.mxu0 0.0
      %564 = vmatprep.subr.mxu0 0.0
      %565 = vmatpush1.xpose.msra.mxu0 0.0
      %566 = vmatprep.subr.mxu0 0.0
      %567 = vmatpush1.xpose.msra.mxu0 0.0
      %568 = vmatprep.subr.mxu0 0.0
      %569 = vmatpush1.xpose.msra.mxu0 0.0
      %570 = vmatprep.subr.mxu0 0.0
      %571 = vmatpush1.xpose.msra.mxu0 0.0
      %572 = vmatprep.subr.mxu0 0.0
      %573 = vmatpush1.xpose.msra.mxu0 0.0
      %574 = vmatprep.subr.mxu0 0.0
      %575 = vmatpush1.xpose.msra.mxu0 0.0
      %576 = vmatprep.subr.mxu0 0.0
      %577 = vmatpush1.xpose.msra.mxu0 0.0
      %578 = vmatprep.subr.mxu0 0.0
      %579 = vmatpush1.xpose.msra.mxu0 0.0
      %580 = vmatprep.subr.mxu0 0.0
      %581 = vmatpush1.xpose.msra.mxu0 0.0
      %582 = vmatprep.subr.mxu0 0.0
      %583 = vmatpush1.xpose.msra.mxu0 0.0
      %584 = vmatprep.subr.mxu0 0.0
      %585 = vmatpush1.xpose.msra.mxu0 0.0
      %586 = vmatprep.subr.mxu0 0.0
      %587 = vmatpush1.xpose.msra.mxu0 0.0
      %588 = vmatprep.subr.mxu0 0.0
      %589 = vmatpush1.xpose.msra.mxu0 0.0
      %590 = vmatprep.subr.mxu0 0.0
      %591 = vmatpush1.xpose.msra.mxu0 0.0
      %592 = vmatprep.subr.mxu0 0.0
      %593 = vmatpush1.xpose.msra.mxu0 0.0
      %594 = vmatprep.subr.mxu0 0.0
      %595 = vmatpush1.xpose.msra.mxu0 0.0
      %596 = vmatprep.subr.mxu0 0.0
      %597 = vmatpush1.xpose.msra.mxu0 0.0
      %598 = vmatprep.subr.mxu0 0.0
      %599 = vmatpush1.xpose.msra.mxu0 0.0
      %600 = vmatprep.subr.mxu0 0.0
      %601 = vmatpush1.xpose.msra.mxu0 0.0
      %602 = vmatprep.subr.mxu0 0.0
      %603 = vmatpush1.xpose.msra.mxu0 0.0
      %604 = vmatprep.subr.mxu0 0.0
      %605 = vmatpush1.xpose.msra.mxu0 0.0
      %606 = vmatprep.subr.mxu0 0.0
      %607 = vmatpush1.xpose.msra.mxu0 0.0
      %608 = vmatprep.subr.mxu0 0.0
      %609 = vmatpush1.xpose.msra.mxu0 0.0
      %610 = vmatprep.subr.mxu0 0.0
      %611 = vmatpush1.xpose.msra.mxu0 0.0
      %612 = vmatprep.mubr.f32.mxu0 0.0
      %613 = vmatmul.mubr.f32.gmra.mrb[0].mxu0 %v544
      %v614 = vpop.f32.mrb[0].mxu0
      %v615 = vadd.f32 0.0, %v614
      %v616 = vpop.f32.mrb[0].mxu0
      %617 = vdwg.mxu0
      %v618 = vmul.f32 %v615, 0.35355338
      %v619 = vadd.f32 %v618, %v283
      %v620 = vsel %vm201, %v619, -inf
      %621 = vmax.xlane.f32.xlu0 %v620
      %v622 = vpop.xlane.xlu0 %621
      %v623 = vsub.f32 %v619, %v622
      %v624 = vmul.f32 %v623, 1.442695
      %v625 = vpow.pop %v624
      %v626 = vsel %vm201, %v625, 0.0
      %627 = vadd.xlane.f32.xlu0 %v626
      %v628 = vpop.xlane.xlu0 %627
      %v629 = vrcp.pop %v628
      %v630 = vmul.f32 %v625, %v629
      %631 = vrot.lane.b32.xlu0 %v198, 80
      %v632 = vpop.permute.xlu0 %631
      %v635 = vsel %vm201, %v630, 0
      %637 = vmatprep.subr.mxu0 0.0
      %638 = vmatpush1.msra.mxu0 %v632
      %639 = vmatprep.subr.mxu0 0.0
      %640 = vmatpush1.msra.mxu0 0.0
      %641 = vmatprep.subr.mxu0 0.0
      %642 = vmatpush1.msra.mxu0 0.0
      %643 = vmatprep.subr.mxu0 0.0
      %644 = vmatpush1.msra.mxu0 0.0
      %645 = vmatprep.subr.mxu0 0.0
      %646 = vmatpush1.msra.mxu0 0.0
      %647 = vmatprep.subr.mxu0 0.0
      %648 = vmatpush1.msra.mxu0 0.0
      %649 = vmatprep.subr.mxu0 0.0
      %650 = vmatpush1.msra.mxu0 0.0
      %651 = vmatprep.subr.mxu0 0.0
      %652 = vmatpush1.msra.mxu0 0.0
      %653 = vmatprep.subr.mxu0 0.0
      %654 = vmatpush1.msra.mxu0 0.0
      %655 = vmatprep.subr.mxu0 0.0
      %656 = vmatpush1.msra.mxu0 0.0
      %657 = vmatprep.subr.mxu0 0.0
      %658 = vmatpush1.msra.mxu0 0.0
      %659 = vmatprep.subr.mxu0 0.0
      %660 = vmatpush1.msra.mxu0 0.0
      %661 = vmatprep.subr.mxu0 0.0
      %662 = vmatpush1.msra.mxu0 0.0
      %663 = vmatprep.subr.mxu0 0.0
      %664 = vmatpush1.msra.mxu0 0.0
      %665 = vmatprep.subr.mxu0 0.0
      %666 = vmatpush1.msra.mxu0 0.0
      %667 = vmatprep.subr.mxu0 0.0
      %668 = vmatpush1.msra.mxu0 0.0
      %669 = vmatprep.subr.mxu0 0.0
      %670 = vmatpush1.msra.mxu0 0.0
      %671 = vmatprep.subr.mxu0 0.0
      %672 = vmatpush1.msra.mxu0 0.0
      %673 = vmatprep.subr.mxu0 0.0
      %674 = vmatpush1.msra.mxu0 0.0
      %675 = vmatprep.subr.mxu0 0.0
      %676 = vmatpush1.msra.mxu0 0.0
      %677 = vmatprep.subr.mxu0 0.0
      %678 = vmatpush1.msra.mxu0 0.0
      %679 = vmatprep.subr.mxu0 0.0
      %680 = vmatpush1.msra.mxu0 0.0
      %681 = vmatprep.subr.mxu0 0.0
      %682 = vmatpush1.msra.mxu0 0.0
      %683 = vmatprep.subr.mxu0 0.0
      %684 = vmatpush1.msra.mxu0 0.0
      %685 = vmatprep.subr.mxu0 0.0
      %686 = vmatpush1.msra.mxu0 0.0
      %687 = vmatprep.subr.mxu0 0.0
      %688 = vmatpush1.msra.mxu0 0.0
      %689 = vmatprep.subr.mxu0 0.0
      %690 = vmatpush1.msra.mxu0 0.0
      %691 = vmatprep.subr.mxu0 0.0
      %692 = vmatpush1.msra.mxu0 0.0
      %693 = vmatprep.subr.mxu0 0.0
      %694 = vmatpush1.msra.mxu0 0.0
      %695 = vmatprep.subr.mxu0 0.0
      %696 = vmatpush1.msra.mxu0 0.0
      %697 = vmatprep.subr.mxu0 0.0
      %698 = vmatpush1.msra.mxu0 0.0
      %699 = vmatprep.subr.mxu0 0.0
      %700 = vmatpush1.msra.mxu0 0.0
      %701 = vmatprep.mubr.f32.mxu0 0.0
      %702 = vmatmul.mubr.f32.gmra.mrb[0].mxu0 %v635
      %v703 = vpop.f32.mrb[0].mxu0
      %v704 = vadd.f32 0.0, %v703
      %v705 = vpop.f32.mrb[0].mxu0
      %706 = vdwg.mxu0
      %707 = vrot.lane.b32.xlu0 %v197, 104
      %v708 = vpop.permute.xlu0 %707
      %709 = vrot.lane.b32.xlu0 %v198, 104
      %v710 = vpop.permute.xlu0 %709
      %v711 = vsel %vm201, %v708, 0
      %v713 = vsel %vm201, %v710, 0
      %715 = vmatprep.subr.mxu0 0.0
      %716 = vmatpush1.xpose.msra.mxu0 %v713
      %717 = vmatprep.subr.mxu0 0.0
      %718 = vmatpush1.xpose.msra.mxu0 0.0
      %719 = vmatprep.subr.mxu0 0.0
      %720 = vmatpush1.xpose.msra.mxu0 0.0
      %721 = vmatprep.subr.mxu0 0.0
      %722 = vmatpush1.xpose.msra.mxu0 0.0
      %723 = vmatprep.subr.mxu0 0.0
      %724 = vmatpush1.xpose.msra.mxu0 0.0
      %725 = vmatprep.subr.mxu0 0.0
      %726 = vmatpush1.xpose.msra.mxu0 0.0
      %727 = vmatprep.subr.mxu0 0.0
      %728 = vmatpush1.xpose.msra.mxu0 0.0
      %729 = vmatprep.subr.mxu0 0.0
      %730 = vmatpush1.xpose.msra.mxu0 0.0
      %731 = vmatprep.subr.mxu0 0.0
      %732 = vmatpush1.xpose.msra.mxu0 0.0
      %733 = vmatprep.subr.mxu0 0.0
      %734 = vmatpush1.xpose.msra.mxu0 0.0
      %735 = vmatprep.subr.mxu0 0.0
      %736 = vmatpush1.xpose.msra.mxu0 0.0
      %737 = vmatprep.subr.mxu0 0.0
      %738 = vmatpush1.xpose.msra.mxu0 0.0
      %739 = vmatprep.subr.mxu0 0.0
      %740 = vmatpush1.xpose.msra.mxu0 0.0
      %741 = vmatprep.subr.mxu0 0.0
      %742 = vmatpush1.xpose.msra.mxu0 0.0
      %743 = vmatprep.subr.mxu0 0.0
      %744 = vmatpush1.xpose.msra.mxu0 0.0
      %745 = vmatprep.subr.mxu0 0.0
      %746 = vmatpush1.xpose.msra.mxu0 0.0
      %747 = vmatprep.subr.mxu0 0.0
      %748 = vmatpush1.xpose.msra.mxu0 0.0
      %749 = vmatprep.subr.mxu0 0.0
      %750 = vmatpush1.xpose.msra.mxu0 0.0
      %751 = vmatprep.subr.mxu0 0.0
      %752 = vmatpush1.xpose.msra.mxu0 0.0
      %753 = vmatprep.subr.mxu0 0.0
      %754 = vmatpush1.xpose.msra.mxu0 0.0
      %755 = vmatprep.subr.mxu0 0.0
      %756 = vmatpush1.xpose.msra.mxu0 0.0
      %757 = vmatprep.subr.mxu0 0.0
      %758 = vmatpush1.xpose.msra.mxu0 0.0
      %759 = vmatprep.subr.mxu0 0.0
      %760 = vmatpush1.xpose.msra.mxu0 0.0
      %761 = vmatprep.subr.mxu0 0.0
      %762 = vmatpush1.xpose.msra.mxu0 0.0
      %763 = vmatprep.subr.mxu0 0.0
      %764 = vmatpush1.xpose.msra.mxu0 0.0
      %765 = vmatprep.subr.mxu0 0.0
      %766 = vmatpush1.xpose.msra.mxu0 0.0
      %767 = vmatprep.subr.mxu0 0.0
      %768 = vmatpush1.xpose.msra.mxu0 0.0
      %769 = vmatprep.subr.mxu0 0.0
      %770 = vmatpush1.xpose.msra.mxu0 0.0
      %771 = vmatprep.subr.mxu0 0.0
      %772 = vmatpush1.xpose.msra.mxu0 0.0
      %773 = vmatprep.subr.mxu0 0.0
      %774 = vmatpush1.xpose.msra.mxu0 0.0
      %775 = vmatprep.subr.mxu0 0.0
      %776 = vmatpush1.xpose.msra.mxu0 0.0
      %777 = vmatprep.subr.mxu0 0.0
      %778 = vmatpush1.xpose.msra.mxu0 0.0
      %779 = vmatprep.mubr.f32.mxu0 0.0
      %780 = vmatmul.mubr.f32.gmra.mrb[0].mxu0 %v711
      %v781 = vpop.f32.mrb[0].mxu0
      %v782 = vadd.f32 0.0, %v781
      %v783 = vpop.f32.mrb[0].mxu0
      %784 = vdwg.mxu0
      %v785 = vmul.f32 %v782, 0.35355338
      %v786 = vadd.f32 %v785, %v283
      %v787 = vsel %vm201, %v786, -inf
      %788 = vmax.xlane.f32.xlu0 %v787
      %v789 = vpop.xlane.xlu0 %788
      %v790 = vsub.f32 %v786, %v789
      %v791 = vmul.f32 %v790, 1.442695
      %v792 = vpow.pop %v791
      %v793 = vsel %vm201, %v792, 0.0
      %794 = vadd.xlane.f32.xlu0 %v793
      %v795 = vpop.xlane.xlu0 %794
      %v796 = vrcp.pop %v795
      %v797 = vmul.f32 %v792, %v796
      %798 = vrot.lane.b32.xlu0 %v198, 72
      %v799 = vpop.permute.xlu0 %798
      %v802 = vsel %vm201, %v797, 0
      %804 = vmatprep.subr.mxu0 0.0
      %805 = vmatpush1.msra.mxu0 %v799
      %806 = vmatprep.subr.mxu0 0.0
      %807 = vmatpush1.msra.mxu0 0.0
      %808 = vmatprep.subr.mxu0 0.0
      %809 = vmatpush1.msra.mxu0 0.0
      %810 = vmatprep.subr.mxu0 0.0
      %811 = vmatpush1.msra.mxu0 0.0
      %812 = vmatprep.subr.mxu0 0.0
      %813 = vmatpush1.msra.mxu0 0.0
      %814 = vmatprep.subr.mxu0 0.0
      %815 = vmatpush1.msra.mxu0 0.0
      %816 = vmatprep.subr.mxu0 0.0
      %817 = vmatpush1.msra.mxu0 0.0
      %818 = vmatprep.subr.mxu0 0.0
      %819 = vmatpush1.msra.mxu0 0.0
      %820 = vmatprep.subr.mxu0 0.0
      %821 = vmatpush1.msra.mxu0 0.0
      %822 = vmatprep.subr.mxu0 0.0
      %823 = vmatpush1.msra.mxu0 0.0
      %824 = vmatprep.subr.mxu0 0.0
      %825 = vmatpush1.msra.mxu0 0.0
      %826 = vmatprep.subr.mxu0 0.0
      %827 = vmatpush1.msra.mxu0 0.0
      %828 = vmatprep.subr.mxu0 0.0
      %829 = vmatpush1.msra.mxu0 0.0
      %830 = vmatprep.subr.mxu0 0.0
      %831 = vmatpush1.msra.mxu0 0.0
      %832 = vmatprep.subr.mxu0 0.0
      %833 = vmatpush1.msra.mxu0 0.0
      %834 = vmatprep.subr.mxu0 0.0
      %835 = vmatpush1.msra.mxu0 0.0
      %836 = vmatprep.subr.mxu0 0.0
      %837 = vmatpush1.msra.mxu0 0.0
      %838 = vmatprep.subr.mxu0 0.0
      %839 = vmatpush1.msra.mxu0 0.0
      %840 = vmatprep.subr.mxu0 0.0
      %841 = vmatpush1.msra.mxu0 0.0
      %842 = vmatprep.subr.mxu0 0.0
      %843 = vmatpush1.msra.mxu0 0.0
      %844 = vmatprep.subr.mxu0 0.0
      %845 = vmatpush1.msra.mxu0 0.0
      %846 = vmatprep.subr.mxu0 0.0
      %847 = vmatpush1.msra.mxu0 0.0
      %848 = vmatprep.subr.mxu0 0.0
      %849 = vmatpush1.msra.mxu0 0.0
      %850 = vmatprep.subr.mxu0 0.0
      %851 = vmatpush1.msra.mxu0 0.0
      %852 = vmatprep.subr.mxu0 0.0
      %853 = vmatpush1.msra.mxu0 0.0
      %854 = vmatprep.subr.mxu0 0.0
      %855 = vmatpush1.msra.mxu0 0.0
      %856 = vmatprep.subr.mxu0 0.0
      %857 = vmatpush1.msra.mxu0 0.0
      %858 = vmatprep.subr.mxu0 0.0
      %859 = vmatpush1.msra.mxu0 0.0
      %860 = vmatprep.subr.mxu0 0.0
      %861 = vmatpush1.msra.mxu0 0.0
      %862 = vmatprep.subr.mxu0 0.0
      %863 = vmatpush1.msra.mxu0 0.0
      %864 = vmatprep.subr.mxu0 0.0
      %865 = vmatpush1.msra.mxu0 0.0
      %866 = vmatprep.subr.mxu0 0.0
      %867 = vmatpush1.msra.mxu0 0.0
      %868 = vmatprep.mubr.f32.mxu0 0.0
      %869 = vmatmul.mubr.f32.gmra.mrb[0].mxu0 %v802
      %v870 = vpop.f32.mrb[0].mxu0
      %v871 = vadd.f32 0.0, %v870
      %v872 = vpop.f32.mrb[0].mxu0
      %873 = vdwg.mxu0
      %875 = vrot.lane.b32.xlu0 %v537, 8
      %v876 = vpop.permute.xlu0 %875
      %879 = vrot.lane.b32.xlu0 %v704, 16
      %v880 = vpop.permute.xlu0 %879
      %883 = vrot.lane.b32.xlu0 %v871, 24
      %v884 = vpop.permute.xlu0 %883
      %v886 = vsel %vm201, %v370, %v876
      %vm887 = vcmask 130048
      %v888 = vsel %vm887, %v886, %v880
      %vm889 = vcmask 195584
      %v890 = vsel %vm889, %v888, %v884
      %vm891 = vcmask 261120
      %892 = vst.msk [vmem:[%s196] sm:$0xff] %vm891, %v890
      %p893 = scmp.lt.s32.totalorder %s14, 1
      %s894 = scalar_select %p893, %s14, 1
      %s895 = smul.addr %s894, 8
      %s896 = scalar_lea.vmem %s3, %s895
      // Predicated region
      $region33: #{posemb_transformer_decoder.23} parent=31 // pred_check
        %p897 = pneg %p110
      $region34: #{posemb_transformer_decoder.23} parent=31 // pred_check_branch
        %899 = sbr.rel (%p897) target = $region36
      $region35: #{posemb_transformer_decoder.23} parent=31 // pred_region
        _
      $region36: #{posemb_transformer_decoder.23} parent=31 // pred_fallthru
        _
    $region32: #{posemb_transformer_decoder.23} parent=5 // pred_fallthru
      _
    %p900 = scmp.le.s32.totalorder 2, %s9
    // Predicated region
    $region37: #{posemb_transformer_decoder.23} parent=5 // pred_check
      %p901 = pneg %p900
    $region38: #{posemb_transformer_decoder.23} parent=5 // pred_check_branch
      %903 = sbr.rel (%p901) target = $region40
    $region39: #{posemb_transformer_decoder.23} parent=5 // pred_region
      %s904 = ssub.s32 %s9, 2
      // Predicated region
      $region41: #{posemb_transformer_decoder.23} parent=39 // pred_check
        %p905 = pneg %p116
      $region42: #{posemb_transformer_decoder.23} parent=39 // pred_check_branch
        %907 = sbr.rel (%p905) target = $region44
      $region43: #{posemb_transformer_decoder.23} parent=39 // pred_region
        %p908 = scmp.lt.s32.totalorder %s15, 1
        %s909 = scalar_select %p908, %s15, 1
        %s910 = smul.addr %s909, 8
        %s911 = scalar_lea.vmem %s3, %s910
      $region44: #{posemb_transformer_decoder.23} parent=39 // pred_fallthru
        _
    $region40: #{posemb_transformer_decoder.23} parent=5 // pred_fallthru
      _
  $region6: #{posemb_transformer_decoder.23} parent=0 // loop_footer
    %s13 = sadd.s32 1, %s9
  $region7: #{posemb_transformer_decoder.23} parent=0 // loop_footer_branch
    %8 = sbr.rel target = $region3
  $region8: #{posemb_transformer_decoder.23} parent=0 // loop_exit
    _

</llo_original>
